<compile_context>
chip_gen: v7x
topology: tpu7x:2x2x1
jax: 0.10.0
libtpu: 0.0.40
codegen_flags: <defaults>
</compile_context>

<pallas_src>
from functools import partial

import jax
import jax.numpy as jnp
from jax import lax
from jax.experimental import pallas as pl
from jax.experimental.pallas import tpu as pltpu


def _largest_divisor_leq(n, cap, multiple=1):
    """Largest t <= cap with n % t == 0 and t % multiple == 0; falls back to n."""
    cap = max(1, min(cap, n))
    for t in range(cap, 0, -1):
        if n % t == 0 and t % multiple == 0:
            return t
    return n


# ----------------------------------------------------------------------------
# Kernel 1: row-tiled pointwise (1x1) conv:  (R, Cin) @ (Cin, Cout) + bias
# ----------------------------------------------------------------------------
def _pwconv_kernel(x_ref, w_ref, b_ref, o_ref):
    o_ref[...] = (
        jnp.dot(x_ref[...], w_ref[...], preferred_element_type=jnp.float32)
        + b_ref[...]
    )


def pointwise_conv(x_rows, w, b, *, tile_r=512):
    R, Cin = x_rows.shape
    Cout = w.shape[1]
    if tile_r >= R or R % 8 != 0:
        tr = R                                     # single full-extent block
    else:
        tr = _largest_divisor_leq(R, tile_r, multiple=8)
    grid = (pl.cdiv(R, tr),)
    return pl.pallas_call(
        _pwconv_kernel,
        out_shape=jax.ShapeDtypeStruct((R, Cout), jnp.float32),
        grid=grid,
        in_specs=[
            pl.BlockSpec((tr, Cin), lambda i: (i, 0)),
            pl.BlockSpec((Cin, Cout), lambda i: (0, 0)),
            pl.BlockSpec((1, Cout), lambda i: (0, 0)),
        ],
        out_specs=pl.BlockSpec((tr, Cout), lambda i: (i, 0)),
        compiler_params=pltpu.CompilerParams(
            dimension_semantics=("parallel",),
            vmem_limit_bytes=32 * 1024 * 1024,
        ),
    )(x_rows, w, b.reshape(1, Cout))


# ----------------------------------------------------------------------------
# Kernel 2: fused clustering core, G fold-slabs per grid step.
#   sim   = beta + alpha * cos(centers, points)          (G, M, N)  [VMEM only]
#   agg   = sim @ value                                  (G, M, c)
#   out_A = sim^T @ (value_centers + clu_beta)           (G, N, c)
#   out_B = sim^T @ agg                                  (G, N, c)
#   rowsum= sim.sum(-1)                                  (G, M, 1)  [for count]
# Final combine (JAX glue):  out = out_A + out_B / count
# ----------------------------------------------------------------------------
def _cluster_kernel(scal_ref, ctr_ref, x_ref, v_ref, vc_ref,
                    out_a_ref, out_b_ref, rowsum_ref):
    alpha = scal_ref[0]
    beta = scal_ref[1]
    clu = scal_ref[2]

    eps2 = 1e-24  # (F.normalize eps=1e-12)^2 ; rsqrt form is equivalent
    ctr = ctr_ref[...]   # (G, M, c)
    x = x_ref[...]       # (G, N, c)
    v = v_ref[...]       # (G, N, c)
    vc = vc_ref[...]     # (G, M, c)

    ctr_n = ctr * lax.rsqrt(
        jnp.maximum(jnp.sum(ctr * ctr, axis=-1, keepdims=True), eps2))
    x_n = x * lax.rsqrt(
        jnp.maximum(jnp.sum(x * x, axis=-1, keepdims=True), eps2))

    cos = jnp.einsum('gmc,gnc->gmn', ctr_n, x_n,
                     preferred_element_type=jnp.float32)
    sim = beta + alpha * cos                                       # (G, M, N)

    rowsum_ref[...] = jnp.sum(sim, axis=-1, keepdims=True)         # (G, M, 1)

    agg = jnp.einsum('gmn,gnc->gmc', sim, v,
                     preferred_element_type=jnp.float32)           # (G, M, c)

    out_a_ref[...] = jnp.einsum('gmn,gmc->gnc', sim, vc + clu,
                                preferred_element_type=jnp.float32)
    out_b_ref[...] = jnp.einsum('gmn,gmc->gnc', sim, agg,
                                preferred_element_type=jnp.float32)


def cluster_fused(centers, x2, v2, value_centers, scalars, *, slab_group=8):
    Bp, M, c = centers.shape
    N = x2.shape[1]
    G = _largest_divisor_leq(Bp, slab_group)
    grid = (Bp // G,)
    out_a, out_b, rowsum = pl.pallas_call(
        _cluster_kernel,
        out_shape=(
            jax.ShapeDtypeStruct((Bp, N, c), jnp.float32),
            jax.ShapeDtypeStruct((Bp, N, c), jnp.float32),
            jax.ShapeDtypeStruct((Bp, M, 1), jnp.float32),
        ),
        grid=grid,
        in_specs=[
            pl.BlockSpec(memory_space=pltpu.MemorySpace.SMEM),   # (3,) scalars
            pl.BlockSpec((G, M, c), lambda b: (b, 0, 0)),
            pl.BlockSpec((G, N, c), lambda b: (b, 0, 0)),
            pl.BlockSpec((G, N, c), lambda b: (b, 0, 0)),
            pl.BlockSpec((G, M, c), lambda b: (b, 0, 0)),
        ],
        out_specs=(
            pl.BlockSpec((G, N, c), lambda b: (b, 0, 0)),
            pl.BlockSpec((G, N, c), lambda b: (b, 0, 0)),
            pl.BlockSpec((G, M, 1), lambda b: (b, 0, 0)),
        ),
        compiler_params=pltpu.CompilerParams(
            dimension_semantics=("parallel",),
            vmem_limit_bytes=32 * 1024 * 1024,
        ),
    )(scalars, centers, x2, v2, value_centers)
    return out_a, out_b, rowsum


# ----------------------------------------------------------------------------
# Full forward pass (layout glue in JAX, hot paths in Pallas)
# ----------------------------------------------------------------------------
def cluster_forward(x, params, *, heads, head_dim, fold_w, fold_h,
                    prop_w, prop_h, tile_r=256, slab_group=8):
    B, dim, W0, H0 = x.shape
    D = heads * head_dim

    # --- f(x) and v(x) 1x1 convs fused into ONE Pallas matmul (NCHW -> rows).
    x_rows = jnp.transpose(x, (0, 2, 3, 1)).reshape(B * W0 * H0, dim)
    w_fv = jnp.concatenate([params["Wf"], params["Wv"]], axis=1)   # (dim, 2D)
    b_fv = jnp.concatenate([params["bf"], params["bv"]], axis=0)   # (2D,)
    fv_rows = pointwise_conv(x_rows, w_fv, b_fv, tile_r=tile_r)
    f_rows = fv_rows[:, :D]
    v_rows = fv_rows[:, D:]

    # --- 'b (e c) w h -> (b e) c w h' (channel-last equivalent)
    # TODO(synk): head-split / fold / unfold transposes stay as XLA layout glue.
    def split_heads(rows):
        t = rows.reshape(B, W0, H0, heads, head_dim)
        return jnp.transpose(t, (0, 3, 1, 2, 4)).reshape(
            B * heads, W0, H0, head_dim)

    xh = split_heads(f_rows)
    vh = split_heads(v_rows)

    # --- mask[:, :, -5:, -5:] = True ; x = x * ~mask
    keep = jnp.ones((W0, H0), jnp.float32).at[W0 - 5:, H0 - 5:].set(0.0)
    xh = xh * keep[None, :, :, None]
    vh = vh * keep[None, :, :, None]

    # --- fold: 'b c (f1 w) (f2 h) -> (b f1 f2) c w h'
    w, h = W0 // fold_w, H0 // fold_h

    def fold(t):
        t = t.reshape(B * heads, fold_w, w, fold_h, h, head_dim)
        t = jnp.transpose(t, (0, 1, 3, 2, 4, 5))
        return t.reshape(B * heads * fold_w * fold_h, w, h, head_dim)

    xf = fold(xh)
    vf = fold(vh)
    Bp = xf.shape[0]
    N = w * h
    M = prop_w * prop_h

    # --- AdaptiveAvgPool2d((prop_w, prop_h))  (evenly divisible -> block mean)
    def pool(t):
        t = t.reshape(Bp, prop_w, w // prop_w, prop_h, h // prop_h, head_dim)
        return t.mean(axis=(2, 4)).reshape(Bp, M, head_dim)

    centers = pool(xf)            # (Bp, M, c)
    value_centers = pool(vf)      # (Bp, M, c)

    x2 = xf.reshape(Bp, N, head_dim)
    v2 = vf.reshape(Bp, N, head_dim)

    scalars = jnp.concatenate(
        [params["sim_alpha"], params["sim_beta"], params["clu_beta"]]
    ).astype(jnp.float32)                                          # (3,)

    # --- fused Pallas clustering kernel (sim never leaves VMEM)
    out_a, out_b, rowsum = cluster_fused(
        centers, x2, v2, value_centers, scalars, slab_group=slab_group)

    # global scalar: (sim.sum(dim=2) != 0).sum()  -- from in-kernel row-sums
    count = jnp.sum(rowsum != 0.0).astype(jnp.float32)
    # (as in the reference, count == 0 would yield inf/nan; no guard added)
    out_pts = out_a + out_b * (1.0 / count)      # (Bp, N, c)
    # LeakyReLU(...).negative_slope == identity -> already folded into out_a/out_b

    # --- unfold: '(b f1 f2) c w h -> b c (f1 w) (f2 h)'
    t = out_pts.reshape(B * heads, fold_w, fold_h, w, h, head_dim)
    t = jnp.transpose(t, (0, 1, 3, 2, 4, 5)).reshape(B * heads, W0, H0, head_dim)

    # --- '(b e) c w h -> b (e c) w h'
    t = t.reshape(B, heads, W0, H0, head_dim)
    t = jnp.transpose(t, (0, 2, 3, 1, 4)).reshape(B * W0 * H0, heads * head_dim)

    # --- proj: 1x1 conv as row-tiled Pallas matmul
    o_rows = pointwise_conv(t, params["Wp"], params["bp"], tile_r=tile_r)
    out_dim = params["Wp"].shape[1]
    out = o_rows.reshape(B, W0, H0, out_dim)
    return jnp.transpose(out, (0, 3, 1, 2))   # back to NCHW


# ----------------------------------------------------------------------------
# Pure-JAX reference (direct translation of the torch forward) for validation
# ----------------------------------------------------------------------------
def cluster_forward_ref(x, params, *, heads, head_dim, fold_w, fold_h,
                        prop_w, prop_h):
    B, dim, W0, H0 = x.shape
    xr = jnp.transpose(x, (0, 2, 3, 1)).reshape(-1, dim)
    f = xr @ params["Wf"] + params["bf"]
    v = xr @ params["Wv"] + params["bv"]

    def split(rows):
        t = rows.reshape(B, W0, H0, heads, head_dim)
        return jnp.transpose(t, (0, 3, 1, 2, 4)).reshape(
            B * heads, W0, H0, head_dim)

    xh, vh = split(f), split(v)
    keep = jnp.ones((W0, H0), jnp.float32).at[W0 - 5:, H0 - 5:].set(0.0)
    xh = xh * keep[None, :, :, None]
    vh = vh * keep[None, :, :, None]
    w, h = W0 // fold_w, H0 // fold_h

    def fold(t):
        t = t.reshape(B * heads, fold_w, w, fold_h, h, head_dim)
        return jnp.transpose(t, (0, 1, 3, 2, 4, 5)).reshape(-1, w, h, head_dim)

    xf, vf = fold(xh), fold(vh)
    Bp, N, M = xf.shape[0], w * h, prop_w * prop_h

    def pool(t):
        t = t.reshape(Bp, prop_w, w // prop_w, prop_h, h // prop_h, head_dim)
        return t.mean(axis=(2, 4)).reshape(Bp, M, head_dim)

    ctr, vc = pool(xf), pool(vf)
    x2 = xf.reshape(Bp, N, head_dim)
    v2 = vf.reshape(Bp, N, head_dim)
    eps = 1e-12

    def norm(t):
        return t / jnp.maximum(
            jnp.sqrt(jnp.sum(t * t, axis=-1, keepdims=True)), eps)

    sim = params["sim_beta"][0] + params["sim_alpha"][0] * jnp.einsum(
        'bmc,bnc->bmn', norm(ctr), norm(x2))
    count = jnp.sum(jnp.sum(sim, axis=2) != 0).astype(jnp.float32)
    agg = jnp.einsum('bmn,bnc->bmc', sim, v2)
    oc = vc + agg / count + params["clu_beta"][0]
    out_pts = jnp.einsum('bmn,bmc->bnc', sim, oc)
    t = out_pts.reshape(B * heads, fold_w, fold_h, w, h, head_dim)
    t = jnp.transpose(t, (0, 1, 3, 2, 4, 5)).reshape(B * heads, W0, H0, head_dim)
    t = t.reshape(B, heads, W0, H0, head_dim)
    t = jnp.transpose(t, (0, 2, 3, 1, 4)).reshape(B * W0 * H0, heads * head_dim)
    o = t @ params["Wp"] + params["bp"]
    return jnp.transpose(o.reshape(B, W0, H0, -1), (0, 3, 1, 2))


# ----------------------------------------------------------------------------
if __name__ == "__main__":
    # Small config consistent with the module: dim=4, out_dim=8, heads=2,
    # head_dim=8, proposal 2x2, fold 2x2, input (2, 4, 16, 16).
    B, dim, W0, H0 = 2, 4, 16, 16
    heads, head_dim, out_dim = 2, 8, 8
    D = heads * head_dim

    key = jax.random.PRNGKey(0)
    ks = jax.random.split(key, 7)
    params = {
        "Wf": 0.1 * jax.random.normal(ks[0], (dim, D), jnp.float32),
        "bf": 0.1 * jax.random.normal(ks[1], (D,), jnp.float32),
        "Wv": 0.1 * jax.random.normal(ks[2], (dim, D), jnp.float32),
        "bv": 0.1 * jax.random.normal(ks[3], (D,), jnp.float32),
        "Wp": 0.1 * jax.random.normal(ks[4], (D, out_dim), jnp.float32),
        "bp": 0.1 * jax.random.normal(ks[5], (out_dim,), jnp.float32),
        "sim_alpha": jnp.ones((1,), jnp.float32),   # torch.ones(1)
        "sim_beta": jnp.zeros((1,), jnp.float32),   # torch.zeros(1)
        "clu_beta": jnp.zeros((1,), jnp.float32),   # torch.zeros(1)
    }

    x = jax.random.normal(ks[6], (B, dim, W0, H0), jnp.float32)

    fwd = jax.jit(partial(cluster_forward, heads=heads, head_dim=head_dim,
                          fold_w=2, fold_h=2, prop_w=2, prop_h=2,
                          tile_r=256, slab_group=8))
    out = fwd(x, params)
    jax.block_until_ready(out)
    assert out.shape == (B, out_dim, W0, H0), out.shape
    assert bool(jnp.all(jnp.isfinite(out)))

    ref = cluster_forward_ref(x, params, heads=heads, head_dim=head_dim,
                              fold_w=2, fold_h=2, prop_w=2, prop_h=2)
    jax.block_until_ready(ref)
    max_err = float(jnp.max(jnp.abs(out - ref)))
    assert max_err < 2e-3, f"mismatch vs reference: {max_err}"

    print("KERNEL_OK")
</pallas_src>

<mosaic_0001>
module attributes {stable_mosaic.version = 11 : i64} {
  func.func @_pwconv_kernel(%arg0: i32, %arg1: memref<256x4xf32, #tpu.memory_space<vmem>>, %arg2: memref<4x32xf32, #tpu.memory_space<vmem>>, %arg3: memref<1x32xf32, #tpu.memory_space<vmem>>, %arg4: memref<256x32xf32, #tpu.memory_space<vmem>>) attributes {dimension_semantics = [#tpu.dimension_semantics<parallel>], iteration_bounds = array<i64: 2>, scalar_prefetch = 0 : i64, scratch_operands = 0 : i64, tpu.core_type = #tpu.core_type<tc>, window_params = [{transform_indices = @transform_0, window_bounds = array<i64: 256, 4>}, {pipeline_mode = #tpu.pipeline_mode<synchronous>, transform_indices = @transform_1, window_bounds = array<i64: 4, 32>}, {pipeline_mode = #tpu.pipeline_mode<synchronous>, transform_indices = @transform_2, window_bounds = array<i64: 1, 32>}, {transform_indices = @transform_3, window_bounds = array<i64: 256, 32>}]} {
    %c0 = arith.constant 0 : index
    %c0_0 = arith.constant 0 : index
    %0 = vector.load %arg1[%c0, %c0_0] : memref<256x4xf32, #tpu.memory_space<vmem>>, vector<256x4xf32>
    %c0_1 = arith.constant 0 : index
    %c0_2 = arith.constant 0 : index
    %1 = vector.load %arg2[%c0_1, %c0_2] : memref<4x32xf32, #tpu.memory_space<vmem>>, vector<4x32xf32>
    %cst = arith.constant dense<0.000000e+00> : vector<256x32xf32>
    %2 = tpu.matmul %0, %1, %cst {dimension_numbers = #tpu.dot_dimension_numbers<[1], [0], [0], [1], [0, 0, 1, 1], [], []>} : vector<256x4xf32>, vector<4x32xf32>, vector<256x32xf32> -> vector<256x32xf32>
    %c0_3 = arith.constant 0 : index
    %c0_4 = arith.constant 0 : index
    %3 = vector.load %arg3[%c0_3, %c0_4] : memref<1x32xf32, #tpu.memory_space<vmem>>, vector<1x32xf32>
    %4 = vector.broadcast %3 : vector<1x32xf32> to vector<256x32xf32>
    %5 = arith.addf %2, %4 : vector<256x32xf32>
    %c0_5 = arith.constant 0 : index
    %c0_6 = arith.constant 0 : index
    %6 = vector.load %arg4[%c0_5, %c0_6] : memref<256x32xf32, #tpu.memory_space<vmem>>, vector<256x32xf32>
    tpu.vector_store %arg4[%c0_5, %c0_6], %5 {strides = array<i32>} : memref<256x32xf32, #tpu.memory_space<vmem>>, vector<256x32xf32>,
    return
  }
  func.func @transform_0(%arg0: i32) -> (i32, i32) {
    %c0_i32 = arith.constant 0 : i32
    %c0_i32_0 = arith.constant 0 : i32
    return %arg0, %c0_i32 : i32, i32
  }
  func.func @transform_1(%arg0: i32) -> (i32, i32) {
    %c0_i32 = arith.constant 0 : i32
    %c0_i32_0 = arith.constant 0 : i32
    %c0_i32_1 = arith.constant 0 : i32
    return %c0_i32, %c0_i32_0 : i32, i32
  }
  func.func @transform_2(%arg0: i32) -> (i32, i32) {
    %c0_i32 = arith.constant 0 : i32
    %c0_i32_0 = arith.constant 0 : i32
    %c0_i32_1 = arith.constant 0 : i32
    return %c0_i32, %c0_i32_0 : i32, i32
  }
  func.func @transform_3(%arg0: i32) -> (i32, i32) {
    %c0_i32 = arith.constant 0 : i32
    %c0_i32_0 = arith.constant 0 : i32
    return %arg0, %c0_i32 : i32, i32
  }
}

module attributes {stable_mosaic.version = 11 : i64} {
  func.func @_cluster_kernel(%arg0: i32, %arg1: memref<3xf32, #tpu.memory_space<smem>>, %arg2: memref<8x4x8xf32, #tpu.memory_space<vmem>>, %arg3: memref<8x64x8xf32, #tpu.memory_space<vmem>>, %arg4: memref<8x64x8xf32, #tpu.memory_space<vmem>>, %arg5: memref<8x4x8xf32, #tpu.memory_space<vmem>>, %arg6: memref<8x64x8xf32, #tpu.memory_space<vmem>>, %arg7: memref<8x64x8xf32, #tpu.memory_space<vmem>>, %arg8: memref<8x4x1xf32, #tpu.memory_space<vmem>>) attributes {dimension_semantics = [#tpu.dimension_semantics<parallel>], iteration_bounds = array<i64: 2>, scalar_prefetch = 0 : i64, scratch_operands = 0 : i64, tpu.core_type = #tpu.core_type<tc>, window_params = [{transform_indices = @transform_0, window_bounds = array<i64: 3>}, {transform_indices = @transform_1, window_bounds = array<i64: 8, 4, 8>}, {transform_indices = @transform_2, window_bounds = array<i64: 8, 64, 8>}, {transform_indices = @transform_3, window_bounds = array<i64: 8, 64, 8>}, {transform_indices = @transform_4, window_bounds = array<i64: 8, 4, 8>}, {transform_indices = @transform_5, window_bounds = array<i64: 8, 64, 8>}, {transform_indices = @transform_6, window_bounds = array<i64: 8, 64, 8>}, {transform_indices = @transform_7, window_bounds = array<i64: 8, 4, 1>}]} {
    %c0 = arith.constant 0 : index
    %0 = memref.load %arg1[%c0] : memref<3xf32, #tpu.memory_space<smem>>
    %c1 = arith.constant 1 : index
    %1 = memref.load %arg1[%c1] : memref<3xf32, #tpu.memory_space<smem>>
    %c2 = arith.constant 2 : index
    %2 = memref.load %arg1[%c2] : memref<3xf32, #tpu.memory_space<smem>>
    %c0_0 = arith.constant 0 : index
    %c0_1 = arith.constant 0 : index
    %c0_2 = arith.constant 0 : index
    %3 = vector.load %arg2[%c0_0, %c0_1, %c0_2] : memref<8x4x8xf32, #tpu.memory_space<vmem>>, vector<8x4x8xf32>
    %c0_3 = arith.constant 0 : index
    %c0_4 = arith.constant 0 : index
    %c0_5 = arith.constant 0 : index
    %4 = vector.load %arg3[%c0_3, %c0_4, %c0_5] : memref<8x64x8xf32, #tpu.memory_space<vmem>>, vector<8x64x8xf32>
    %c0_6 = arith.constant 0 : index
    %c0_7 = arith.constant 0 : index
    %c0_8 = arith.constant 0 : index
    %5 = vector.load %arg4[%c0_6, %c0_7, %c0_8] : memref<8x64x8xf32, #tpu.memory_space<vmem>>, vector<8x64x8xf32>
    %c0_9 = arith.constant 0 : index
    %c0_10 = arith.constant 0 : index
    %c0_11 = arith.constant 0 : index
    %6 = vector.load %arg5[%c0_9, %c0_10, %c0_11] : memref<8x4x8xf32, #tpu.memory_space<vmem>>, vector<8x4x8xf32>
    %7 = arith.mulf %3, %3 : vector<8x4x8xf32>
    %cst = arith.constant dense<0.000000e+00> : vector<8x4xf32>
    %8 = vector.multi_reduction <add>, %7, %cst [2] : vector<8x4x8xf32> to vector<8x4xf32>
    %9 = vector.shape_cast %8 : vector<8x4xf32> to vector<8x4x1xf32>
    %cst_12 = arith.constant 1.000000e-24 : f32
    %10 = vector.broadcast %cst_12 : f32 to vector<8x4x1xf32>
    %11 = arith.maximumf %9, %10 : vector<8x4x1xf32>
    %12 = math.rsqrt %11 : vector<8x4x1xf32>
    %13 = vector.broadcast %12 : vector<8x4x1xf32> to vector<8x4x8xf32>
    %14 = arith.mulf %3, %13 : vector<8x4x8xf32>
    %15 = arith.mulf %4, %4 : vector<8x64x8xf32>
    %cst_13 = arith.constant dense<0.000000e+00> : vector<8x64xf32>
    %16 = vector.multi_reduction <add>, %15, %cst_13 [2] : vector<8x64x8xf32> to vector<8x64xf32>
    %17 = vector.shape_cast %16 : vector<8x64xf32> to vector<8x64x1xf32>
    %cst_14 = arith.constant 1.000000e-24 : f32
    %18 = vector.broadcast %cst_14 : f32 to vector<8x64x1xf32>
    %19 = arith.maximumf %17, %18 : vector<8x64x1xf32>
    %20 = math.rsqrt %19 : vector<8x64x1xf32>
    %21 = vector.broadcast %20 : vector<8x64x1xf32> to vector<8x64x8xf32>
    %22 = arith.mulf %4, %21 : vector<8x64x8xf32>
    "tpu.trace_start"() <{level = 10 : i32, message = "gmc,gnc->gmn"}> : () -> ()
    %cst_15 = arith.constant dense<0.000000e+00> : vector<8x4x64xf32>
    %23 = tpu.matmul %14, %22, %cst_15 {dimension_numbers = #tpu.dot_dimension_numbers<[2], [2], [1], [1], [0, 0, 0, 1, 1, 1], [0], [0]>} : vector<8x4x8xf32>, vector<8x64x8xf32>, vector<8x4x64xf32> -> vector<8x4x64xf32>
    "tpu.trace_stop"() : () -> ()
    %24 = vector.broadcast %0 : f32 to vector<8x4x64xf32>
    %25 = arith.mulf %24, %23 : vector<8x4x64xf32>
    %26 = vector.broadcast %1 : f32 to vector<8x4x64xf32>
    %27 = arith.addf %26, %25 : vector<8x4x64xf32>
    %cst_16 = arith.constant dense<0.000000e+00> : vector<8x4xf32>
    %28 = vector.multi_reduction <add>, %27, %cst_16 [2] : vector<8x4x64xf32> to vector<8x4xf32>
    %29 = vector.shape_cast %28 : vector<8x4xf32> to vector<8x4x1xf32>
    %c0_17 = arith.constant 0 : index
    %c0_18 = arith.constant 0 : index
    %c0_19 = arith.constant 0 : index
    %30 = vector.load %arg8[%c0_17, %c0_18, %c0_19] : memref<8x4x1xf32, #tpu.memory_space<vmem>>, vector<8x4x1xf32>
    tpu.vector_store %arg8[%c0_17, %c0_18, %c0_19], %29 {strides = array<i32>} : memref<8x4x1xf32, #tpu.memory_space<vmem>>, vector<8x4x1xf32>,
    "tpu.trace_start"() <{level = 10 : i32, message = "gmn,gnc->gmc"}> : () -> ()
    %cst_20 = arith.constant dense<0.000000e+00> : vector<8x4x8xf32>
    %31 = tpu.matmul %27, %5, %cst_20 {dimension_numbers = #tpu.dot_dimension_numbers<[2], [1], [1], [2], [0, 0, 0, 1, 1, 2], [0], [0]>} : vector<8x4x64xf32>, vector<8x64x8xf32>, vector<8x4x8xf32> -> vector<8x4x8xf32>
    "tpu.trace_stop"() : () -> ()
    %32 = vector.broadcast %2 : f32 to vector<8x4x8xf32>
    %33 = arith.addf %6, %32 : vector<8x4x8xf32>
    "tpu.trace_start"() <{level = 10 : i32, message = "gmn,gmc->gnc"}> : () -> ()
    %cst_21 = arith.constant dense<0.000000e+00> : vector<8x64x8xf32>
    %34 = tpu.matmul %27, %33, %cst_21 {dimension_numbers = #tpu.dot_dimension_numbers<[1], [1], [2], [2], [0, 0, 0, 2, 1, 2], [0], [0]>} : vector<8x4x64xf32>, vector<8x4x8xf32>, vector<8x64x8xf32> -> vector<8x64x8xf32>
    "tpu.trace_stop"() : () -> ()
    %c0_22 = arith.constant 0 : index
    %c0_23 = arith.constant 0 : index
    %c0_24 = arith.constant 0 : index
    %35 = vector.load %arg6[%c0_22, %c0_23, %c0_24] : memref<8x64x8xf32, #tpu.memory_space<vmem>>, vector<8x64x8xf32>
    tpu.vector_store %arg6[%c0_22, %c0_23, %c0_24], %34 {strides = array<i32>} : memref<8x64x8xf32, #tpu.memory_space<vmem>>, vector<8x64x8xf32>,
    "tpu.trace_start"() <{level = 10 : i32, message = "gmn,gmc->gnc"}> : () -> ()
    %cst_25 = arith.constant dense<0.000000e+00> : vector<8x64x8xf32>
    %36 = tpu.matmul %27, %31, %cst_25 {dimension_numbers = #tpu.dot_dimension_numbers<[1], [1], [2], [2], [0, 0, 0, 2, 1, 2], [0], [0]>} : vector<8x4x64xf32>, vector<8x4x8xf32>, vector<8x64x8xf32> -> vector<8x64x8xf32>
    "tpu.trace_stop"() : () -> ()
    %c0_26 = arith.constant 0 : index
    %c0_27 = arith.constant 0 : index
    %c0_28 = arith.constant 0 : index
    %37 = vector.load %arg7[%c0_26, %c0_27, %c0_28] : memref<8x64x8xf32, #tpu.memory_space<vmem>>, vector<8x64x8xf32>
    tpu.vector_store %arg7[%c0_26, %c0_27, %c0_28], %36 {strides = array<i32>} : memref<8x64x8xf32, #tpu.memory_space<vmem>>, vector<8x64x8xf32>,
    return
  }
  func.func @transform_0(%arg0: i32) -> i32 {
    %c0_i32 = arith.constant 0 : i32
    %c0_i32_0 = arith.constant 0 : i32
    return %c0_i32 : i32
  }
  func.func @transform_1(%arg0: i32) -> (i32, i32, i32) {
    %c0_i32 = arith.constant 0 : i32
    %c0_i32_0 = arith.constant 0 : i32
    %c0_i32_1 = arith.constant 0 : i32
    return %arg0, %c0_i32, %c0_i32_0 : i32, i32, i32
  }
  func.func @transform_2(%arg0: i32) -> (i32, i32, i32) {
    %c0_i32 = arith.constant 0 : i32
    %c0_i32_0 = arith.constant 0 : i32
    %c0_i32_1 = arith.constant 0 : i32
    return %arg0, %c0_i32, %c0_i32_0 : i32, i32, i32
  }
  func.func @transform_3(%arg0: i32) -> (i32, i32, i32) {
    %c0_i32 = arith.constant 0 : i32
    %c0_i32_0 = arith.constant 0 : i32
    %c0_i32_1 = arith.constant 0 : i32
    return %arg0, %c0_i32, %c0_i32_0 : i32, i32, i32
  }
  func.func @transform_4(%arg0: i32) -> (i32, i32, i32) {
    %c0_i32 = arith.constant 0 : i32
    %c0_i32_0 = arith.constant 0 : i32
    %c0_i32_1 = arith.constant 0 : i32
    return %arg0, %c0_i32, %c0_i32_0 : i32, i32, i32
  }
  func.func @transform_5(%arg0: i32) -> (i32, i32, i32) {
    %c0_i32 = arith.constant 0 : i32
    %c0_i32_0 = arith.constant 0 : i32
    %c0_i32_1 = arith.constant 0 : i32
    return %arg0, %c0_i32, %c0_i32_0 : i32, i32, i32
  }
  func.func @transform_6(%arg0: i32) -> (i32, i32, i32) {
    %c0_i32 = arith.constant 0 : i32
    %c0_i32_0 = arith.constant 0 : i32
    %c0_i32_1 = arith.constant 0 : i32
    return %arg0, %c0_i32, %c0_i32_0 : i32, i32, i32
  }
  func.func @transform_7(%arg0: i32) -> (i32, i32, i32) {
    %c0_i32 = arith.constant 0 : i32
    %c0_i32_0 = arith.constant 0 : i32
    %c0_i32_1 = arith.constant 0 : i32
    return %arg0, %c0_i32, %c0_i32_0 : i32, i32, i32
  }
}

module attributes {stable_mosaic.version = 11 : i64} {
  func.func @_pwconv_kernel(%arg0: i32, %arg1: memref<256x16xf32, #tpu.memory_space<vmem>>, %arg2: memref<16x8xf32, #tpu.memory_space<vmem>>, %arg3: memref<1x8xf32, #tpu.memory_space<vmem>>, %arg4: memref<256x8xf32, #tpu.memory_space<vmem>>) attributes {dimension_semantics = [#tpu.dimension_semantics<parallel>], iteration_bounds = array<i64: 2>, scalar_prefetch = 0 : i64, scratch_operands = 0 : i64, tpu.core_type = #tpu.core_type<tc>, window_params = [{transform_indices = @transform_0, window_bounds = array<i64: 256, 16>}, {pipeline_mode = #tpu.pipeline_mode<synchronous>, transform_indices = @transform_1, window_bounds = array<i64: 16, 8>}, {pipeline_mode = #tpu.pipeline_mode<synchronous>, transform_indices = @transform_2, window_bounds = array<i64: 1, 8>}, {transform_indices = @transform_3, window_bounds = array<i64: 256, 8>}]} {
    %c0 = arith.constant 0 : index
    %c0_0 = arith.constant 0 : index
    %0 = vector.load %arg1[%c0, %c0_0] : memref<256x16xf32, #tpu.memory_space<vmem>>, vector<256x16xf32>
    %c0_1 = arith.constant 0 : index
    %c0_2 = arith.constant 0 : index
    %1 = vector.load %arg2[%c0_1, %c0_2] : memref<16x8xf32, #tpu.memory_space<vmem>>, vector<16x8xf32>
    %cst = arith.constant dense<0.000000e+00> : vector<256x8xf32>
    %2 = tpu.matmul %0, %1, %cst {dimension_numbers = #tpu.dot_dimension_numbers<[1], [0], [0], [1], [0, 0, 1, 1], [], []>} : vector<256x16xf32>, vector<16x8xf32>, vector<256x8xf32> -> vector<256x8xf32>
    %c0_3 = arith.constant 0 : index
    %c0_4 = arith.constant 0 : index
    %3 = vector.load %arg3[%c0_3, %c0_4] : memref<1x8xf32, #tpu.memory_space<vmem>>, vector<1x8xf32>
    %4 = vector.broadcast %3 : vector<1x8xf32> to vector<256x8xf32>
    %5 = arith.addf %2, %4 : vector<256x8xf32>
    %c0_5 = arith.constant 0 : index
    %c0_6 = arith.constant 0 : index
    %6 = vector.load %arg4[%c0_5, %c0_6] : memref<256x8xf32, #tpu.memory_space<vmem>>, vector<256x8xf32>
    tpu.vector_store %arg4[%c0_5, %c0_6], %5 {strides = array<i32>} : memref<256x8xf32, #tpu.memory_space<vmem>>, vector<256x8xf32>,
    return
  }
  func.func @transform_0(%arg0: i32) -> (i32, i32) {
    %c0_i32 = arith.constant 0 : i32
    %c0_i32_0 = arith.constant 0 : i32
    return %arg0, %c0_i32 : i32, i32
  }
  func.func @transform_1(%arg0: i32) -> (i32, i32) {
    %c0_i32 = arith.constant 0 : i32
    %c0_i32_0 = arith.constant 0 : i32
    %c0_i32_1 = arith.constant 0 : i32
    return %c0_i32, %c0_i32_0 : i32, i32
  }
  func.func @transform_2(%arg0: i32) -> (i32, i32) {
    %c0_i32 = arith.constant 0 : i32
    %c0_i32_0 = arith.constant 0 : i32
    %c0_i32_1 = arith.constant 0 : i32
    return %c0_i32, %c0_i32_0 : i32, i32
  }
  func.func @transform_3(%arg0: i32) -> (i32, i32) {
    %c0_i32 = arith.constant 0 : i32
    %c0_i32_0 = arith.constant 0 : i32
    return %arg0, %c0_i32 : i32, i32
  }
}

</mosaic_0001>

<llo_original>
// kernel: cluster_forward.3
$region0: #{cluster_forward.3}
  #allocation0 [shape = 'u32[]', space=smem, size = 0x4, offset = 0x4, fixed_abs, tag = 'smem constant byte address 0x4 - core index']
  #allocation1 [shape = 'u32[144,128]{1,0:T(1,128)}', space=vmem, size = 0x12000, scoped, tag = 'internal scratch']
  %s0 = inlined_call_operand.vmem [shape: f32[512,4], index: 0, kind: input, shape index: {}]
  %s1 = inlined_call_operand.vmem [shape: f32[4,32], index: 1, kind: input, shape index: {}]
  %s2 = inlined_call_operand.vmem [shape: f32[1,32], index: 2, kind: input, shape index: {}]
  %s3 = inlined_call_operand.vmem [shape: f32[512,32], index: 3, kind: output, shape index: {}]
  %s4 = sld [smem:[#allocation0]]
  $region45: #{cluster_forward.3} parent=0
    _
  %s6 = ssub.s32 1, %s4
  %s7 = scalar_select 0, %s6, %s4
  loop: start=0, step=1, limit=4
  $region2: #{cluster_forward.3} parent=0 // loop_pre_header
    _
  $region3: #{cluster_forward.3} parent=0 // loop_header
    %s9 = sphi 0, %s13
    %p10 = scmp.ge.s32.totalorder %s9, 4
    %s19 = sphi 0, %s21
    %s22 = sphi 0, %s19
    %s23 = sphi 0, %s22
    %s39 = sphi 0, %s23
    %s43 = sphi 0, %s43
    %s45 = sphi 0, %s43
    %s46 = sphi 0, %s45
    %s60 = sphi 0, %s46
    %s64 = sphi 0, %s64
    %s66 = sphi 0, %s64
    %s67 = sphi 0, %s66
    %s81 = sphi 0, %s67
    %s87 = sphi 0, %s89
    %s90 = sphi 0, %s87
    %s91 = sphi 0, %s90
    %s107 = sphi 0, %s91
  $region4: #{cluster_forward.3} parent=0 // loop_header_branch
    %12 = sbr.rel (%p10) target = $region8
  $region5: #{cluster_forward.3} parent=0 // loop_body
    %s14 = ssub.s32 %s9, 1
    %s15 = ssub.s32 %s9, 2
    %s16 = sadd.s32 %s9, 1
    %s17 = ssub.s32 %s9, %s16
    %p18 = scmp.eq.s32.totalorder %s17, 0
    %s20 = sadd.s32 %s19, 1
    %s21 = scalar_select %p18, %s19, %s20
    %p24 = pneg %p18
    %p25 = scmp.eq.s32.totalorder %s9, 1
    %p26 = por %p24, %p25
    %p27 = scmp.ne.s32.totalorder %s19, %s22
    %p28 = scmp.eq.s32.totalorder %s9, 0
    %p29 = por %p27, %p28
    %p30 = scmp.ne.s32.totalorder %s19, %s22
    %p31 = scmp.eq.s32.totalorder %s14, 1
    %p32 = por %p30, %p31
    %p33 = scmp.ne.s32.totalorder %s22, %s23
    %p34 = scmp.eq.s32.totalorder %s14, 0
    %p35 = por %p33, %p34
    %p36 = scmp.ne.s32.totalorder %s22, %s23
    %p37 = scmp.eq.s32.totalorder %s15, 1
    %p38 = por %p36, %p37
    %p40 = scmp.ne.s32.totalorder %s23, %s39
    %p41 = scmp.eq.s32.totalorder %s15, 0
    %p42 = por %p40, %p41
    %s44 = sadd.s32 %s43, 1
    %p47 = scmp.eq.s32.totalorder %s9, 1
    %p48 = scmp.ne.s32.totalorder %s43, %s45
    %p49 = scmp.eq.s32.totalorder %s9, 0
    %p50 = por %p48, %p49
    %p51 = scmp.ne.s32.totalorder %s43, %s45
    %p52 = scmp.eq.s32.totalorder %s14, 1
    %p53 = por %p51, %p52
    %p54 = scmp.ne.s32.totalorder %s45, %s46
    %p55 = scmp.eq.s32.totalorder %s14, 0
    %p56 = por %p54, %p55
    %p57 = scmp.ne.s32.totalorder %s45, %s46
    %p58 = scmp.eq.s32.totalorder %s15, 1
    %p59 = por %p57, %p58
    %p61 = scmp.ne.s32.totalorder %s46, %s60
    %p62 = scmp.eq.s32.totalorder %s15, 0
    %p63 = por %p61, %p62
    %s65 = sadd.s32 %s64, 1
    %p68 = scmp.eq.s32.totalorder %s9, 1
    %p69 = scmp.ne.s32.totalorder %s64, %s66
    %p70 = scmp.eq.s32.totalorder %s9, 0
    %p71 = por %p69, %p70
    %p72 = scmp.ne.s32.totalorder %s64, %s66
    %p73 = scmp.eq.s32.totalorder %s14, 1
    %p74 = por %p72, %p73
    %p75 = scmp.ne.s32.totalorder %s66, %s67
    %p76 = scmp.eq.s32.totalorder %s14, 0
    %p77 = por %p75, %p76
    %p78 = scmp.ne.s32.totalorder %s66, %s67
    %p79 = scmp.eq.s32.totalorder %s15, 1
    %p80 = por %p78, %p79
    %p82 = scmp.ne.s32.totalorder %s67, %s81
    %p83 = scmp.eq.s32.totalorder %s15, 0
    %p84 = por %p82, %p83
    %s85 = ssub.s32 %s9, %s16
    %p86 = scmp.eq.s32.totalorder %s85, 0
    %s88 = sadd.s32 %s87, 1
    %s89 = scalar_select %p86, %s87, %s88
    %p92 = pneg %p86
    %p93 = scmp.eq.s32.totalorder %s9, 1
    %p94 = por %p92, %p93
    %p95 = scmp.ne.s32.totalorder %s87, %s90
    %p96 = scmp.eq.s32.totalorder %s9, 0
    %p97 = por %p95, %p96
    %p98 = scmp.ne.s32.totalorder %s87, %s90
    %p99 = scmp.eq.s32.totalorder %s14, 1
    %p100 = por %p98, %p99
    %p101 = scmp.ne.s32.totalorder %s90, %s91
    %p102 = scmp.eq.s32.totalorder %s14, 0
    %p103 = por %p101, %p102
    %p104 = scmp.ne.s32.totalorder %s90, %s91
    %p105 = scmp.eq.s32.totalorder %s15, 1
    %p106 = por %p104, %p105
    %p108 = scmp.ne.s32.totalorder %s91, %s107
    %p109 = scmp.eq.s32.totalorder %s15, 0
    %p110 = por %p108, %p109
    %p111 = scmp.le.s32.totalorder 1, %s9
    %p112 = scmp.lt.s32.totalorder %s9, 3
    %p113 = pnand %p111, %p112
    %p114 = pneg %p113
    // Predicated region
    $region9: #{cluster_forward.3} parent=5 // pred_check
      _
    $region10: #{cluster_forward.3} parent=5 // pred_check_branch
      %116 = sbr.rel (%p113) target = $region12
    $region11: #{cluster_forward.3} parent=5 // pred_region
      %s117 = ssub.s32 %s9, 1
      // Predicated region
      $region13: #{cluster_forward.3} parent=11 // pred_check
        %p118 = pneg %p56
      $region14: #{cluster_forward.3} parent=11 // pred_check_branch
        %120 = sbr.rel (%p118) target = $region16
      $region15: #{cluster_forward.3} parent=11 // pred_region
        _
      $region16: #{cluster_forward.3} parent=11 // pred_fallthru
        _
      // Predicated region
      $region17: #{cluster_forward.3} parent=11 // pred_check
        %p121 = pneg %p77
      $region18: #{cluster_forward.3} parent=11 // pred_check_branch
        %123 = sbr.rel (%p121) target = $region20
      $region19: #{cluster_forward.3} parent=11 // pred_region
        _
      $region20: #{cluster_forward.3} parent=11 // pred_fallthru
        _
    $region12: #{cluster_forward.3} parent=5 // pred_fallthru
      _
    %p124 = scmp.lt.s32.totalorder %s9, 2
    // Predicated region
    $region21: #{cluster_forward.3} parent=5 // pred_check
      %p125 = pneg %p124
    $region22: #{cluster_forward.3} parent=5 // pred_check_branch
      %127 = sbr.rel (%p125) target = $region24
    $region23: #{cluster_forward.3} parent=5 // pred_region
      // Predicated region
      $region25: #{cluster_forward.3} parent=23 // pred_check
        %p128 = pneg %p29
      $region26: #{cluster_forward.3} parent=23 // pred_check_branch
        %130 = sbr.rel (%p128) target = $region28
      $region27: #{cluster_forward.3} parent=23 // pred_region
        %s131 = smul.u32 32, %s9
        %p132 = scmp.lt.s32.totalorder %s131, 63
        %s133 = scalar_select %p132, %s131, 63
        %s134 = smul.addr %s133, 8
        %s135 = scalar_lea.vmem %s0, %s134
        %s136 = smul.u32 32, %s9
      $region28: #{cluster_forward.3} parent=23 // pred_fallthru
        _
    $region24: #{cluster_forward.3} parent=5 // pred_fallthru
      _
    %p137 = scmp.le.s32.totalorder 1, %s9
    %p138 = scmp.lt.s32.totalorder %s9, 3
    %p139 = pnand %p137, %p138
    %p140 = pneg %p139
    // Predicated region
    $region29: #{cluster_forward.3} parent=5 // pred_check
      _
    $region30: #{cluster_forward.3} parent=5 // pred_check_branch
      %142 = sbr.rel (%p139) target = $region32
    $region31: #{cluster_forward.3} parent=5 // pred_region
      %s143 = ssub.s32 %s9, 1
      %s144 = smul.u32 32, %s14
      %p145 = scmp.lt.s32.totalorder %s144, 63
      %s146 = scalar_select %p145, %s144, 63
      %s147 = smul.addr %s146, 8
      %s148 = scalar_lea.vmem %s0, %s147
      %p149 = pneg %p35
      %p150 = pneg %p32
      %p151 = pneg %p56
      %p152 = pneg %p53
      %p153 = pneg %p77
      %p154 = pneg %p74
      %p155 = pneg %p103
      %p156 = pneg %p100
      %s157 = smul.u32 32, %s14
      %p158 = scmp.lt.s32.totalorder %s157, 63
      %s159 = scalar_select %p158, %s157, 63
      %s160 = smul.addr %s159, 8
      %s161 = scalar_lea.vmem %s3, %s160
      %s162 = smul.u32 32, %s14
      %p163 = scmp.lt.s32.totalorder %s162, 63
      %s164 = scalar_select %p163, %s162, 63
      %s165 = smul.addr %s164, 8
      %s166 = scalar_lea.vmem %s0, %s165
      %s167 = smul.u32 32, %s14
      %s168 = smul.u32 32, %s14
      %p169 = scmp.lt.s32.totalorder %s168, 63
      %s170 = scalar_select %p169, %s168, 63
      %s171 = smul.addr %s170, 8
      %s172 = scalar_lea.vmem %s3, %s171
      %s173 = smul.u32 32, %s14
      %v174 = vld [vmem:[%s166] sm:$0xff]
      %v175 = vld [vmem:[%s166 + $0x8] sm:$0xff]
      %v176 = vld [vmem:[%s166 + $0x10] sm:$0xff]
      %v177 = vld [vmem:[%s166 + $0x18] sm:$0xff]
      %v178 = vld [vmem:[%s166 + $0x20] sm:$0xff]
      %v179 = vld [vmem:[%s166 + $0x28] sm:$0xff]
      %v180 = vld [vmem:[%s166 + $0x30] sm:$0xff]
      %v181 = vld [vmem:[%s166 + $0x38] sm:$0xff]
      %v182 = vld [vmem:[%s166 + $0x40] sm:$0xff]
      %v183 = vld [vmem:[%s166 + $0x48] sm:$0xff]
      %v184 = vld [vmem:[%s166 + $0x50] sm:$0xff]
      %v185 = vld [vmem:[%s166 + $0x58] sm:$0xff]
      %v186 = vld [vmem:[%s166 + $0x60] sm:$0xff]
      %v187 = vld [vmem:[%s166 + $0x68] sm:$0xff]
      %v188 = vld [vmem:[%s166 + $0x70] sm:$0xff]
      %v189 = vld [vmem:[%s166 + $0x78] sm:$0xff]
      %v190 = vld [vmem:[%s166 + $0x80] sm:$0xff]
      %v191 = vld [vmem:[%s166 + $0x88] sm:$0xff]
      %v192 = vld [vmem:[%s166 + $0x90] sm:$0xff]
      %v193 = vld [vmem:[%s166 + $0x98] sm:$0xff]
      %v194 = vld [vmem:[%s166 + $0xa0] sm:$0xff]
      %v195 = vld [vmem:[%s166 + $0xa8] sm:$0xff]
      %v196 = vld [vmem:[%s166 + $0xb0] sm:$0xff]
      %v197 = vld [vmem:[%s166 + $0xb8] sm:$0xff]
      %v198 = vld [vmem:[%s166 + $0xc0] sm:$0xff]
      %v199 = vld [vmem:[%s166 + $0xc8] sm:$0xff]
      %v200 = vld [vmem:[%s166 + $0xd0] sm:$0xff]
      %v201 = vld [vmem:[%s166 + $0xd8] sm:$0xff]
      %v202 = vld [vmem:[%s166 + $0xe0] sm:$0xff]
      %v203 = vld [vmem:[%s166 + $0xe8] sm:$0xff]
      %v204 = vld [vmem:[%s166 + $0xf0] sm:$0xff]
      %v205 = vld [vmem:[%s166 + $0xf8] sm:$0xff]
      %v206 = vld [vmem:[%s1] sm:$0xf]
      %v207 = vld [vmem:[%s2] sm:$0x1]
      %v209 = vlaneseq
      %v210 = vshrl.u32 %v209, 7
      %v211 = vsub.s32 0, %v210
      %v212 = vrot.slane %v207, %v211
      %vm214 = vcmask 31744
      %v216 = vsel %vm214, %v174, 0
      %v219 = vsel %vm214, %v175, 0
      %v222 = vsel %vm214, %v176, 0
      %v225 = vsel %vm214, %v177, 0
      %v228 = vsel %vm214, %v178, 0
      %v231 = vsel %vm214, %v179, 0
      %v234 = vsel %vm214, %v180, 0
      %v237 = vsel %vm214, %v181, 0
      %v240 = vsel %vm214, %v182, 0
      %v243 = vsel %vm214, %v183, 0
      %v246 = vsel %vm214, %v184, 0
      %v249 = vsel %vm214, %v185, 0
      %v252 = vsel %vm214, %v186, 0
      %v255 = vsel %vm214, %v187, 0
      %v258 = vsel %vm214, %v188, 0
      %v261 = vsel %vm214, %v189, 0
      %v264 = vsel %vm214, %v190, 0
      %v267 = vsel %vm214, %v191, 0
      %v270 = vsel %vm214, %v192, 0
      %v273 = vsel %vm214, %v193, 0
      %v276 = vsel %vm214, %v194, 0
      %v279 = vsel %vm214, %v195, 0
      %v282 = vsel %vm214, %v196, 0
      %v285 = vsel %vm214, %v197, 0
      %v288 = vsel %vm214, %v198, 0
      %v291 = vsel %vm214, %v199, 0
      %v294 = vsel %vm214, %v200, 0
      %v297 = vsel %vm214, %v201, 0
      %v300 = vsel %vm214, %v202, 0
      %v303 = vsel %vm214, %v203, 0
      %v306 = vsel %vm214, %v204, 0
      %v309 = vsel %vm214, %v205, 0
      %vm311 = vcmask 1043456
      %v313 = vsel %vm311, %v206, 0
      %315 = vmatprep.subr.mxu0 0.0
      %316 = vmatpush1.msra.mxu0 %v313
      %317 = vmatprep.subr.mxu0 0.0
      %318 = vmatpush1.msra.mxu0 0.0
      %319 = vmatprep.subr.mxu0 0.0
      %320 = vmatpush1.msra.mxu0 0.0
      %321 = vmatprep.subr.mxu0 0.0
      %322 = vmatpush1.msra.mxu0 0.0
      %323 = vmatprep.subr.mxu0 0.0
      %324 = vmatpush1.msra.mxu0 0.0
      %325 = vmatprep.subr.mxu0 0.0
      %326 = vmatpush1.msra.mxu0 0.0
      %327 = vmatprep.subr.mxu0 0.0
      %328 = vmatpush1.msra.mxu0 0.0
      %329 = vmatprep.subr.mxu0 0.0
      %330 = vmatpush1.msra.mxu0 0.0
      %331 = vmatprep.subr.mxu0 0.0
      %332 = vmatpush1.msra.mxu0 0.0
      %333 = vmatprep.subr.mxu0 0.0
      %334 = vmatpush1.msra.mxu0 0.0
      %335 = vmatprep.subr.mxu0 0.0
      %336 = vmatpush1.msra.mxu0 0.0
      %337 = vmatprep.subr.mxu0 0.0
      %338 = vmatpush1.msra.mxu0 0.0
      %339 = vmatprep.subr.mxu0 0.0
      %340 = vmatpush1.msra.mxu0 0.0
      %341 = vmatprep.subr.mxu0 0.0
      %342 = vmatpush1.msra.mxu0 0.0
      %343 = vmatprep.subr.mxu0 0.0
      %344 = vmatpush1.msra.mxu0 0.0
      %345 = vmatprep.subr.mxu0 0.0
      %346 = vmatpush1.msra.mxu0 0.0
      %347 = vmatprep.subr.mxu0 0.0
      %348 = vmatpush1.msra.mxu0 0.0
      %349 = vmatprep.subr.mxu0 0.0
      %350 = vmatpush1.msra.mxu0 0.0
      %351 = vmatprep.subr.mxu0 0.0
      %352 = vmatpush1.msra.mxu0 0.0
      %353 = vmatprep.subr.mxu0 0.0
      %354 = vmatpush1.msra.mxu0 0.0
      %355 = vmatprep.subr.mxu0 0.0
      %356 = vmatpush1.msra.mxu0 0.0
      %357 = vmatprep.subr.mxu0 0.0
      %358 = vmatpush1.msra.mxu0 0.0
      %359 = vmatprep.subr.mxu0 0.0
      %360 = vmatpush1.msra.mxu0 0.0
      %361 = vmatprep.subr.mxu0 0.0
      %362 = vmatpush1.msra.mxu0 0.0
      %363 = vmatprep.subr.mxu0 0.0
      %364 = vmatpush1.msra.mxu0 0.0
      %365 = vmatprep.subr.mxu0 0.0
      %366 = vmatpush1.msra.mxu0 0.0
      %367 = vmatprep.subr.mxu0 0.0
      %368 = vmatpush1.msra.mxu0 0.0
      %369 = vmatprep.subr.mxu0 0.0
      %370 = vmatpush1.msra.mxu0 0.0
      %371 = vmatprep.subr.mxu0 0.0
      %372 = vmatpush1.msra.mxu0 0.0
      %373 = vmatprep.subr.mxu0 0.0
      %374 = vmatpush1.msra.mxu0 0.0
      %375 = vmatprep.subr.mxu0 0.0
      %376 = vmatpush1.msra.mxu0 0.0
      %377 = vmatprep.subr.mxu0 0.0
      %378 = vmatpush1.msra.mxu0 0.0
      %379 = vmatprep.mubr.f32.mxu0 0.0
      %380 = vmatmul.mubr.f32.gmra.mrb[0].mxu0 %v216
      %v381 = vpop.f32.mrb[0].mxu0
      %v382 = vadd.f32 %v212, %v381
      %v383 = vpop.f32.mrb[0].mxu0
      %384 = vmatprep.mubr.f32.mxu0 0.0
      %385 = vmatmul.mubr.f32.gmra.mrb[0].mxu0 %v219
      %v386 = vpop.f32.mrb[0].mxu0
      %v387 = vadd.f32 %v212, %v386
      %v388 = vpop.f32.mrb[0].mxu0
      %389 = vmatprep.mubr.f32.mxu0 0.0
      %390 = vmatmul.mubr.f32.gmra.mrb[0].mxu0 %v222
      %v391 = vpop.f32.mrb[0].mxu0
      %v392 = vadd.f32 %v212, %v391
      %v393 = vpop.f32.mrb[0].mxu0
      %394 = vmatprep.mubr.f32.mxu0 0.0
      %395 = vmatmul.mubr.f32.gmra.mrb[0].mxu0 %v225
      %v396 = vpop.f32.mrb[0].mxu0
      %v397 = vadd.f32 %v212, %v396
      %v398 = vpop.f32.mrb[0].mxu0
      %399 = vmatprep.mubr.f32.mxu0 0.0
      %400 = vmatmul.mubr.f32.gmra.mrb[0].mxu0 %v228
      %v401 = vpop.f32.mrb[0].mxu0
      %v402 = vadd.f32 %v212, %v401
      %v403 = vpop.f32.mrb[0].mxu0
      %404 = vmatprep.mubr.f32.mxu0 0.0
      %405 = vmatmul.mubr.f32.gmra.mrb[0].mxu0 %v231
      %v406 = vpop.f32.mrb[0].mxu0
      %v407 = vadd.f32 %v212, %v406
      %v408 = vpop.f32.mrb[0].mxu0
      %409 = vmatprep.mubr.f32.mxu0 0.0
      %410 = vmatmul.mubr.f32.gmra.mrb[0].mxu0 %v234
      %v411 = vpop.f32.mrb[0].mxu0
      %v412 = vadd.f32 %v212, %v411
      %v413 = vpop.f32.mrb[0].mxu0
      %414 = vmatprep.mubr.f32.mxu0 0.0
      %415 = vmatmul.mubr.f32.gmra.mrb[0].mxu0 %v237
      %v416 = vpop.f32.mrb[0].mxu0
      %v417 = vadd.f32 %v212, %v416
      %v418 = vpop.f32.mrb[0].mxu0
      %419 = vmatprep.mubr.f32.mxu0 0.0
      %420 = vmatmul.mubr.f32.gmra.mrb[0].mxu0 %v240
      %v421 = vpop.f32.mrb[0].mxu0
      %v422 = vadd.f32 %v212, %v421
      %v423 = vpop.f32.mrb[0].mxu0
      %424 = vmatprep.mubr.f32.mxu0 0.0
      %425 = vmatmul.mubr.f32.gmra.mrb[0].mxu0 %v243
      %v426 = vpop.f32.mrb[0].mxu0
      %v427 = vadd.f32 %v212, %v426
      %v428 = vpop.f32.mrb[0].mxu0
      %429 = vmatprep.mubr.f32.mxu0 0.0
      %430 = vmatmul.mubr.f32.gmra.mrb[0].mxu0 %v246
      %v431 = vpop.f32.mrb[0].mxu0
      %v432 = vadd.f32 %v212, %v431
      %v433 = vpop.f32.mrb[0].mxu0
      %434 = vmatprep.mubr.f32.mxu0 0.0
      %435 = vmatmul.mubr.f32.gmra.mrb[0].mxu0 %v249
      %v436 = vpop.f32.mrb[0].mxu0
      %v437 = vadd.f32 %v212, %v436
      %v438 = vpop.f32.mrb[0].mxu0
      %439 = vmatprep.mubr.f32.mxu0 0.0
      %440 = vmatmul.mubr.f32.gmra.mrb[0].mxu0 %v252
      %v441 = vpop.f32.mrb[0].mxu0
      %v442 = vadd.f32 %v212, %v441
      %v443 = vpop.f32.mrb[0].mxu0
      %444 = vmatprep.mubr.f32.mxu0 0.0
      %445 = vmatmul.mubr.f32.gmra.mrb[0].mxu0 %v255
      %v446 = vpop.f32.mrb[0].mxu0
      %v447 = vadd.f32 %v212, %v446
      %v448 = vpop.f32.mrb[0].mxu0
      %449 = vmatprep.mubr.f32.mxu0 0.0
      %450 = vmatmul.mubr.f32.gmra.mrb[0].mxu0 %v258
      %v451 = vpop.f32.mrb[0].mxu0
      %v452 = vadd.f32 %v212, %v451
      %v453 = vpop.f32.mrb[0].mxu0
      %454 = vmatprep.mubr.f32.mxu0 0.0
      %455 = vmatmul.mubr.f32.gmra.mrb[0].mxu0 %v261
      %v456 = vpop.f32.mrb[0].mxu0
      %v457 = vadd.f32 %v212, %v456
      %v458 = vpop.f32.mrb[0].mxu0
      %459 = vmatprep.mubr.f32.mxu0 0.0
      %460 = vmatmul.mubr.f32.gmra.mrb[0].mxu0 %v264
      %v461 = vpop.f32.mrb[0].mxu0
      %v462 = vadd.f32 %v212, %v461
      %v463 = vpop.f32.mrb[0].mxu0
      %464 = vmatprep.mubr.f32.mxu0 0.0
      %465 = vmatmul.mubr.f32.gmra.mrb[0].mxu0 %v267
      %v466 = vpop.f32.mrb[0].mxu0
      %v467 = vadd.f32 %v212, %v466
      %v468 = vpop.f32.mrb[0].mxu0
      %469 = vmatprep.mubr.f32.mxu0 0.0
      %470 = vmatmul.mubr.f32.gmra.mrb[0].mxu0 %v270
      %v471 = vpop.f32.mrb[0].mxu0
      %v472 = vadd.f32 %v212, %v471
      %v473 = vpop.f32.mrb[0].mxu0
      %474 = vmatprep.mubr.f32.mxu0 0.0
      %475 = vmatmul.mubr.f32.gmra.mrb[0].mxu0 %v273
      %v476 = vpop.f32.mrb[0].mxu0
      %v477 = vadd.f32 %v212, %v476
      %v478 = vpop.f32.mrb[0].mxu0
      %479 = vmatprep.mubr.f32.mxu0 0.0
      %480 = vmatmul.mubr.f32.gmra.mrb[0].mxu0 %v276
      %v481 = vpop.f32.mrb[0].mxu0
      %v482 = vadd.f32 %v212, %v481
      %v483 = vpop.f32.mrb[0].mxu0
      %484 = vmatprep.mubr.f32.mxu0 0.0
      %485 = vmatmul.mubr.f32.gmra.mrb[0].mxu0 %v279
      %v486 = vpop.f32.mrb[0].mxu0
      %v487 = vadd.f32 %v212, %v486
      %v488 = vpop.f32.mrb[0].mxu0
      %489 = vmatprep.mubr.f32.mxu0 0.0
      %490 = vmatmul.mubr.f32.gmra.mrb[0].mxu0 %v282
      %v491 = vpop.f32.mrb[0].mxu0
      %v492 = vadd.f32 %v212, %v491
      %v493 = vpop.f32.mrb[0].mxu0
      %494 = vmatprep.mubr.f32.mxu0 0.0
      %495 = vmatmul.mubr.f32.gmra.mrb[0].mxu0 %v285
      %v496 = vpop.f32.mrb[0].mxu0
      %v497 = vadd.f32 %v212, %v496
      %v498 = vpop.f32.mrb[0].mxu0
      %499 = vmatprep.mubr.f32.mxu0 0.0
      %500 = vmatmul.mubr.f32.gmra.mrb[0].mxu0 %v288
      %v501 = vpop.f32.mrb[0].mxu0
      %v502 = vadd.f32 %v212, %v501
      %v503 = vpop.f32.mrb[0].mxu0
      %504 = vmatprep.mubr.f32.mxu0 0.0
      %505 = vmatmul.mubr.f32.gmra.mrb[0].mxu0 %v291
      %v506 = vpop.f32.mrb[0].mxu0
      %v507 = vadd.f32 %v212, %v506
      %v508 = vpop.f32.mrb[0].mxu0
      %509 = vmatprep.mubr.f32.mxu0 0.0
      %510 = vmatmul.mubr.f32.gmra.mrb[0].mxu0 %v294
      %v511 = vpop.f32.mrb[0].mxu0
      %v512 = vadd.f32 %v212, %v511
      %v513 = vpop.f32.mrb[0].mxu0
      %514 = vmatprep.mubr.f32.mxu0 0.0
      %515 = vmatmul.mubr.f32.gmra.mrb[0].mxu0 %v297
      %v516 = vpop.f32.mrb[0].mxu0
      %v517 = vadd.f32 %v212, %v516
      %v518 = vpop.f32.mrb[0].mxu0
      %519 = vmatprep.mubr.f32.mxu0 0.0
      %520 = vmatmul.mubr.f32.gmra.mrb[0].mxu0 %v300
      %v521 = vpop.f32.mrb[0].mxu0
      %v522 = vadd.f32 %v212, %v521
      %v523 = vpop.f32.mrb[0].mxu0
      %524 = vmatprep.mubr.f32.mxu0 0.0
      %525 = vmatmul.mubr.f32.gmra.mrb[0].mxu0 %v303
      %v526 = vpop.f32.mrb[0].mxu0
      %v527 = vadd.f32 %v212, %v526
      %v528 = vpop.f32.mrb[0].mxu0
      %529 = vmatprep.mubr.f32.mxu0 0.0
      %530 = vmatmul.mubr.f32.gmra.mrb[0].mxu0 %v306
      %v531 = vpop.f32.mrb[0].mxu0
      %v532 = vadd.f32 %v212, %v531
      %v533 = vpop.f32.mrb[0].mxu0
      %534 = vmatprep.mubr.f32.mxu0 0.0
      %535 = vmatmul.mubr.f32.gmra.mrb[0].mxu0 %v309
      %v536 = vpop.f32.mrb[0].mxu0
      %v537 = vadd.f32 %v212, %v536
      %v538 = vpop.f32.mrb[0].mxu0
      %539 = vdwg.mxu0
      %vm540 = vcmask 261120
      %541 = vst.msk [vmem:[%s172] sm:$0xff] %vm540, %v382
      %542 = vst.msk [vmem:[%s172 + $0x8] sm:$0xff] %vm540, %v387
      %543 = vst.msk [vmem:[%s172 + $0x10] sm:$0xff] %vm540, %v392
      %544 = vst.msk [vmem:[%s172 + $0x18] sm:$0xff] %vm540, %v397
      %545 = vst.msk [vmem:[%s172 + $0x20] sm:$0xff] %vm540, %v402
      %546 = vst.msk [vmem:[%s172 + $0x28] sm:$0xff] %vm540, %v407
      %547 = vst.msk [vmem:[%s172 + $0x30] sm:$0xff] %vm540, %v412
      %548 = vst.msk [vmem:[%s172 + $0x38] sm:$0xff] %vm540, %v417
      %549 = vst.msk [vmem:[%s172 + $0x40] sm:$0xff] %vm540, %v422
      %550 = vst.msk [vmem:[%s172 + $0x48] sm:$0xff] %vm540, %v427
      %551 = vst.msk [vmem:[%s172 + $0x50] sm:$0xff] %vm540, %v432
      %552 = vst.msk [vmem:[%s172 + $0x58] sm:$0xff] %vm540, %v437
      %553 = vst.msk [vmem:[%s172 + $0x60] sm:$0xff] %vm540, %v442
      %554 = vst.msk [vmem:[%s172 + $0x68] sm:$0xff] %vm540, %v447
      %555 = vst.msk [vmem:[%s172 + $0x70] sm:$0xff] %vm540, %v452
      %556 = vst.msk [vmem:[%s172 + $0x78] sm:$0xff] %vm540, %v457
      %557 = vst.msk [vmem:[%s172 + $0x80] sm:$0xff] %vm540, %v462
      %558 = vst.msk [vmem:[%s172 + $0x88] sm:$0xff] %vm540, %v467
      %559 = vst.msk [vmem:[%s172 + $0x90] sm:$0xff] %vm540, %v472
      %560 = vst.msk [vmem:[%s172 + $0x98] sm:$0xff] %vm540, %v477
      %561 = vst.msk [vmem:[%s172 + $0xa0] sm:$0xff] %vm540, %v482
      %562 = vst.msk [vmem:[%s172 + $0xa8] sm:$0xff] %vm540, %v487
      %563 = vst.msk [vmem:[%s172 + $0xb0] sm:$0xff] %vm540, %v492
      %564 = vst.msk [vmem:[%s172 + $0xb8] sm:$0xff] %vm540, %v497
      %565 = vst.msk [vmem:[%s172 + $0xc0] sm:$0xff] %vm540, %v502
      %566 = vst.msk [vmem:[%s172 + $0xc8] sm:$0xff] %vm540, %v507
      %567 = vst.msk [vmem:[%s172 + $0xd0] sm:$0xff] %vm540, %v512
      %568 = vst.msk [vmem:[%s172 + $0xd8] sm:$0xff] %vm540, %v517
      %569 = vst.msk [vmem:[%s172 + $0xe0] sm:$0xff] %vm540, %v522
      %570 = vst.msk [vmem:[%s172 + $0xe8] sm:$0xff] %vm540, %v527
      %571 = vst.msk [vmem:[%s172 + $0xf0] sm:$0xff] %vm540, %v532
      %572 = vst.msk [vmem:[%s172 + $0xf8] sm:$0xff] %vm540, %v537
      %s573 = smul.u32 32, %s14
      %p574 = scmp.lt.s32.totalorder %s573, 63
      %s575 = scalar_select %p574, %s573, 63
      %s576 = smul.addr %s575, 8
      %s577 = scalar_lea.vmem %s3, %s576
      // Predicated region
      $region33: #{cluster_forward.3} parent=31 // pred_check
        %p578 = pneg %p100
      $region34: #{cluster_forward.3} parent=31 // pred_check_branch
        %580 = sbr.rel (%p578) target = $region36
      $region35: #{cluster_forward.3} parent=31 // pred_region
        %s581 = smul.u32 32, %s14
      $region36: #{cluster_forward.3} parent=31 // pred_fallthru
        _
    $region32: #{cluster_forward.3} parent=5 // pred_fallthru
      _
    %p582 = scmp.le.s32.totalorder 2, %s9
    // Predicated region
    $region37: #{cluster_forward.3} parent=5 // pred_check
      %p583 = pneg %p582
    $region38: #{cluster_forward.3} parent=5 // pred_check_branch
      %585 = sbr.rel (%p583) target = $region40
    $region39: #{cluster_forward.3} parent=5 // pred_region
      %s586 = ssub.s32 %s9, 2
      // Predicated region
      $region41: #{cluster_forward.3} parent=39 // pred_check
        %p587 = pneg %p106
      $region42: #{cluster_forward.3} parent=39 // pred_check_branch
        %589 = sbr.rel (%p587) target = $region44
      $region43: #{cluster_forward.3} parent=39 // pred_region
        %s590 = smul.u32 32, %s15
        %p591 = scmp.lt.s32.totalorder %s590, 63
        %s592 = scalar_select %p591, %s590, 63
        %s593 = smul.addr %s592, 8
        %s594 = scalar_lea.vmem %s3, %s593
      $region44: #{cluster_forward.3} parent=39 // pred_fallthru
        _
    $region40: #{cluster_forward.3} parent=5 // pred_fallthru
      _
  $region6: #{cluster_forward.3} parent=0 // loop_footer
    %s13 = sadd.s32 1, %s9
  $region7: #{cluster_forward.3} parent=0 // loop_footer_branch
    %8 = sbr.rel target = $region3
  $region8: #{cluster_forward.3} parent=0 // loop_exit
    _

// kernel: cluster_forward.4
$region0: #{cluster_forward.4}
  #allocation0 [shape = 'u32[]', space=smem, size = 0x4, offset = 0x4, fixed_abs, tag = 'smem constant byte address 0x4 - core index']
  #allocation1 [shape = 'u32[144,128]{1,0:T(1,128)}', space=vmem, size = 0x12000, scoped, tag = 'internal scratch']
  %s0 = inlined_call_operand.vmem [shape: f32[3], index: 0, kind: input, shape index: {}]
  %s1 = inlined_call_operand.vmem [shape: f32[16,4,8], index: 1, kind: input, shape index: {}]
  %s2 = inlined_call_operand.vmem [shape: f32[16,64,8], index: 2, kind: input, shape index: {}]
  %s3 = inlined_call_operand.vmem [shape: f32[16,64,8], index: 3, kind: input, shape index: {}]
  %s4 = inlined_call_operand.vmem [shape: f32[16,4,8], index: 4, kind: input, shape index: {}]
  %s5 = inlined_call_operand.vmem [shape: f32[16,64,8], index: 5, kind: output, shape index: {0}]
  %s6 = inlined_call_operand.vmem [shape: f32[16,64,8], index: 6, kind: output, shape index: {1}]
  %s7 = inlined_call_operand.vmem [shape: f32[16,4,1], index: 7, kind: output, shape index: {2}]
  %8 = xla_tuple %s5, %s6, %s7
  %s9 = sld [smem:[#allocation0]]
  $region73: #{cluster_forward.4} parent=0
    _
  %s11 = ssub.s32 1, %s9
  %s12 = scalar_select 0, %s11, %s9
  $region1: #{cluster_forward.4} parent=0
    #allocation2 [shape = 'u8[512]{0}', space=smem, size = 0x200, scoped, tag = 'input window, operand 0, single buffered']
    #allocation3 [shape = 's32[2]{0}', space=sflag, size = 0x8, scoped, tag = 'scoped memory for cluster_forward.4']
    %13 = vsyncpa [#allocation3], 0
    loop: start=0, step=1, limit=4
    $region2: #{cluster_forward.4} parent=1 // loop_pre_header
      _
    $region3: #{cluster_forward.4} parent=1 // loop_header
      %s15 = sphi 0, %s19
      %p16 = scmp.ge.s32.totalorder %s15, 4
      %s23 = sphi 0, %s23
      %s25 = sphi 0, %s23
      %s26 = sphi 0, %s25
      %s40 = sphi 0, %s26
      %s46 = sphi 0, %s48
      %s49 = sphi 0, %s46
      %s50 = sphi 0, %s49
      %s66 = sphi 0, %s50
      %s72 = sphi 0, %s74
      %s75 = sphi 0, %s72
      %s76 = sphi 0, %s75
      %s92 = sphi 0, %s76
      %s98 = sphi 0, %s100
      %s101 = sphi 0, %s98
      %s102 = sphi 0, %s101
      %s118 = sphi 0, %s102
      %s124 = sphi 0, %s126
      %s127 = sphi 0, %s124
      %s128 = sphi 0, %s127
      %s144 = sphi 0, %s128
      %s150 = sphi 0, %s152
      %s153 = sphi 0, %s150
      %s154 = sphi 0, %s153
      %s170 = sphi 0, %s154
      %s176 = sphi 0, %s178
      %s179 = sphi 0, %s176
      %s180 = sphi 0, %s179
      %s196 = sphi 0, %s180
      %s202 = sphi 0, %s204
      %s205 = sphi 0, %s202
      %s206 = sphi 0, %s205
      %s222 = sphi 0, %s206
    $region4: #{cluster_forward.4} parent=1 // loop_header_branch
      %18 = sbr.rel (%p16) target = $region8
    $region5: #{cluster_forward.4} parent=1 // loop_body
      %s20 = ssub.s32 %s15, 1
      %s21 = ssub.s32 %s15, 2
      %s22 = sadd.s32 %s15, 1
      %s24 = sadd.s32 %s23, 1
      %p27 = scmp.eq.s32.totalorder %s15, 1
      %p28 = scmp.ne.s32.totalorder %s23, %s25
      %p29 = scmp.eq.s32.totalorder %s15, 0
      %p30 = por %p28, %p29
      %p31 = scmp.ne.s32.totalorder %s23, %s25
      %p32 = scmp.eq.s32.totalorder %s20, 1
      %p33 = por %p31, %p32
      %p34 = scmp.ne.s32.totalorder %s25, %s26
      %p35 = scmp.eq.s32.totalorder %s20, 0
      %p36 = por %p34, %p35
      %p37 = scmp.ne.s32.totalorder %s25, %s26
      %p38 = scmp.eq.s32.totalorder %s21, 1
      %p39 = por %p37, %p38
      %p41 = scmp.ne.s32.totalorder %s26, %s40
      %p42 = scmp.eq.s32.totalorder %s21, 0
      %p43 = por %p41, %p42
      %s44 = ssub.s32 %s15, %s22
      %p45 = scmp.eq.s32.totalorder %s44, 0
      %s47 = sadd.s32 %s46, 1
      %s48 = scalar_select %p45, %s46, %s47
      %p51 = pneg %p45
      %p52 = scmp.eq.s32.totalorder %s15, 1
      %p53 = por %p51, %p52
      %p54 = scmp.ne.s32.totalorder %s46, %s49
      %p55 = scmp.eq.s32.totalorder %s15, 0
      %p56 = por %p54, %p55
      %p57 = scmp.ne.s32.totalorder %s46, %s49
      %p58 = scmp.eq.s32.totalorder %s20, 1
      %p59 = por %p57, %p58
      %p60 = scmp.ne.s32.totalorder %s49, %s50
      %p61 = scmp.eq.s32.totalorder %s20, 0
      %p62 = por %p60, %p61
      %p63 = scmp.ne.s32.totalorder %s49, %s50
      %p64 = scmp.eq.s32.totalorder %s21, 1
      %p65 = por %p63, %p64
      %p67 = scmp.ne.s32.totalorder %s50, %s66
      %p68 = scmp.eq.s32.totalorder %s21, 0
      %p69 = por %p67, %p68
      %s70 = ssub.s32 %s15, %s22
      %p71 = scmp.eq.s32.totalorder %s70, 0
      %s73 = sadd.s32 %s72, 1
      %s74 = scalar_select %p71, %s72, %s73
      %p77 = pneg %p71
      %p78 = scmp.eq.s32.totalorder %s15, 1
      %p79 = por %p77, %p78
      %p80 = scmp.ne.s32.totalorder %s72, %s75
      %p81 = scmp.eq.s32.totalorder %s15, 0
      %p82 = por %p80, %p81
      %p83 = scmp.ne.s32.totalorder %s72, %s75
      %p84 = scmp.eq.s32.totalorder %s20, 1
      %p85 = por %p83, %p84
      %p86 = scmp.ne.s32.totalorder %s75, %s76
      %p87 = scmp.eq.s32.totalorder %s20, 0
      %p88 = por %p86, %p87
      %p89 = scmp.ne.s32.totalorder %s75, %s76
      %p90 = scmp.eq.s32.totalorder %s21, 1
      %p91 = por %p89, %p90
      %p93 = scmp.ne.s32.totalorder %s76, %s92
      %p94 = scmp.eq.s32.totalorder %s21, 0
      %p95 = por %p93, %p94
      %s96 = ssub.s32 %s15, %s22
      %p97 = scmp.eq.s32.totalorder %s96, 0
      %s99 = sadd.s32 %s98, 1
      %s100 = scalar_select %p97, %s98, %s99
      %p103 = pneg %p97
      %p104 = scmp.eq.s32.totalorder %s15, 1
      %p105 = por %p103, %p104
      %p106 = scmp.ne.s32.totalorder %s98, %s101
      %p107 = scmp.eq.s32.totalorder %s15, 0
      %p108 = por %p106, %p107
      %p109 = scmp.ne.s32.totalorder %s98, %s101
      %p110 = scmp.eq.s32.totalorder %s20, 1
      %p111 = por %p109, %p110
      %p112 = scmp.ne.s32.totalorder %s101, %s102
      %p113 = scmp.eq.s32.totalorder %s20, 0
      %p114 = por %p112, %p113
      %p115 = scmp.ne.s32.totalorder %s101, %s102
      %p116 = scmp.eq.s32.totalorder %s21, 1
      %p117 = por %p115, %p116
      %p119 = scmp.ne.s32.totalorder %s102, %s118
      %p120 = scmp.eq.s32.totalorder %s21, 0
      %p121 = por %p119, %p120
      %s122 = ssub.s32 %s15, %s22
      %p123 = scmp.eq.s32.totalorder %s122, 0
      %s125 = sadd.s32 %s124, 1
      %s126 = scalar_select %p123, %s124, %s125
      %p129 = pneg %p123
      %p130 = scmp.eq.s32.totalorder %s15, 1
      %p131 = por %p129, %p130
      %p132 = scmp.ne.s32.totalorder %s124, %s127
      %p133 = scmp.eq.s32.totalorder %s15, 0
      %p134 = por %p132, %p133
      %p135 = scmp.ne.s32.totalorder %s124, %s127
      %p136 = scmp.eq.s32.totalorder %s20, 1
      %p137 = por %p135, %p136
      %p138 = scmp.ne.s32.totalorder %s127, %s128
      %p139 = scmp.eq.s32.totalorder %s20, 0
      %p140 = por %p138, %p139
      %p141 = scmp.ne.s32.totalorder %s127, %s128
      %p142 = scmp.eq.s32.totalorder %s21, 1
      %p143 = por %p141, %p142
      %p145 = scmp.ne.s32.totalorder %s128, %s144
      %p146 = scmp.eq.s32.totalorder %s21, 0
      %p147 = por %p145, %p146
      %s148 = ssub.s32 %s15, %s22
      %p149 = scmp.eq.s32.totalorder %s148, 0
      %s151 = sadd.s32 %s150, 1
      %s152 = scalar_select %p149, %s150, %s151
      %p155 = pneg %p149
      %p156 = scmp.eq.s32.totalorder %s15, 1
      %p157 = por %p155, %p156
      %p158 = scmp.ne.s32.totalorder %s150, %s153
      %p159 = scmp.eq.s32.totalorder %s15, 0
      %p160 = por %p158, %p159
      %p161 = scmp.ne.s32.totalorder %s150, %s153
      %p162 = scmp.eq.s32.totalorder %s20, 1
      %p163 = por %p161, %p162
      %p164 = scmp.ne.s32.totalorder %s153, %s154
      %p165 = scmp.eq.s32.totalorder %s20, 0
      %p166 = por %p164, %p165
      %p167 = scmp.ne.s32.totalorder %s153, %s154
      %p168 = scmp.eq.s32.totalorder %s21, 1
      %p169 = por %p167, %p168
      %p171 = scmp.ne.s32.totalorder %s154, %s170
      %p172 = scmp.eq.s32.totalorder %s21, 0
      %p173 = por %p171, %p172
      %s174 = ssub.s32 %s15, %s22
      %p175 = scmp.eq.s32.totalorder %s174, 0
      %s177 = sadd.s32 %s176, 1
      %s178 = scalar_select %p175, %s176, %s177
      %p181 = pneg %p175
      %p182 = scmp.eq.s32.totalorder %s15, 1
      %p183 = por %p181, %p182
      %p184 = scmp.ne.s32.totalorder %s176, %s179
      %p185 = scmp.eq.s32.totalorder %s15, 0
      %p186 = por %p184, %p185
      %p187 = scmp.ne.s32.totalorder %s176, %s179
      %p188 = scmp.eq.s32.totalorder %s20, 1
      %p189 = por %p187, %p188
      %p190 = scmp.ne.s32.totalorder %s179, %s180
      %p191 = scmp.eq.s32.totalorder %s20, 0
      %p192 = por %p190, %p191
      %p193 = scmp.ne.s32.totalorder %s179, %s180
      %p194 = scmp.eq.s32.totalorder %s21, 1
      %p195 = por %p193, %p194
      %p197 = scmp.ne.s32.totalorder %s180, %s196
      %p198 = scmp.eq.s32.totalorder %s21, 0
      %p199 = por %p197, %p198
      %s200 = ssub.s32 %s15, %s22
      %p201 = scmp.eq.s32.totalorder %s200, 0
      %s203 = sadd.s32 %s202, 1
      %s204 = scalar_select %p201, %s202, %s203
      %p207 = pneg %p201
      %p208 = scmp.eq.s32.totalorder %s15, 1
      %p209 = por %p207, %p208
      %p210 = scmp.ne.s32.totalorder %s202, %s205
      %p211 = scmp.eq.s32.totalorder %s15, 0
      %p212 = por %p210, %p211
      %p213 = scmp.ne.s32.totalorder %s202, %s205
      %p214 = scmp.eq.s32.totalorder %s20, 1
      %p215 = por %p213, %p214
      %p216 = scmp.ne.s32.totalorder %s205, %s206
      %p217 = scmp.eq.s32.totalorder %s20, 0
      %p218 = por %p216, %p217
      %p219 = scmp.ne.s32.totalorder %s205, %s206
      %p220 = scmp.eq.s32.totalorder %s21, 1
      %p221 = por %p219, %p220
      %p223 = scmp.ne.s32.totalorder %s206, %s222
      %p224 = scmp.eq.s32.totalorder %s21, 0
      %p225 = por %p223, %p224
      %p226 = scmp.le.s32.totalorder 1, %s15
      %p227 = scmp.lt.s32.totalorder %s15, 3
      %p228 = pnand %p226, %p227
      %p229 = pneg %p228
      // Predicated region
      $region9: #{cluster_forward.4} parent=5 // pred_check
        _
      $region10: #{cluster_forward.4} parent=5 // pred_check_branch
        %231 = sbr.rel (%p228) target = $region12
      $region11: #{cluster_forward.4} parent=5 // pred_region
        %s232 = ssub.s32 %s15, 1
        // Predicated region
        $region13: #{cluster_forward.4} parent=11 // pred_check
          %p233 = pneg %p36
        $region14: #{cluster_forward.4} parent=11 // pred_check_branch
          %235 = sbr.rel (%p233) target = $region16
        $region15: #{cluster_forward.4} parent=11 // pred_region
          %s237 = ssub.s32 16, 16
          %238 = vsyncadd [#allocation3], %s237
          %s240 = sshll.u32 %s0, 4
          %s241 = int_to_ptr.vmem [resolvable:$true] %s240
          %243 = dma.vmem_to_smem %s241, 16, [#allocation2], [#allocation3]
        $region16: #{cluster_forward.4} parent=11 // pred_fallthru
          _
      $region12: #{cluster_forward.4} parent=5 // pred_fallthru
        _
      %p244 = scmp.lt.s32.totalorder %s15, 2
      // Predicated region
      $region17: #{cluster_forward.4} parent=5 // pred_check
        %p245 = pneg %p244
      $region18: #{cluster_forward.4} parent=5 // pred_check_branch
        %247 = sbr.rel (%p245) target = $region20
      $region19: #{cluster_forward.4} parent=5 // pred_region
        // Predicated region
        $region21: #{cluster_forward.4} parent=19 // pred_check
          %p248 = pneg %p56
        $region22: #{cluster_forward.4} parent=19 // pred_check_branch
          %250 = sbr.rel (%p248) target = $region24
        $region23: #{cluster_forward.4} parent=19 // pred_region
          %s251 = smul.u32 8, %s15
          %p252 = scmp.lt.s32.totalorder %s251, 15
          %s253 = scalar_select %p252, %s251, 15
          %s254 = smul.addr %s253, 4
          %s255 = scalar_lea.vmem %s1, %s254
          %s256 = smul.u32 8, %s15
        $region24: #{cluster_forward.4} parent=19 // pred_fallthru
          _
        // Predicated region
        $region25: #{cluster_forward.4} parent=19 // pred_check
          %p257 = pneg %p82
        $region26: #{cluster_forward.4} parent=19 // pred_check_branch
          %259 = sbr.rel (%p257) target = $region28
        $region27: #{cluster_forward.4} parent=19 // pred_region
          %s260 = smul.u32 8, %s15
          %p261 = scmp.lt.s32.totalorder %s260, 15
          %s262 = scalar_select %p261, %s260, 15
          %s263 = smul.addr %s262, 8
          %s264 = smul.addr %s263, 8
          %s265 = scalar_lea.vmem %s2, %s264
          %s266 = smul.u32 8, %s15
        $region28: #{cluster_forward.4} parent=19 // pred_fallthru
          _
        // Predicated region
        $region29: #{cluster_forward.4} parent=19 // pred_check
          %p267 = pneg %p108
        $region30: #{cluster_forward.4} parent=19 // pred_check_branch
          %269 = sbr.rel (%p267) target = $region32
        $region31: #{cluster_forward.4} parent=19 // pred_region
          %s270 = smul.u32 8, %s15
          %p271 = scmp.lt.s32.totalorder %s270, 15
          %s272 = scalar_select %p271, %s270, 15
          %s273 = smul.addr %s272, 8
          %s274 = smul.addr %s273, 8
          %s275 = scalar_lea.vmem %s3, %s274
          %s276 = smul.u32 8, %s15
        $region32: #{cluster_forward.4} parent=19 // pred_fallthru
          _
        // Predicated region
        $region33: #{cluster_forward.4} parent=19 // pred_check
          %p277 = pneg %p134
        $region34: #{cluster_forward.4} parent=19 // pred_check_branch
          %279 = sbr.rel (%p277) target = $region36
        $region35: #{cluster_forward.4} parent=19 // pred_region
          %s280 = smul.u32 8, %s15
          %p281 = scmp.lt.s32.totalorder %s280, 15
          %s282 = scalar_select %p281, %s280, 15
          %s283 = smul.addr %s282, 4
          %s284 = scalar_lea.vmem %s4, %s283
          %s285 = smul.u32 8, %s15
        $region36: #{cluster_forward.4} parent=19 // pred_fallthru
          _
      $region20: #{cluster_forward.4} parent=5 // pred_fallthru
        _
      %p286 = scmp.le.s32.totalorder 1, %s15
      %p287 = scmp.lt.s32.totalorder %s15, 3
      %p288 = pnand %p286, %p287
      %p289 = pneg %p288
      // Predicated region
      $region37: #{cluster_forward.4} parent=5 // pred_check
        _
      $region38: #{cluster_forward.4} parent=5 // pred_check_branch
        %291 = sbr.rel (%p288) target = $region40
      $region39: #{cluster_forward.4} parent=5 // pred_region
        %s292 = ssub.s32 %s15, 1
        // Predicated region
        $region41: #{cluster_forward.4} parent=39 // pred_check
          %p293 = pneg %p36
        $region42: #{cluster_forward.4} parent=39 // pred_check_branch
          %295 = sbr.rel (%p293) target = $region44
        $region43: #{cluster_forward.4} parent=39 // pred_region
          %296 = dma.done [#allocation3], 16
        $region44: #{cluster_forward.4} parent=39 // pred_fallthru
          _
        %297 = sfence
        %p298 = pneg %p36
        %p299 = pneg %p33
        %s300 = smul.u32 8, %s20
        %p301 = scmp.lt.s32.totalorder %s300, 15
        %s302 = scalar_select %p301, %s300, 15
        %s303 = smul.addr %s302, 4
        %s304 = scalar_lea.vmem %s1, %s303
        %p305 = pneg %p62
        %p306 = pneg %p59
        %s307 = smul.u32 8, %s20
        %p308 = scmp.lt.s32.totalorder %s307, 15
        %s309 = scalar_select %p308, %s307, 15
        %s310 = smul.addr %s309, 8
        %s311 = smul.addr %s310, 8
        %s312 = scalar_lea.vmem %s2, %s311
        %p313 = pneg %p88
        %p314 = pneg %p85
        %s315 = smul.u32 8, %s20
        %p316 = scmp.lt.s32.totalorder %s315, 15
        %s317 = scalar_select %p316, %s315, 15
        %s318 = smul.addr %s317, 8
        %s319 = smul.addr %s318, 8
        %s320 = scalar_lea.vmem %s3, %s319
        %p321 = pneg %p114
        %p322 = pneg %p111
        %s323 = smul.u32 8, %s20
        %p324 = scmp.lt.s32.totalorder %s323, 15
        %s325 = scalar_select %p324, %s323, 15
        %s326 = smul.addr %s325, 4
        %s327 = scalar_lea.vmem %s4, %s326
        %p328 = pneg %p140
        %p329 = pneg %p137
        %p330 = pneg %p166
        %p331 = pneg %p163
        %s332 = smul.u32 8, %s20
        %p333 = scmp.lt.s32.totalorder %s332, 15
        %s334 = scalar_select %p333, %s332, 15
        %s335 = smul.addr %s334, 8
        %s336 = smul.addr %s335, 8
        %s337 = scalar_lea.vmem %s5, %s336
        %p338 = pneg %p192
        %p339 = pneg %p189
        %s340 = smul.u32 8, %s20
        %p341 = scmp.lt.s32.totalorder %s340, 15
        %s342 = scalar_select %p341, %s340, 15
        %s343 = smul.addr %s342, 8
        %s344 = smul.addr %s343, 8
        %s345 = scalar_lea.vmem %s6, %s344
        %p346 = pneg %p218
        %p347 = pneg %p215
        %s348 = smul.u32 8, %s20
        %p349 = scmp.lt.s32.totalorder %s348, 15
        %s350 = scalar_select %p349, %s348, 15
        %s351 = smul.addr %s350, 4
        %s352 = scalar_lea.vmem %s7, %s351
        %s353 = smul.u32 8, %s20
        %p354 = scmp.lt.s32.totalorder %s353, 15
        %s355 = scalar_select %p354, %s353, 15
        %s356 = smul.addr %s355, 4
        %s357 = scalar_lea.vmem %s1, %s356
        %s358 = smul.u32 8, %s20
        %s359 = smul.u32 8, %s20
        %p360 = scmp.lt.s32.totalorder %s359, 15
        %s361 = scalar_select %p360, %s359, 15
        %s362 = smul.addr %s361, 8
        %s363 = smul.addr %s362, 8
        %s364 = scalar_lea.vmem %s2, %s363
        %s365 = smul.u32 8, %s20
        %s366 = smul.u32 8, %s20
        %p367 = scmp.lt.s32.totalorder %s366, 15
        %s368 = scalar_select %p367, %s366, 15
        %s369 = smul.addr %s368, 8
        %s370 = smul.addr %s369, 8
        %s371 = scalar_lea.vmem %s3, %s370
        %s372 = smul.u32 8, %s20
        %s373 = smul.u32 8, %s20
        %p374 = scmp.lt.s32.totalorder %s373, 15
        %s375 = scalar_select %p374, %s373, 15
        %s376 = smul.addr %s375, 4
        %s377 = scalar_lea.vmem %s4, %s376
        %s378 = smul.u32 8, %s20
        %s379 = smul.u32 8, %s20
        %p380 = scmp.lt.s32.totalorder %s379, 15
        %s381 = scalar_select %p380, %s379, 15
        %s382 = smul.addr %s381, 8
        %s383 = smul.addr %s382, 8
        %s384 = scalar_lea.vmem %s5, %s383
        %s385 = smul.u32 8, %s20
        %s386 = smul.u32 8, %s20
        %p387 = scmp.lt.s32.totalorder %s386, 15
        %s388 = scalar_select %p387, %s386, 15
        %s389 = smul.addr %s388, 8
        %s390 = smul.addr %s389, 8
        %s391 = scalar_lea.vmem %s6, %s390
        %s392 = smul.u32 8, %s20
        %s393 = smul.u32 8, %s20
        %p394 = scmp.lt.s32.totalorder %s393, 15
        %s395 = scalar_select %p394, %s393, 15
        %s396 = smul.addr %s395, 4
        %s397 = scalar_lea.vmem %s7, %s396
        %s398 = smul.u32 8, %s20
        %s399 = sld [smem:[#allocation2]]
        %s400 = sld [smem:[#allocation2 + $0x1]]
        %s401 = sld [smem:[#allocation2 + $0x2]]
        %v402 = vld [vmem:[%s357] sm:$0xf]
        %v403 = vld [vmem:[%s357 + $0x4] sm:$0xf]
        %v404 = vld [vmem:[%s357 + $0x8] sm:$0xf]
        %v405 = vld [vmem:[%s357 + $0xc] sm:$0xf]
        %v406 = vld [vmem:[%s357 + $0x10] sm:$0xf]
        %v407 = vld [vmem:[%s357 + $0x14] sm:$0xf]
        %v408 = vld [vmem:[%s357 + $0x18] sm:$0xf]
        %v409 = vld [vmem:[%s357 + $0x1c] sm:$0xf]
        %v410 = vld [vmem:[%s364] sm:$0xff]
        %v411 = vld [vmem:[%s364 + $0x8] sm:$0xff]
        %v412 = vld [vmem:[%s364 + $0x10] sm:$0xff]
        %v413 = vld [vmem:[%s364 + $0x18] sm:$0xff]
        %v414 = vld [vmem:[%s364 + $0x20] sm:$0xff]
        %v415 = vld [vmem:[%s364 + $0x28] sm:$0xff]
        %v416 = vld [vmem:[%s364 + $0x30] sm:$0xff]
        %v417 = vld [vmem:[%s364 + $0x38] sm:$0xff]
        %v418 = vld [vmem:[%s364 + $0x40] sm:$0xff]
        %v419 = vld [vmem:[%s364 + $0x48] sm:$0xff]
        %v420 = vld [vmem:[%s364 + $0x50] sm:$0xff]
        %v421 = vld [vmem:[%s364 + $0x58] sm:$0xff]
        %v422 = vld [vmem:[%s364 + $0x60] sm:$0xff]
        %v423 = vld [vmem:[%s364 + $0x68] sm:$0xff]
        %v424 = vld [vmem:[%s364 + $0x70] sm:$0xff]
        %v425 = vld [vmem:[%s364 + $0x78] sm:$0xff]
        %v426 = vld [vmem:[%s364 + $0x80] sm:$0xff]
        %v427 = vld [vmem:[%s364 + $0x88] sm:$0xff]
        %v428 = vld [vmem:[%s364 + $0x90] sm:$0xff]
        %v429 = vld [vmem:[%s364 + $0x98] sm:$0xff]
        %v430 = vld [vmem:[%s364 + $0xa0] sm:$0xff]
        %v431 = vld [vmem:[%s364 + $0xa8] sm:$0xff]
        %v432 = vld [vmem:[%s364 + $0xb0] sm:$0xff]
        %v433 = vld [vmem:[%s364 + $0xb8] sm:$0xff]
        %v434 = vld [vmem:[%s364 + $0xc0] sm:$0xff]
        %v435 = vld [vmem:[%s364 + $0xc8] sm:$0xff]
        %v436 = vld [vmem:[%s364 + $0xd0] sm:$0xff]
        %v437 = vld [vmem:[%s364 + $0xd8] sm:$0xff]
        %v438 = vld [vmem:[%s364 + $0xe0] sm:$0xff]
        %v439 = vld [vmem:[%s364 + $0xe8] sm:$0xff]
        %v440 = vld [vmem:[%s364 + $0xf0] sm:$0xff]
        %v441 = vld [vmem:[%s364 + $0xf8] sm:$0xff]
        %v442 = vld [vmem:[%s364 + $0x100] sm:$0xff]
        %v443 = vld [vmem:[%s364 + $0x108] sm:$0xff]
        %v444 = vld [vmem:[%s364 + $0x110] sm:$0xff]
        %v445 = vld [vmem:[%s364 + $0x118] sm:$0xff]
        %v446 = vld [vmem:[%s364 + $0x120] sm:$0xff]
        %v447 = vld [vmem:[%s364 + $0x128] sm:$0xff]
        %v448 = vld [vmem:[%s364 + $0x130] sm:$0xff]
        %v449 = vld [vmem:[%s364 + $0x138] sm:$0xff]
        %v450 = vld [vmem:[%s364 + $0x140] sm:$0xff]
        %v451 = vld [vmem:[%s364 + $0x148] sm:$0xff]
        %v452 = vld [vmem:[%s364 + $0x150] sm:$0xff]
        %v453 = vld [vmem:[%s364 + $0x158] sm:$0xff]
        %v454 = vld [vmem:[%s364 + $0x160] sm:$0xff]
        %v455 = vld [vmem:[%s364 + $0x168] sm:$0xff]
        %v456 = vld [vmem:[%s364 + $0x170] sm:$0xff]
        %v457 = vld [vmem:[%s364 + $0x178] sm:$0xff]
        %v458 = vld [vmem:[%s364 + $0x180] sm:$0xff]
        %v459 = vld [vmem:[%s364 + $0x188] sm:$0xff]
        %v460 = vld [vmem:[%s364 + $0x190] sm:$0xff]
        %v461 = vld [vmem:[%s364 + $0x198] sm:$0xff]
        %v462 = vld [vmem:[%s364 + $0x1a0] sm:$0xff]
        %v463 = vld [vmem:[%s364 + $0x1a8] sm:$0xff]
        %v464 = vld [vmem:[%s364 + $0x1b0] sm:$0xff]
        %v465 = vld [vmem:[%s364 + $0x1b8] sm:$0xff]
        %v466 = vld [vmem:[%s364 + $0x1c0] sm:$0xff]
        %v467 = vld [vmem:[%s364 + $0x1c8] sm:$0xff]
        %v468 = vld [vmem:[%s364 + $0x1d0] sm:$0xff]
        %v469 = vld [vmem:[%s364 + $0x1d8] sm:$0xff]
        %v470 = vld [vmem:[%s364 + $0x1e0] sm:$0xff]
        %v471 = vld [vmem:[%s364 + $0x1e8] sm:$0xff]
        %v472 = vld [vmem:[%s364 + $0x1f0] sm:$0xff]
        %v473 = vld [vmem:[%s364 + $0x1f8] sm:$0xff]
        %v474 = vld [vmem:[%s371] sm:$0xff]
        %v475 = vld [vmem:[%s371 + $0x8] sm:$0xff]
        %v476 = vld [vmem:[%s371 + $0x10] sm:$0xff]
        %v477 = vld [vmem:[%s371 + $0x18] sm:$0xff]
        %v478 = vld [vmem:[%s371 + $0x20] sm:$0xff]
        %v479 = vld [vmem:[%s371 + $0x28] sm:$0xff]
        %v480 = vld [vmem:[%s371 + $0x30] sm:$0xff]
        %v481 = vld [vmem:[%s371 + $0x38] sm:$0xff]
        %v482 = vld [vmem:[%s371 + $0x40] sm:$0xff]
        %v483 = vld [vmem:[%s371 + $0x48] sm:$0xff]
        %v484 = vld [vmem:[%s371 + $0x50] sm:$0xff]
        %v485 = vld [vmem:[%s371 + $0x58] sm:$0xff]
        %v486 = vld [vmem:[%s371 + $0x60] sm:$0xff]
        %v487 = vld [vmem:[%s371 + $0x68] sm:$0xff]
        %v488 = vld [vmem:[%s371 + $0x70] sm:$0xff]
        %v489 = vld [vmem:[%s371 + $0x78] sm:$0xff]
        %v490 = vld [vmem:[%s371 + $0x80] sm:$0xff]
        %v491 = vld [vmem:[%s371 + $0x88] sm:$0xff]
        %v492 = vld [vmem:[%s371 + $0x90] sm:$0xff]
        %v493 = vld [vmem:[%s371 + $0x98] sm:$0xff]
        %v494 = vld [vmem:[%s371 + $0xa0] sm:$0xff]
        %v495 = vld [vmem:[%s371 + $0xa8] sm:$0xff]
        %v496 = vld [vmem:[%s371 + $0xb0] sm:$0xff]
        %v497 = vld [vmem:[%s371 + $0xb8] sm:$0xff]
        %v498 = vld [vmem:[%s371 + $0xc0] sm:$0xff]
        %v499 = vld [vmem:[%s371 + $0xc8] sm:$0xff]
        %v500 = vld [vmem:[%s371 + $0xd0] sm:$0xff]
        %v501 = vld [vmem:[%s371 + $0xd8] sm:$0xff]
        %v502 = vld [vmem:[%s371 + $0xe0] sm:$0xff]
        %v503 = vld [vmem:[%s371 + $0xe8] sm:$0xff]
        %v504 = vld [vmem:[%s371 + $0xf0] sm:$0xff]
        %v505 = vld [vmem:[%s371 + $0xf8] sm:$0xff]
        %v506 = vld [vmem:[%s371 + $0x100] sm:$0xff]
        %v507 = vld [vmem:[%s371 + $0x108] sm:$0xff]
        %v508 = vld [vmem:[%s371 + $0x110] sm:$0xff]
        %v509 = vld [vmem:[%s371 + $0x118] sm:$0xff]
        %v510 = vld [vmem:[%s371 + $0x120] sm:$0xff]
        %v511 = vld [vmem:[%s371 + $0x128] sm:$0xff]
        %v512 = vld [vmem:[%s371 + $0x130] sm:$0xff]
        %v513 = vld [vmem:[%s371 + $0x138] sm:$0xff]
        %v514 = vld [vmem:[%s371 + $0x140] sm:$0xff]
        %v515 = vld [vmem:[%s371 + $0x148] sm:$0xff]
        %v516 = vld [vmem:[%s371 + $0x150] sm:$0xff]
        %v517 = vld [vmem:[%s371 + $0x158] sm:$0xff]
        %v518 = vld [vmem:[%s371 + $0x160] sm:$0xff]
        %v519 = vld [vmem:[%s371 + $0x168] sm:$0xff]
        %v520 = vld [vmem:[%s371 + $0x170] sm:$0xff]
        %v521 = vld [vmem:[%s371 + $0x178] sm:$0xff]
        %v522 = vld [vmem:[%s371 + $0x180] sm:$0xff]
        %v523 = vld [vmem:[%s371 + $0x188] sm:$0xff]
        %v524 = vld [vmem:[%s371 + $0x190] sm:$0xff]
        %v525 = vld [vmem:[%s371 + $0x198] sm:$0xff]
        %v526 = vld [vmem:[%s371 + $0x1a0] sm:$0xff]
        %v527 = vld [vmem:[%s371 + $0x1a8] sm:$0xff]
        %v528 = vld [vmem:[%s371 + $0x1b0] sm:$0xff]
        %v529 = vld [vmem:[%s371 + $0x1b8] sm:$0xff]
        %v530 = vld [vmem:[%s371 + $0x1c0] sm:$0xff]
        %v531 = vld [vmem:[%s371 + $0x1c8] sm:$0xff]
        %v532 = vld [vmem:[%s371 + $0x1d0] sm:$0xff]
        %v533 = vld [vmem:[%s371 + $0x1d8] sm:$0xff]
        %v534 = vld [vmem:[%s371 + $0x1e0] sm:$0xff]
        %v535 = vld [vmem:[%s371 + $0x1e8] sm:$0xff]
        %v536 = vld [vmem:[%s371 + $0x1f0] sm:$0xff]
        %v537 = vld [vmem:[%s371 + $0x1f8] sm:$0xff]
        %v538 = vld [vmem:[%s377] sm:$0xf]
        %v539 = vld [vmem:[%s377 + $0x4] sm:$0xf]
        %v540 = vld [vmem:[%s377 + $0x8] sm:$0xf]
        %v541 = vld [vmem:[%s377 + $0xc] sm:$0xf]
        %v542 = vld [vmem:[%s377 + $0x10] sm:$0xf]
        %v543 = vld [vmem:[%s377 + $0x14] sm:$0xf]
        %v544 = vld [vmem:[%s377 + $0x18] sm:$0xf]
        %v545 = vld [vmem:[%s377 + $0x1c] sm:$0xf]
        %v546 = vmul.f32 %v402, %v402
        %v547 = vmul.f32 %v403, %v403
        %v548 = vmul.f32 %v404, %v404
        %v549 = vmul.f32 %v405, %v405
        %v550 = vmul.f32 %v406, %v406
        %v551 = vmul.f32 %v407, %v407
        %v552 = vmul.f32 %v408, %v408
        %v553 = vmul.f32 %v409, %v409
        %vm554 = vcmask 60416
        %v555 = vsel %vm554, %v546, 0.0
        %556 = vadd.xlane.f32.xlu0 %v555
        %v557 = vpop.xlane.xlu0 %556
        %v558 = vsel %vm554, %v547, 0.0
        %559 = vadd.xlane.f32.xlu0 %v558
        %v560 = vpop.xlane.xlu0 %559
        %v561 = vsel %vm554, %v548, 0.0
        %562 = vadd.xlane.f32.xlu0 %v561
        %v563 = vpop.xlane.xlu0 %562
        %v564 = vsel %vm554, %v549, 0.0
        %565 = vadd.xlane.f32.xlu0 %v564
        %v566 = vpop.xlane.xlu0 %565
        %v567 = vsel %vm554, %v550, 0.0
        %568 = vadd.xlane.f32.xlu0 %v567
        %v569 = vpop.xlane.xlu0 %568
        %v570 = vsel %vm554, %v551, 0.0
        %571 = vadd.xlane.f32.xlu0 %v570
        %v572 = vpop.xlane.xlu0 %571
        %v573 = vsel %vm554, %v552, 0.0
        %574 = vadd.xlane.f32.xlu0 %v573
        %v575 = vpop.xlane.xlu0 %574
        %v576 = vsel %vm554, %v553, 0.0
        %577 = vadd.xlane.f32.xlu0 %v576
        %v578 = vpop.xlane.xlu0 %577
        %v579 = vmax.f32 %v557, 1e-24
        %v580 = vmax.f32 %v560, 1e-24
        %v581 = vmax.f32 %v563, 1e-24
        %v582 = vmax.f32 %v566, 1e-24
        %v583 = vmax.f32 %v569, 1e-24
        %v584 = vmax.f32 %v572, 1e-24
        %v585 = vmax.f32 %v575, 1e-24
        %v586 = vmax.f32 %v578, 1e-24
        %v587 = vrsqrt.pop %v579
        %v588 = vrsqrt.pop %v580
        %v589 = vrsqrt.pop %v581
        %v590 = vrsqrt.pop %v582
        %v591 = vrsqrt.pop %v583
        %v592 = vrsqrt.pop %v584
        %v593 = vrsqrt.pop %v585
        %v594 = vrsqrt.pop %v586
        %v595 = vmul.f32 %v402, %v587
        %v596 = vmul.f32 %v403, %v588
        %v597 = vmul.f32 %v404, %v589
        %v598 = vmul.f32 %v405, %v590
        %v599 = vmul.f32 %v406, %v591
        %v600 = vmul.f32 %v407, %v592
        %v601 = vmul.f32 %v408, %v593
        %v602 = vmul.f32 %v409, %v594
        %v603 = vmul.f32 %v410, %v410
        %v604 = vmul.f32 %v411, %v411
        %v605 = vmul.f32 %v412, %v412
        %v606 = vmul.f32 %v413, %v413
        %v607 = vmul.f32 %v414, %v414
        %v608 = vmul.f32 %v415, %v415
        %v609 = vmul.f32 %v416, %v416
        %v610 = vmul.f32 %v417, %v417
        %v611 = vmul.f32 %v418, %v418
        %v612 = vmul.f32 %v419, %v419
        %v613 = vmul.f32 %v420, %v420
        %v614 = vmul.f32 %v421, %v421
        %v615 = vmul.f32 %v422, %v422
        %v616 = vmul.f32 %v423, %v423
        %v617 = vmul.f32 %v424, %v424
        %v618 = vmul.f32 %v425, %v425
        %v619 = vmul.f32 %v426, %v426
        %v620 = vmul.f32 %v427, %v427
        %v621 = vmul.f32 %v428, %v428
        %v622 = vmul.f32 %v429, %v429
        %v623 = vmul.f32 %v430, %v430
        %v624 = vmul.f32 %v431, %v431
        %v625 = vmul.f32 %v432, %v432
        %v626 = vmul.f32 %v433, %v433
        %v627 = vmul.f32 %v434, %v434
        %v628 = vmul.f32 %v435, %v435
        %v629 = vmul.f32 %v436, %v436
        %v630 = vmul.f32 %v437, %v437
        %v631 = vmul.f32 %v438, %v438
        %v632 = vmul.f32 %v439, %v439
        %v633 = vmul.f32 %v440, %v440
        %v634 = vmul.f32 %v441, %v441
        %v635 = vmul.f32 %v442, %v442
        %v636 = vmul.f32 %v443, %v443
        %v637 = vmul.f32 %v444, %v444
        %v638 = vmul.f32 %v445, %v445
        %v639 = vmul.f32 %v446, %v446
        %v640 = vmul.f32 %v447, %v447
        %v641 = vmul.f32 %v448, %v448
        %v642 = vmul.f32 %v449, %v449
        %v643 = vmul.f32 %v450, %v450
        %v644 = vmul.f32 %v451, %v451
        %v645 = vmul.f32 %v452, %v452
        %v646 = vmul.f32 %v453, %v453
        %v647 = vmul.f32 %v454, %v454
        %v648 = vmul.f32 %v455, %v455
        %v649 = vmul.f32 %v456, %v456
        %v650 = vmul.f32 %v457, %v457
        %v651 = vmul.f32 %v458, %v458
        %v652 = vmul.f32 %v459, %v459
        %v653 = vmul.f32 %v460, %v460
        %v654 = vmul.f32 %v461, %v461
        %v655 = vmul.f32 %v462, %v462
        %v656 = vmul.f32 %v463, %v463
        %v657 = vmul.f32 %v464, %v464
        %v658 = vmul.f32 %v465, %v465
        %v659 = vmul.f32 %v466, %v466
        %v660 = vmul.f32 %v467, %v467
        %v661 = vmul.f32 %v468, %v468
        %v662 = vmul.f32 %v469, %v469
        %v663 = vmul.f32 %v470, %v470
        %v664 = vmul.f32 %v471, %v471
        %v665 = vmul.f32 %v472, %v472
        %v666 = vmul.f32 %v473, %v473
        %vm667 = vcmask 64512
        %v668 = vsel %vm667, %v603, 0.0
        %669 = vadd.xlane.f32.xlu0 %v668
        %v670 = vpop.xlane.xlu0 %669
        %v671 = vsel %vm667, %v604, 0.0
        %672 = vadd.xlane.f32.xlu0 %v671
        %v673 = vpop.xlane.xlu0 %672
        %v674 = vsel %vm667, %v605, 0.0
        %675 = vadd.xlane.f32.xlu0 %v674
        %v676 = vpop.xlane.xlu0 %675
        %v677 = vsel %vm667, %v606, 0.0
        %678 = vadd.xlane.f32.xlu0 %v677
        %v679 = vpop.xlane.xlu0 %678
        %v680 = vsel %vm667, %v607, 0.0
        %681 = vadd.xlane.f32.xlu0 %v680
        %v682 = vpop.xlane.xlu0 %681
        %v683 = vsel %vm667, %v608, 0.0
        %684 = vadd.xlane.f32.xlu0 %v683
        %v685 = vpop.xlane.xlu0 %684
        %v686 = vsel %vm667, %v609, 0.0
        %687 = vadd.xlane.f32.xlu0 %v686
        %v688 = vpop.xlane.xlu0 %687
        %v689 = vsel %vm667, %v610, 0.0
        %690 = vadd.xlane.f32.xlu0 %v689
        %v691 = vpop.xlane.xlu0 %690
        %v692 = vsel %vm667, %v611, 0.0
        %693 = vadd.xlane.f32.xlu0 %v692
        %v694 = vpop.xlane.xlu0 %693
        %v695 = vsel %vm667, %v612, 0.0
        %696 = vadd.xlane.f32.xlu0 %v695
        %v697 = vpop.xlane.xlu0 %696
        %v698 = vsel %vm667, %v613, 0.0
        %699 = vadd.xlane.f32.xlu0 %v698
        %v700 = vpop.xlane.xlu0 %699
        %v701 = vsel %vm667, %v614, 0.0
        %702 = vadd.xlane.f32.xlu0 %v701
        %v703 = vpop.xlane.xlu0 %702
        %v704 = vsel %vm667, %v615, 0.0
        %705 = vadd.xlane.f32.xlu0 %v704
        %v706 = vpop.xlane.xlu0 %705
        %v707 = vsel %vm667, %v616, 0.0
        %708 = vadd.xlane.f32.xlu0 %v707
        %v709 = vpop.xlane.xlu0 %708
        %v710 = vsel %vm667, %v617, 0.0
        %711 = vadd.xlane.f32.xlu0 %v710
        %v712 = vpop.xlane.xlu0 %711
        %v713 = vsel %vm667, %v618, 0.0
        %714 = vadd.xlane.f32.xlu0 %v713
        %v715 = vpop.xlane.xlu0 %714
        %v716 = vsel %vm667, %v619, 0.0
        %717 = vadd.xlane.f32.xlu0 %v716
        %v718 = vpop.xlane.xlu0 %717
        %v719 = vsel %vm667, %v620, 0.0
        %720 = vadd.xlane.f32.xlu0 %v719
        %v721 = vpop.xlane.xlu0 %720
        %v722 = vsel %vm667, %v621, 0.0
        %723 = vadd.xlane.f32.xlu0 %v722
        %v724 = vpop.xlane.xlu0 %723
        %v725 = vsel %vm667, %v622, 0.0
        %726 = vadd.xlane.f32.xlu0 %v725
        %v727 = vpop.xlane.xlu0 %726
        %v728 = vsel %vm667, %v623, 0.0
        %729 = vadd.xlane.f32.xlu0 %v728
        %v730 = vpop.xlane.xlu0 %729
        %v731 = vsel %vm667, %v624, 0.0
        %732 = vadd.xlane.f32.xlu0 %v731
        %v733 = vpop.xlane.xlu0 %732
        %v734 = vsel %vm667, %v625, 0.0
        %735 = vadd.xlane.f32.xlu0 %v734
        %v736 = vpop.xlane.xlu0 %735
        %v737 = vsel %vm667, %v626, 0.0
        %738 = vadd.xlane.f32.xlu0 %v737
        %v739 = vpop.xlane.xlu0 %738
        %v740 = vsel %vm667, %v627, 0.0
        %741 = vadd.xlane.f32.xlu0 %v740
        %v742 = vpop.xlane.xlu0 %741
        %v743 = vsel %vm667, %v628, 0.0
        %744 = vadd.xlane.f32.xlu0 %v743
        %v745 = vpop.xlane.xlu0 %744
        %v746 = vsel %vm667, %v629, 0.0
        %747 = vadd.xlane.f32.xlu0 %v746
        %v748 = vpop.xlane.xlu0 %747
        %v749 = vsel %vm667, %v630, 0.0
        %750 = vadd.xlane.f32.xlu0 %v749
        %v751 = vpop.xlane.xlu0 %750
        %v752 = vsel %vm667, %v631, 0.0
        %753 = vadd.xlane.f32.xlu0 %v752
        %v754 = vpop.xlane.xlu0 %753
        %v755 = vsel %vm667, %v632, 0.0
        %756 = vadd.xlane.f32.xlu0 %v755
        %v757 = vpop.xlane.xlu0 %756
        %v758 = vsel %vm667, %v633, 0.0
        %759 = vadd.xlane.f32.xlu0 %v758
        %v760 = vpop.xlane.xlu0 %759
        %v761 = vsel %vm667, %v634, 0.0
        %762 = vadd.xlane.f32.xlu0 %v761
        %v763 = vpop.xlane.xlu0 %762
        %v764 = vsel %vm667, %v635, 0.0
        %765 = vadd.xlane.f32.xlu0 %v764
        %v766 = vpop.xlane.xlu0 %765
        %v767 = vsel %vm667, %v636, 0.0
        %768 = vadd.xlane.f32.xlu0 %v767
        %v769 = vpop.xlane.xlu0 %768
        %v770 = vsel %vm667, %v637, 0.0
        %771 = vadd.xlane.f32.xlu0 %v770
        %v772 = vpop.xlane.xlu0 %771
        %v773 = vsel %vm667, %v638, 0.0
        %774 = vadd.xlane.f32.xlu0 %v773
        %v775 = vpop.xlane.xlu0 %774
        %v776 = vsel %vm667, %v639, 0.0
        %777 = vadd.xlane.f32.xlu0 %v776
        %v778 = vpop.xlane.xlu0 %777
        %v779 = vsel %vm667, %v640, 0.0
        %780 = vadd.xlane.f32.xlu0 %v779
        %v781 = vpop.xlane.xlu0 %780
        %v782 = vsel %vm667, %v641, 0.0
        %783 = vadd.xlane.f32.xlu0 %v782
        %v784 = vpop.xlane.xlu0 %783
        %v785 = vsel %vm667, %v642, 0.0
        %786 = vadd.xlane.f32.xlu0 %v785
        %v787 = vpop.xlane.xlu0 %786
        %v788 = vsel %vm667, %v643, 0.0
        %789 = vadd.xlane.f32.xlu0 %v788
        %v790 = vpop.xlane.xlu0 %789
        %v791 = vsel %vm667, %v644, 0.0
        %792 = vadd.xlane.f32.xlu0 %v791
        %v793 = vpop.xlane.xlu0 %792
        %v794 = vsel %vm667, %v645, 0.0
        %795 = vadd.xlane.f32.xlu0 %v794
        %v796 = vpop.xlane.xlu0 %795
        %v797 = vsel %vm667, %v646, 0.0
        %798 = vadd.xlane.f32.xlu0 %v797
        %v799 = vpop.xlane.xlu0 %798
        %v800 = vsel %vm667, %v647, 0.0
        %801 = vadd.xlane.f32.xlu0 %v800
        %v802 = vpop.xlane.xlu0 %801
        %v803 = vsel %vm667, %v648, 0.0
        %804 = vadd.xlane.f32.xlu0 %v803
        %v805 = vpop.xlane.xlu0 %804
        %v806 = vsel %vm667, %v649, 0.0
        %807 = vadd.xlane.f32.xlu0 %v806
        %v808 = vpop.xlane.xlu0 %807
        %v809 = vsel %vm667, %v650, 0.0
        %810 = vadd.xlane.f32.xlu0 %v809
        %v811 = vpop.xlane.xlu0 %810
        %v812 = vsel %vm667, %v651, 0.0
        %813 = vadd.xlane.f32.xlu0 %v812
        %v814 = vpop.xlane.xlu0 %813
        %v815 = vsel %vm667, %v652, 0.0
        %816 = vadd.xlane.f32.xlu0 %v815
        %v817 = vpop.xlane.xlu0 %816
        %v818 = vsel %vm667, %v653, 0.0
        %819 = vadd.xlane.f32.xlu0 %v818
        %v820 = vpop.xlane.xlu0 %819
        %v821 = vsel %vm667, %v654, 0.0
        %822 = vadd.xlane.f32.xlu0 %v821
        %v823 = vpop.xlane.xlu0 %822
        %v824 = vsel %vm667, %v655, 0.0
        %825 = vadd.xlane.f32.xlu0 %v824
        %v826 = vpop.xlane.xlu0 %825
        %v827 = vsel %vm667, %v656, 0.0
        %828 = vadd.xlane.f32.xlu0 %v827
        %v829 = vpop.xlane.xlu0 %828
        %v830 = vsel %vm667, %v657, 0.0
        %831 = vadd.xlane.f32.xlu0 %v830
        %v832 = vpop.xlane.xlu0 %831
        %v833 = vsel %vm667, %v658, 0.0
        %834 = vadd.xlane.f32.xlu0 %v833
        %v835 = vpop.xlane.xlu0 %834
        %v836 = vsel %vm667, %v659, 0.0
        %837 = vadd.xlane.f32.xlu0 %v836
        %v838 = vpop.xlane.xlu0 %837
        %v839 = vsel %vm667, %v660, 0.0
        %840 = vadd.xlane.f32.xlu0 %v839
        %v841 = vpop.xlane.xlu0 %840
        %v842 = vsel %vm667, %v661, 0.0
        %843 = vadd.xlane.f32.xlu0 %v842
        %v844 = vpop.xlane.xlu0 %843
        %v845 = vsel %vm667, %v662, 0.0
        %846 = vadd.xlane.f32.xlu0 %v845
        %v847 = vpop.xlane.xlu0 %846
        %v848 = vsel %vm667, %v663, 0.0
        %849 = vadd.xlane.f32.xlu0 %v848
        %v850 = vpop.xlane.xlu0 %849
        %v851 = vsel %vm667, %v664, 0.0
        %852 = vadd.xlane.f32.xlu0 %v851
        %v853 = vpop.xlane.xlu0 %852
        %v854 = vsel %vm667, %v665, 0.0
        %855 = vadd.xlane.f32.xlu0 %v854
        %v856 = vpop.xlane.xlu0 %855
        %v857 = vsel %vm667, %v666, 0.0
        %858 = vadd.xlane.f32.xlu0 %v857
        %v859 = vpop.xlane.xlu0 %858
        %v860 = vmax.f32 %v670, 1e-24
        %v861 = vmax.f32 %v673, 1e-24
        %v862 = vmax.f32 %v676, 1e-24
        %v863 = vmax.f32 %v679, 1e-24
        %v864 = vmax.f32 %v682, 1e-24
        %v865 = vmax.f32 %v685, 1e-24
        %v866 = vmax.f32 %v688, 1e-24
        %v867 = vmax.f32 %v691, 1e-24
        %v868 = vmax.f32 %v694, 1e-24
        %v869 = vmax.f32 %v697, 1e-24
        %v870 = vmax.f32 %v700, 1e-24
        %v871 = vmax.f32 %v703, 1e-24
        %v872 = vmax.f32 %v706, 1e-24
        %v873 = vmax.f32 %v709, 1e-24
        %v874 = vmax.f32 %v712, 1e-24
        %v875 = vmax.f32 %v715, 1e-24
        %v876 = vmax.f32 %v718, 1e-24
        %v877 = vmax.f32 %v721, 1e-24
        %v878 = vmax.f32 %v724, 1e-24
        %v879 = vmax.f32 %v727, 1e-24
        %v880 = vmax.f32 %v730, 1e-24
        %v881 = vmax.f32 %v733, 1e-24
        %v882 = vmax.f32 %v736, 1e-24
        %v883 = vmax.f32 %v739, 1e-24
        %v884 = vmax.f32 %v742, 1e-24
        %v885 = vmax.f32 %v745, 1e-24
        %v886 = vmax.f32 %v748, 1e-24
        %v887 = vmax.f32 %v751, 1e-24
        %v888 = vmax.f32 %v754, 1e-24
        %v889 = vmax.f32 %v757, 1e-24
        %v890 = vmax.f32 %v760, 1e-24
        %v891 = vmax.f32 %v763, 1e-24
        %v892 = vmax.f32 %v766, 1e-24
        %v893 = vmax.f32 %v769, 1e-24
        %v894 = vmax.f32 %v772, 1e-24
        %v895 = vmax.f32 %v775, 1e-24
        %v896 = vmax.f32 %v778, 1e-24
        %v897 = vmax.f32 %v781, 1e-24
        %v898 = vmax.f32 %v784, 1e-24
        %v899 = vmax.f32 %v787, 1e-24
        %v900 = vmax.f32 %v790, 1e-24
        %v901 = vmax.f32 %v793, 1e-24
        %v902 = vmax.f32 %v796, 1e-24
        %v903 = vmax.f32 %v799, 1e-24
        %v904 = vmax.f32 %v802, 1e-24
        %v905 = vmax.f32 %v805, 1e-24
        %v906 = vmax.f32 %v808, 1e-24
        %v907 = vmax.f32 %v811, 1e-24
        %v908 = vmax.f32 %v814, 1e-24
        %v909 = vmax.f32 %v817, 1e-24
        %v910 = vmax.f32 %v820, 1e-24
        %v911 = vmax.f32 %v823, 1e-24
        %v912 = vmax.f32 %v826, 1e-24
        %v913 = vmax.f32 %v829, 1e-24
        %v914 = vmax.f32 %v832, 1e-24
        %v915 = vmax.f32 %v835, 1e-24
        %v916 = vmax.f32 %v838, 1e-24
        %v917 = vmax.f32 %v841, 1e-24
        %v918 = vmax.f32 %v844, 1e-24
        %v919 = vmax.f32 %v847, 1e-24
        %v920 = vmax.f32 %v850, 1e-24
        %v921 = vmax.f32 %v853, 1e-24
        %v922 = vmax.f32 %v856, 1e-24
        %v923 = vmax.f32 %v859, 1e-24
        %v924 = vrsqrt.pop %v860
        %v925 = vrsqrt.pop %v861
        %v926 = vrsqrt.pop %v862
        %v927 = vrsqrt.pop %v863
        %v928 = vrsqrt.pop %v864
        %v929 = vrsqrt.pop %v865
        %v930 = vrsqrt.pop %v866
        %v931 = vrsqrt.pop %v867
        %v932 = vrsqrt.pop %v868
        %v933 = vrsqrt.pop %v869
        %v934 = vrsqrt.pop %v870
        %v935 = vrsqrt.pop %v871
        %v936 = vrsqrt.pop %v872
        %v937 = vrsqrt.pop %v873
        %v938 = vrsqrt.pop %v874
        %v939 = vrsqrt.pop %v875
        %v940 = vrsqrt.pop %v876
        %v941 = vrsqrt.pop %v877
        %v942 = vrsqrt.pop %v878
        %v943 = vrsqrt.pop %v879
        %v944 = vrsqrt.pop %v880
        %v945 = vrsqrt.pop %v881
        %v946 = vrsqrt.pop %v882
        %v947 = vrsqrt.pop %v883
        %v948 = vrsqrt.pop %v884
        %v949 = vrsqrt.pop %v885
        %v950 = vrsqrt.pop %v886
        %v951 = vrsqrt.pop %v887
        %v952 = vrsqrt.pop %v888
        %v953 = vrsqrt.pop %v889
        %v954 = vrsqrt.pop %v890
        %v955 = vrsqrt.pop %v891
        %v956 = vrsqrt.pop %v892
        %v957 = vrsqrt.pop %v893
        %v958 = vrsqrt.pop %v894
        %v959 = vrsqrt.pop %v895
        %v960 = vrsqrt.pop %v896
        %v961 = vrsqrt.pop %v897
        %v962 = vrsqrt.pop %v898
        %v963 = vrsqrt.pop %v899
        %v964 = vrsqrt.pop %v900
        %v965 = vrsqrt.pop %v901
        %v966 = vrsqrt.pop %v902
        %v967 = vrsqrt.pop %v903
        %v968 = vrsqrt.pop %v904
        %v969 = vrsqrt.pop %v905
        %v970 = vrsqrt.pop %v906
        %v971 = vrsqrt.pop %v907
        %v972 = vrsqrt.pop %v908
        %v973 = vrsqrt.pop %v909
        %v974 = vrsqrt.pop %v910
        %v975 = vrsqrt.pop %v911
        %v976 = vrsqrt.pop %v912
        %v977 = vrsqrt.pop %v913
        %v978 = vrsqrt.pop %v914
        %v979 = vrsqrt.pop %v915
        %v980 = vrsqrt.pop %v916
        %v981 = vrsqrt.pop %v917
        %v982 = vrsqrt.pop %v918
        %v983 = vrsqrt.pop %v919
        %v984 = vrsqrt.pop %v920
        %v985 = vrsqrt.pop %v921
        %v986 = vrsqrt.pop %v922
        %v987 = vrsqrt.pop %v923
        %v988 = vmul.f32 %v410, %v924
        %v989 = vmul.f32 %v411, %v925
        %v990 = vmul.f32 %v412, %v926
        %v991 = vmul.f32 %v413, %v927
        %v992 = vmul.f32 %v414, %v928
        %v993 = vmul.f32 %v415, %v929
        %v994 = vmul.f32 %v416, %v930
        %v995 = vmul.f32 %v417, %v931
        %v996 = vmul.f32 %v418, %v932
        %v997 = vmul.f32 %v419, %v933
        %v998 = vmul.f32 %v420, %v934
        %v999 = vmul.f32 %v421, %v935
        %v1000 = vmul.f32 %v422, %v936
        %v1001 = vmul.f32 %v423, %v937
        %v1002 = vmul.f32 %v424, %v938
        %v1003 = vmul.f32 %v425, %v939
        %v1004 = vmul.f32 %v426, %v940
        %v1005 = vmul.f32 %v427, %v941
        %v1006 = vmul.f32 %v428, %v942
        %v1007 = vmul.f32 %v429, %v943
        %v1008 = vmul.f32 %v430, %v944
        %v1009 = vmul.f32 %v431, %v945
        %v1010 = vmul.f32 %v432, %v946
        %v1011 = vmul.f32 %v433, %v947
        %v1012 = vmul.f32 %v434, %v948
        %v1013 = vmul.f32 %v435, %v949
        %v1014 = vmul.f32 %v436, %v950
        %v1015 = vmul.f32 %v437, %v951
        %v1016 = vmul.f32 %v438, %v952
        %v1017 = vmul.f32 %v439, %v953
        %v1018 = vmul.f32 %v440, %v954
        %v1019 = vmul.f32 %v441, %v955
        %v1020 = vmul.f32 %v442, %v956
        %v1021 = vmul.f32 %v443, %v957
        %v1022 = vmul.f32 %v444, %v958
        %v1023 = vmul.f32 %v445, %v959
        %v1024 = vmul.f32 %v446, %v960
        %v1025 = vmul.f32 %v447, %v961
        %v1026 = vmul.f32 %v448, %v962
        %v1027 = vmul.f32 %v449, %v963
        %v1028 = vmul.f32 %v450, %v964
        %v1029 = vmul.f32 %v451, %v965
        %v1030 = vmul.f32 %v452, %v966
        %v1031 = vmul.f32 %v453, %v967
        %v1032 = vmul.f32 %v454, %v968
        %v1033 = vmul.f32 %v455, %v969
        %v1034 = vmul.f32 %v456, %v970
        %v1035 = vmul.f32 %v457, %v971
        %v1036 = vmul.f32 %v458, %v972
        %v1037 = vmul.f32 %v459, %v973
        %v1038 = vmul.f32 %v460, %v974
        %v1039 = vmul.f32 %v461, %v975
        %v1040 = vmul.f32 %v462, %v976
        %v1041 = vmul.f32 %v463, %v977
        %v1042 = vmul.f32 %v464, %v978
        %v1043 = vmul.f32 %v465, %v979
        %v1044 = vmul.f32 %v466, %v980
        %v1045 = vmul.f32 %v467, %v981
        %v1046 = vmul.f32 %v468, %v982
        %v1047 = vmul.f32 %v469, %v983
        %v1048 = vmul.f32 %v470, %v984
        %v1049 = vmul.f32 %v471, %v985
        %v1050 = vmul.f32 %v472, %v986
        %v1051 = vmul.f32 %v473, %v987
        %v1053 = vsel %vm667, %v595, 0
        %v1056 = vsel %vm667, %v988, 0
        %v1059 = vsel %vm667, %v989, 0
        %v1062 = vsel %vm667, %v990, 0
        %v1065 = vsel %vm667, %v991, 0
        %v1068 = vsel %vm667, %v992, 0
        %v1071 = vsel %vm667, %v993, 0
        %v1074 = vsel %vm667, %v994, 0
        %v1077 = vsel %vm667, %v995, 0
        %1079 = vmatprep.subr.mxu0 0.0
        %1080 = vmatpush1.xpose.msra.mxu0 %v1056
        %1081 = vmatprep.subr.mxu0 0.0
        %1082 = vmatpush1.xpose.msra.mxu0 %v1059
        %1083 = vmatprep.subr.mxu0 0.0
        %1084 = vmatpush1.xpose.msra.mxu0 %v1062
        %1085 = vmatprep.subr.mxu0 0.0
        %1086 = vmatpush1.xpose.msra.mxu0 %v1065
        %1087 = vmatprep.subr.mxu0 0.0
        %1088 = vmatpush1.xpose.msra.mxu0 %v1068
        %1089 = vmatprep.subr.mxu0 0.0
        %1090 = vmatpush1.xpose.msra.mxu0 %v1071
        %1091 = vmatprep.subr.mxu0 0.0
        %1092 = vmatpush1.xpose.msra.mxu0 %v1074
        %1093 = vmatprep.subr.mxu0 0.0
        %1094 = vmatpush1.xpose.msra.mxu0 %v1077
        %1095 = vmatprep.subr.mxu0 0.0
        %1096 = vmatpush1.xpose.msra.mxu0 0.0
        %1097 = vmatprep.subr.mxu0 0.0
        %1098 = vmatpush1.xpose.msra.mxu0 0.0
        %1099 = vmatprep.subr.mxu0 0.0
        %1100 = vmatpush1.xpose.msra.mxu0 0.0
        %1101 = vmatprep.subr.mxu0 0.0
        %1102 = vmatpush1.xpose.msra.mxu0 0.0
        %1103 = vmatprep.subr.mxu0 0.0
        %1104 = vmatpush1.xpose.msra.mxu0 0.0
        %1105 = vmatprep.subr.mxu0 0.0
        %1106 = vmatpush1.xpose.msra.mxu0 0.0
        %1107 = vmatprep.subr.mxu0 0.0
        %1108 = vmatpush1.xpose.msra.mxu0 0.0
        %1109 = vmatprep.subr.mxu0 0.0
        %1110 = vmatpush1.xpose.msra.mxu0 0.0
        %1111 = vmatprep.subr.mxu0 0.0
        %1112 = vmatpush1.xpose.msra.mxu0 0.0
        %1113 = vmatprep.subr.mxu0 0.0
        %1114 = vmatpush1.xpose.msra.mxu0 0.0
        %1115 = vmatprep.subr.mxu0 0.0
        %1116 = vmatpush1.xpose.msra.mxu0 0.0
        %1117 = vmatprep.subr.mxu0 0.0
        %1118 = vmatpush1.xpose.msra.mxu0 0.0
        %1119 = vmatprep.subr.mxu0 0.0
        %1120 = vmatpush1.xpose.msra.mxu0 0.0
        %1121 = vmatprep.subr.mxu0 0.0
        %1122 = vmatpush1.xpose.msra.mxu0 0.0
        %1123 = vmatprep.subr.mxu0 0.0
        %1124 = vmatpush1.xpose.msra.mxu0 0.0
        %1125 = vmatprep.subr.mxu0 0.0
        %1126 = vmatpush1.xpose.msra.mxu0 0.0
        %1127 = vmatprep.subr.mxu0 0.0
        %1128 = vmatpush1.xpose.msra.mxu0 0.0
        %1129 = vmatprep.subr.mxu0 0.0
        %1130 = vmatpush1.xpose.msra.mxu0 0.0
        %1131 = vmatprep.subr.mxu0 0.0
        %1132 = vmatpush1.xpose.msra.mxu0 0.0
        %1133 = vmatprep.subr.mxu0 0.0
        %1134 = vmatpush1.xpose.msra.mxu0 0.0
        %1135 = vmatprep.subr.mxu0 0.0
        %1136 = vmatpush1.xpose.msra.mxu0 0.0
        %1137 = vmatprep.subr.mxu0 0.0
        %1138 = vmatpush1.xpose.msra.mxu0 0.0
        %1139 = vmatprep.subr.mxu0 0.0
        %1140 = vmatpush1.xpose.msra.mxu0 0.0
        %1141 = vmatprep.subr.mxu0 0.0
        %1142 = vmatpush1.xpose.msra.mxu0 0.0
        %1143 = vmatprep.mubr.f32.mxu0 0.0
        %1144 = vmatmul.mubr.f32.gmra.mrb[0].mxu0 %v1053
        %v1145 = vpop.f32.mrb[0].mxu0
        %v1146 = vadd.f32 0.0, %v1145
        %v1147 = vpop.f32.mrb[0].mxu0
        %1148 = vdwg.mxu0
        %v1150 = vsel %vm667, %v596, 0
        %v1153 = vsel %vm667, %v996, 0
        %v1156 = vsel %vm667, %v997, 0
        %v1159 = vsel %vm667, %v998, 0
        %v1162 = vsel %vm667, %v999, 0
        %v1165 = vsel %vm667, %v1000, 0
        %v1168 = vsel %vm667, %v1001, 0
        %v1171 = vsel %vm667, %v1002, 0
        %v1174 = vsel %vm667, %v1003, 0
        %1176 = vmatprep.subr.mxu0 0.0
        %1177 = vmatpush1.xpose.msra.mxu0 %v1153
        %1178 = vmatprep.subr.mxu0 0.0
        %1179 = vmatpush1.xpose.msra.mxu0 %v1156
        %1180 = vmatprep.subr.mxu0 0.0
        %1181 = vmatpush1.xpose.msra.mxu0 %v1159
        %1182 = vmatprep.subr.mxu0 0.0
        %1183 = vmatpush1.xpose.msra.mxu0 %v1162
        %1184 = vmatprep.subr.mxu0 0.0
        %1185 = vmatpush1.xpose.msra.mxu0 %v1165
        %1186 = vmatprep.subr.mxu0 0.0
        %1187 = vmatpush1.xpose.msra.mxu0 %v1168
        %1188 = vmatprep.subr.mxu0 0.0
        %1189 = vmatpush1.xpose.msra.mxu0 %v1171
        %1190 = vmatprep.subr.mxu0 0.0
        %1191 = vmatpush1.xpose.msra.mxu0 %v1174
        %1192 = vmatprep.subr.mxu0 0.0
        %1193 = vmatpush1.xpose.msra.mxu0 0.0
        %1194 = vmatprep.subr.mxu0 0.0
        %1195 = vmatpush1.xpose.msra.mxu0 0.0
        %1196 = vmatprep.subr.mxu0 0.0
        %1197 = vmatpush1.xpose.msra.mxu0 0.0
        %1198 = vmatprep.subr.mxu0 0.0
        %1199 = vmatpush1.xpose.msra.mxu0 0.0
        %1200 = vmatprep.subr.mxu0 0.0
        %1201 = vmatpush1.xpose.msra.mxu0 0.0
        %1202 = vmatprep.subr.mxu0 0.0
        %1203 = vmatpush1.xpose.msra.mxu0 0.0
        %1204 = vmatprep.subr.mxu0 0.0
        %1205 = vmatpush1.xpose.msra.mxu0 0.0
        %1206 = vmatprep.subr.mxu0 0.0
        %1207 = vmatpush1.xpose.msra.mxu0 0.0
        %1208 = vmatprep.subr.mxu0 0.0
        %1209 = vmatpush1.xpose.msra.mxu0 0.0
        %1210 = vmatprep.subr.mxu0 0.0
        %1211 = vmatpush1.xpose.msra.mxu0 0.0
        %1212 = vmatprep.subr.mxu0 0.0
        %1213 = vmatpush1.xpose.msra.mxu0 0.0
        %1214 = vmatprep.subr.mxu0 0.0
        %1215 = vmatpush1.xpose.msra.mxu0 0.0
        %1216 = vmatprep.subr.mxu0 0.0
        %1217 = vmatpush1.xpose.msra.mxu0 0.0
        %1218 = vmatprep.subr.mxu0 0.0
        %1219 = vmatpush1.xpose.msra.mxu0 0.0
        %1220 = vmatprep.subr.mxu0 0.0
        %1221 = vmatpush1.xpose.msra.mxu0 0.0
        %1222 = vmatprep.subr.mxu0 0.0
        %1223 = vmatpush1.xpose.msra.mxu0 0.0
        %1224 = vmatprep.subr.mxu0 0.0
        %1225 = vmatpush1.xpose.msra.mxu0 0.0
        %1226 = vmatprep.subr.mxu0 0.0
        %1227 = vmatpush1.xpose.msra.mxu0 0.0
        %1228 = vmatprep.subr.mxu0 0.0
        %1229 = vmatpush1.xpose.msra.mxu0 0.0
        %1230 = vmatprep.subr.mxu0 0.0
        %1231 = vmatpush1.xpose.msra.mxu0 0.0
        %1232 = vmatprep.subr.mxu0 0.0
        %1233 = vmatpush1.xpose.msra.mxu0 0.0
        %1234 = vmatprep.subr.mxu0 0.0
        %1235 = vmatpush1.xpose.msra.mxu0 0.0
        %1236 = vmatprep.subr.mxu0 0.0
        %1237 = vmatpush1.xpose.msra.mxu0 0.0
        %1238 = vmatprep.subr.mxu0 0.0
        %1239 = vmatpush1.xpose.msra.mxu0 0.0
        %1240 = vmatprep.mubr.f32.mxu0 0.0
        %1241 = vmatmul.mubr.f32.gmra.mrb[0].mxu0 %v1150
        %v1242 = vpop.f32.mrb[0].mxu0
        %v1243 = vadd.f32 0.0, %v1242
        %v1244 = vpop.f32.mrb[0].mxu0
        %1245 = vdwg.mxu0
        %v1247 = vsel %vm667, %v597, 0
        %v1250 = vsel %vm667, %v1004, 0
        %v1253 = vsel %vm667, %v1005, 0
        %v1256 = vsel %vm667, %v1006, 0
        %v1259 = vsel %vm667, %v1007, 0
        %v1262 = vsel %vm667, %v1008, 0
        %v1265 = vsel %vm667, %v1009, 0
        %v1268 = vsel %vm667, %v1010, 0
        %v1271 = vsel %vm667, %v1011, 0
        %1273 = vmatprep.subr.mxu0 0.0
        %1274 = vmatpush1.xpose.msra.mxu0 %v1250
        %1275 = vmatprep.subr.mxu0 0.0
        %1276 = vmatpush1.xpose.msra.mxu0 %v1253
        %1277 = vmatprep.subr.mxu0 0.0
        %1278 = vmatpush1.xpose.msra.mxu0 %v1256
        %1279 = vmatprep.subr.mxu0 0.0
        %1280 = vmatpush1.xpose.msra.mxu0 %v1259
        %1281 = vmatprep.subr.mxu0 0.0
        %1282 = vmatpush1.xpose.msra.mxu0 %v1262
        %1283 = vmatprep.subr.mxu0 0.0
        %1284 = vmatpush1.xpose.msra.mxu0 %v1265
        %1285 = vmatprep.subr.mxu0 0.0
        %1286 = vmatpush1.xpose.msra.mxu0 %v1268
        %1287 = vmatprep.subr.mxu0 0.0
        %1288 = vmatpush1.xpose.msra.mxu0 %v1271
        %1289 = vmatprep.subr.mxu0 0.0
        %1290 = vmatpush1.xpose.msra.mxu0 0.0
        %1291 = vmatprep.subr.mxu0 0.0
        %1292 = vmatpush1.xpose.msra.mxu0 0.0
        %1293 = vmatprep.subr.mxu0 0.0
        %1294 = vmatpush1.xpose.msra.mxu0 0.0
        %1295 = vmatprep.subr.mxu0 0.0
        %1296 = vmatpush1.xpose.msra.mxu0 0.0
        %1297 = vmatprep.subr.mxu0 0.0
        %1298 = vmatpush1.xpose.msra.mxu0 0.0
        %1299 = vmatprep.subr.mxu0 0.0
        %1300 = vmatpush1.xpose.msra.mxu0 0.0
        %1301 = vmatprep.subr.mxu0 0.0
        %1302 = vmatpush1.xpose.msra.mxu0 0.0
        %1303 = vmatprep.subr.mxu0 0.0
        %1304 = vmatpush1.xpose.msra.mxu0 0.0
        %1305 = vmatprep.subr.mxu0 0.0
        %1306 = vmatpush1.xpose.msra.mxu0 0.0
        %1307 = vmatprep.subr.mxu0 0.0
        %1308 = vmatpush1.xpose.msra.mxu0 0.0
        %1309 = vmatprep.subr.mxu0 0.0
        %1310 = vmatpush1.xpose.msra.mxu0 0.0
        %1311 = vmatprep.subr.mxu0 0.0
        %1312 = vmatpush1.xpose.msra.mxu0 0.0
        %1313 = vmatprep.subr.mxu0 0.0
        %1314 = vmatpush1.xpose.msra.mxu0 0.0
        %1315 = vmatprep.subr.mxu0 0.0
        %1316 = vmatpush1.xpose.msra.mxu0 0.0
        %1317 = vmatprep.subr.mxu0 0.0
        %1318 = vmatpush1.xpose.msra.mxu0 0.0
        %1319 = vmatprep.subr.mxu0 0.0
        %1320 = vmatpush1.xpose.msra.mxu0 0.0
        %1321 = vmatprep.subr.mxu0 0.0
        %1322 = vmatpush1.xpose.msra.mxu0 0.0
        %1323 = vmatprep.subr.mxu0 0.0
        %1324 = vmatpush1.xpose.msra.mxu0 0.0
        %1325 = vmatprep.subr.mxu0 0.0
        %1326 = vmatpush1.xpose.msra.mxu0 0.0
        %1327 = vmatprep.subr.mxu0 0.0
        %1328 = vmatpush1.xpose.msra.mxu0 0.0
        %1329 = vmatprep.subr.mxu0 0.0
        %1330 = vmatpush1.xpose.msra.mxu0 0.0
        %1331 = vmatprep.subr.mxu0 0.0
        %1332 = vmatpush1.xpose.msra.mxu0 0.0
        %1333 = vmatprep.subr.mxu0 0.0
        %1334 = vmatpush1.xpose.msra.mxu0 0.0
        %1335 = vmatprep.subr.mxu0 0.0
        %1336 = vmatpush1.xpose.msra.mxu0 0.0
        %1337 = vmatprep.mubr.f32.mxu0 0.0
        %1338 = vmatmul.mubr.f32.gmra.mrb[0].mxu0 %v1247
        %v1339 = vpop.f32.mrb[0].mxu0
        %v1340 = vadd.f32 0.0, %v1339
        %v1341 = vpop.f32.mrb[0].mxu0
        %1342 = vdwg.mxu0
        %v1344 = vsel %vm667, %v598, 0
        %v1347 = vsel %vm667, %v1012, 0
        %v1350 = vsel %vm667, %v1013, 0
        %v1353 = vsel %vm667, %v1014, 0
        %v1356 = vsel %vm667, %v1015, 0
        %v1359 = vsel %vm667, %v1016, 0
        %v1362 = vsel %vm667, %v1017, 0
        %v1365 = vsel %vm667, %v1018, 0
        %v1368 = vsel %vm667, %v1019, 0
        %1370 = vmatprep.subr.mxu0 0.0
        %1371 = vmatpush1.xpose.msra.mxu0 %v1347
        %1372 = vmatprep.subr.mxu0 0.0
        %1373 = vmatpush1.xpose.msra.mxu0 %v1350
        %1374 = vmatprep.subr.mxu0 0.0
        %1375 = vmatpush1.xpose.msra.mxu0 %v1353
        %1376 = vmatprep.subr.mxu0 0.0
        %1377 = vmatpush1.xpose.msra.mxu0 %v1356
        %1378 = vmatprep.subr.mxu0 0.0
        %1379 = vmatpush1.xpose.msra.mxu0 %v1359
        %1380 = vmatprep.subr.mxu0 0.0
        %1381 = vmatpush1.xpose.msra.mxu0 %v1362
        %1382 = vmatprep.subr.mxu0 0.0
        %1383 = vmatpush1.xpose.msra.mxu0 %v1365
        %1384 = vmatprep.subr.mxu0 0.0
        %1385 = vmatpush1.xpose.msra.mxu0 %v1368
        %1386 = vmatprep.subr.mxu0 0.0
        %1387 = vmatpush1.xpose.msra.mxu0 0.0
        %1388 = vmatprep.subr.mxu0 0.0
        %1389 = vmatpush1.xpose.msra.mxu0 0.0
        %1390 = vmatprep.subr.mxu0 0.0
        %1391 = vmatpush1.xpose.msra.mxu0 0.0
        %1392 = vmatprep.subr.mxu0 0.0
        %1393 = vmatpush1.xpose.msra.mxu0 0.0
        %1394 = vmatprep.subr.mxu0 0.0
        %1395 = vmatpush1.xpose.msra.mxu0 0.0
        %1396 = vmatprep.subr.mxu0 0.0
        %1397 = vmatpush1.xpose.msra.mxu0 0.0
        %1398 = vmatprep.subr.mxu0 0.0
        %1399 = vmatpush1.xpose.msra.mxu0 0.0
        %1400 = vmatprep.subr.mxu0 0.0
        %1401 = vmatpush1.xpose.msra.mxu0 0.0
        %1402 = vmatprep.subr.mxu0 0.0
        %1403 = vmatpush1.xpose.msra.mxu0 0.0
        %1404 = vmatprep.subr.mxu0 0.0
        %1405 = vmatpush1.xpose.msra.mxu0 0.0
        %1406 = vmatprep.subr.mxu0 0.0
        %1407 = vmatpush1.xpose.msra.mxu0 0.0
        %1408 = vmatprep.subr.mxu0 0.0
        %1409 = vmatpush1.xpose.msra.mxu0 0.0
        %1410 = vmatprep.subr.mxu0 0.0
        %1411 = vmatpush1.xpose.msra.mxu0 0.0
        %1412 = vmatprep.subr.mxu0 0.0
        %1413 = vmatpush1.xpose.msra.mxu0 0.0
        %1414 = vmatprep.subr.mxu0 0.0
        %1415 = vmatpush1.xpose.msra.mxu0 0.0
        %1416 = vmatprep.subr.mxu0 0.0
        %1417 = vmatpush1.xpose.msra.mxu0 0.0
        %1418 = vmatprep.subr.mxu0 0.0
        %1419 = vmatpush1.xpose.msra.mxu0 0.0
        %1420 = vmatprep.subr.mxu0 0.0
        %1421 = vmatpush1.xpose.msra.mxu0 0.0
        %1422 = vmatprep.subr.mxu0 0.0
        %1423 = vmatpush1.xpose.msra.mxu0 0.0
        %1424 = vmatprep.subr.mxu0 0.0
        %1425 = vmatpush1.xpose.msra.mxu0 0.0
        %1426 = vmatprep.subr.mxu0 0.0
        %1427 = vmatpush1.xpose.msra.mxu0 0.0
        %1428 = vmatprep.subr.mxu0 0.0
        %1429 = vmatpush1.xpose.msra.mxu0 0.0
        %1430 = vmatprep.subr.mxu0 0.0
        %1431 = vmatpush1.xpose.msra.mxu0 0.0
        %1432 = vmatprep.subr.mxu0 0.0
        %1433 = vmatpush1.xpose.msra.mxu0 0.0
        %1434 = vmatprep.mubr.f32.mxu0 0.0
        %1435 = vmatmul.mubr.f32.gmra.mrb[0].mxu0 %v1344
        %v1436 = vpop.f32.mrb[0].mxu0
        %v1437 = vadd.f32 0.0, %v1436
        %v1438 = vpop.f32.mrb[0].mxu0
        %1439 = vdwg.mxu0
        %v1441 = vsel %vm667, %v599, 0
        %v1444 = vsel %vm667, %v1020, 0
        %v1447 = vsel %vm667, %v1021, 0
        %v1450 = vsel %vm667, %v1022, 0
        %v1453 = vsel %vm667, %v1023, 0
        %v1456 = vsel %vm667, %v1024, 0
        %v1459 = vsel %vm667, %v1025, 0
        %v1462 = vsel %vm667, %v1026, 0
        %v1465 = vsel %vm667, %v1027, 0
        %1467 = vmatprep.subr.mxu0 0.0
        %1468 = vmatpush1.xpose.msra.mxu0 %v1444
        %1469 = vmatprep.subr.mxu0 0.0
        %1470 = vmatpush1.xpose.msra.mxu0 %v1447
        %1471 = vmatprep.subr.mxu0 0.0
        %1472 = vmatpush1.xpose.msra.mxu0 %v1450
        %1473 = vmatprep.subr.mxu0 0.0
        %1474 = vmatpush1.xpose.msra.mxu0 %v1453
        %1475 = vmatprep.subr.mxu0 0.0
        %1476 = vmatpush1.xpose.msra.mxu0 %v1456
        %1477 = vmatprep.subr.mxu0 0.0
        %1478 = vmatpush1.xpose.msra.mxu0 %v1459
        %1479 = vmatprep.subr.mxu0 0.0
        %1480 = vmatpush1.xpose.msra.mxu0 %v1462
        %1481 = vmatprep.subr.mxu0 0.0
        %1482 = vmatpush1.xpose.msra.mxu0 %v1465
        %1483 = vmatprep.subr.mxu0 0.0
        %1484 = vmatpush1.xpose.msra.mxu0 0.0
        %1485 = vmatprep.subr.mxu0 0.0
        %1486 = vmatpush1.xpose.msra.mxu0 0.0
        %1487 = vmatprep.subr.mxu0 0.0
        %1488 = vmatpush1.xpose.msra.mxu0 0.0
        %1489 = vmatprep.subr.mxu0 0.0
        %1490 = vmatpush1.xpose.msra.mxu0 0.0
        %1491 = vmatprep.subr.mxu0 0.0
        %1492 = vmatpush1.xpose.msra.mxu0 0.0
        %1493 = vmatprep.subr.mxu0 0.0
        %1494 = vmatpush1.xpose.msra.mxu0 0.0
        %1495 = vmatprep.subr.mxu0 0.0
        %1496 = vmatpush1.xpose.msra.mxu0 0.0
        %1497 = vmatprep.subr.mxu0 0.0
        %1498 = vmatpush1.xpose.msra.mxu0 0.0
        %1499 = vmatprep.subr.mxu0 0.0
        %1500 = vmatpush1.xpose.msra.mxu0 0.0
        %1501 = vmatprep.subr.mxu0 0.0
        %1502 = vmatpush1.xpose.msra.mxu0 0.0
        %1503 = vmatprep.subr.mxu0 0.0
        %1504 = vmatpush1.xpose.msra.mxu0 0.0
        %1505 = vmatprep.subr.mxu0 0.0
        %1506 = vmatpush1.xpose.msra.mxu0 0.0
        %1507 = vmatprep.subr.mxu0 0.0
        %1508 = vmatpush1.xpose.msra.mxu0 0.0
        %1509 = vmatprep.subr.mxu0 0.0
        %1510 = vmatpush1.xpose.msra.mxu0 0.0
        %1511 = vmatprep.subr.mxu0 0.0
        %1512 = vmatpush1.xpose.msra.mxu0 0.0
        %1513 = vmatprep.subr.mxu0 0.0
        %1514 = vmatpush1.xpose.msra.mxu0 0.0
        %1515 = vmatprep.subr.mxu0 0.0
        %1516 = vmatpush1.xpose.msra.mxu0 0.0
        %1517 = vmatprep.subr.mxu0 0.0
        %1518 = vmatpush1.xpose.msra.mxu0 0.0
        %1519 = vmatprep.subr.mxu0 0.0
        %1520 = vmatpush1.xpose.msra.mxu0 0.0
        %1521 = vmatprep.subr.mxu0 0.0
        %1522 = vmatpush1.xpose.msra.mxu0 0.0
        %1523 = vmatprep.subr.mxu0 0.0
        %1524 = vmatpush1.xpose.msra.mxu0 0.0
        %1525 = vmatprep.subr.mxu0 0.0
        %1526 = vmatpush1.xpose.msra.mxu0 0.0
        %1527 = vmatprep.subr.mxu0 0.0
        %1528 = vmatpush1.xpose.msra.mxu0 0.0
        %1529 = vmatprep.subr.mxu0 0.0
        %1530 = vmatpush1.xpose.msra.mxu0 0.0
        %1531 = vmatprep.mubr.f32.mxu0 0.0
        %1532 = vmatmul.mubr.f32.gmra.mrb[0].mxu0 %v1441
        %v1533 = vpop.f32.mrb[0].mxu0
        %v1534 = vadd.f32 0.0, %v1533
        %v1535 = vpop.f32.mrb[0].mxu0
        %1536 = vdwg.mxu0
        %v1538 = vsel %vm667, %v600, 0
        %v1541 = vsel %vm667, %v1028, 0
        %v1544 = vsel %vm667, %v1029, 0
        %v1547 = vsel %vm667, %v1030, 0
        %v1550 = vsel %vm667, %v1031, 0
        %v1553 = vsel %vm667, %v1032, 0
        %v1556 = vsel %vm667, %v1033, 0
        %v1559 = vsel %vm667, %v1034, 0
        %v1562 = vsel %vm667, %v1035, 0
        %1564 = vmatprep.subr.mxu0 0.0
        %1565 = vmatpush1.xpose.msra.mxu0 %v1541
        %1566 = vmatprep.subr.mxu0 0.0
        %1567 = vmatpush1.xpose.msra.mxu0 %v1544
        %1568 = vmatprep.subr.mxu0 0.0
        %1569 = vmatpush1.xpose.msra.mxu0 %v1547
        %1570 = vmatprep.subr.mxu0 0.0
        %1571 = vmatpush1.xpose.msra.mxu0 %v1550
        %1572 = vmatprep.subr.mxu0 0.0
        %1573 = vmatpush1.xpose.msra.mxu0 %v1553
        %1574 = vmatprep.subr.mxu0 0.0
        %1575 = vmatpush1.xpose.msra.mxu0 %v1556
        %1576 = vmatprep.subr.mxu0 0.0
        %1577 = vmatpush1.xpose.msra.mxu0 %v1559
        %1578 = vmatprep.subr.mxu0 0.0
        %1579 = vmatpush1.xpose.msra.mxu0 %v1562
        %1580 = vmatprep.subr.mxu0 0.0
        %1581 = vmatpush1.xpose.msra.mxu0 0.0
        %1582 = vmatprep.subr.mxu0 0.0
        %1583 = vmatpush1.xpose.msra.mxu0 0.0
        %1584 = vmatprep.subr.mxu0 0.0
        %1585 = vmatpush1.xpose.msra.mxu0 0.0
        %1586 = vmatprep.subr.mxu0 0.0
        %1587 = vmatpush1.xpose.msra.mxu0 0.0
        %1588 = vmatprep.subr.mxu0 0.0
        %1589 = vmatpush1.xpose.msra.mxu0 0.0
        %1590 = vmatprep.subr.mxu0 0.0
        %1591 = vmatpush1.xpose.msra.mxu0 0.0
        %1592 = vmatprep.subr.mxu0 0.0
        %1593 = vmatpush1.xpose.msra.mxu0 0.0
        %1594 = vmatprep.subr.mxu0 0.0
        %1595 = vmatpush1.xpose.msra.mxu0 0.0
        %1596 = vmatprep.subr.mxu0 0.0
        %1597 = vmatpush1.xpose.msra.mxu0 0.0
        %1598 = vmatprep.subr.mxu0 0.0
        %1599 = vmatpush1.xpose.msra.mxu0 0.0
        %1600 = vmatprep.subr.mxu0 0.0
        %1601 = vmatpush1.xpose.msra.mxu0 0.0
        %1602 = vmatprep.subr.mxu0 0.0
        %1603 = vmatpush1.xpose.msra.mxu0 0.0
        %1604 = vmatprep.subr.mxu0 0.0
        %1605 = vmatpush1.xpose.msra.mxu0 0.0
        %1606 = vmatprep.subr.mxu0 0.0
        %1607 = vmatpush1.xpose.msra.mxu0 0.0
        %1608 = vmatprep.subr.mxu0 0.0
        %1609 = vmatpush1.xpose.msra.mxu0 0.0
        %1610 = vmatprep.subr.mxu0 0.0
        %1611 = vmatpush1.xpose.msra.mxu0 0.0
        %1612 = vmatprep.subr.mxu0 0.0
        %1613 = vmatpush1.xpose.msra.mxu0 0.0
        %1614 = vmatprep.subr.mxu0 0.0
        %1615 = vmatpush1.xpose.msra.mxu0 0.0
        %1616 = vmatprep.subr.mxu0 0.0
        %1617 = vmatpush1.xpose.msra.mxu0 0.0
        %1618 = vmatprep.subr.mxu0 0.0
        %1619 = vmatpush1.xpose.msra.mxu0 0.0
        %1620 = vmatprep.subr.mxu0 0.0
        %1621 = vmatpush1.xpose.msra.mxu0 0.0
        %1622 = vmatprep.subr.mxu0 0.0
        %1623 = vmatpush1.xpose.msra.mxu0 0.0
        %1624 = vmatprep.subr.mxu0 0.0
        %1625 = vmatpush1.xpose.msra.mxu0 0.0
        %1626 = vmatprep.subr.mxu0 0.0
        %1627 = vmatpush1.xpose.msra.mxu0 0.0
        %1628 = vmatprep.mubr.f32.mxu0 0.0
        %1629 = vmatmul.mubr.f32.gmra.mrb[0].mxu0 %v1538
        %v1630 = vpop.f32.mrb[0].mxu0
        %v1631 = vadd.f32 0.0, %v1630
        %v1632 = vpop.f32.mrb[0].mxu0
        %1633 = vdwg.mxu0
        %v1635 = vsel %vm667, %v601, 0
        %v1638 = vsel %vm667, %v1036, 0
        %v1641 = vsel %vm667, %v1037, 0
        %v1644 = vsel %vm667, %v1038, 0
        %v1647 = vsel %vm667, %v1039, 0
        %v1650 = vsel %vm667, %v1040, 0
        %v1653 = vsel %vm667, %v1041, 0
        %v1656 = vsel %vm667, %v1042, 0
        %v1659 = vsel %vm667, %v1043, 0
        %1661 = vmatprep.subr.mxu0 0.0
        %1662 = vmatpush1.xpose.msra.mxu0 %v1638
        %1663 = vmatprep.subr.mxu0 0.0
        %1664 = vmatpush1.xpose.msra.mxu0 %v1641
        %1665 = vmatprep.subr.mxu0 0.0
        %1666 = vmatpush1.xpose.msra.mxu0 %v1644
        %1667 = vmatprep.subr.mxu0 0.0
        %1668 = vmatpush1.xpose.msra.mxu0 %v1647
        %1669 = vmatprep.subr.mxu0 0.0
        %1670 = vmatpush1.xpose.msra.mxu0 %v1650
        %1671 = vmatprep.subr.mxu0 0.0
        %1672 = vmatpush1.xpose.msra.mxu0 %v1653
        %1673 = vmatprep.subr.mxu0 0.0
        %1674 = vmatpush1.xpose.msra.mxu0 %v1656
        %1675 = vmatprep.subr.mxu0 0.0
        %1676 = vmatpush1.xpose.msra.mxu0 %v1659
        %1677 = vmatprep.subr.mxu0 0.0
        %1678 = vmatpush1.xpose.msra.mxu0 0.0
        %1679 = vmatprep.subr.mxu0 0.0
        %1680 = vmatpush1.xpose.msra.mxu0 0.0
        %1681 = vmatprep.subr.mxu0 0.0
        %1682 = vmatpush1.xpose.msra.mxu0 0.0
        %1683 = vmatprep.subr.mxu0 0.0
        %1684 = vmatpush1.xpose.msra.mxu0 0.0
        %1685 = vmatprep.subr.mxu0 0.0
        %1686 = vmatpush1.xpose.msra.mxu0 0.0
        %1687 = vmatprep.subr.mxu0 0.0
        %1688 = vmatpush1.xpose.msra.mxu0 0.0
        %1689 = vmatprep.subr.mxu0 0.0
        %1690 = vmatpush1.xpose.msra.mxu0 0.0
        %1691 = vmatprep.subr.mxu0 0.0
        %1692 = vmatpush1.xpose.msra.mxu0 0.0
        %1693 = vmatprep.subr.mxu0 0.0
        %1694 = vmatpush1.xpose.msra.mxu0 0.0
        %1695 = vmatprep.subr.mxu0 0.0
        %1696 = vmatpush1.xpose.msra.mxu0 0.0
        %1697 = vmatprep.subr.mxu0 0.0
        %1698 = vmatpush1.xpose.msra.mxu0 0.0
        %1699 = vmatprep.subr.mxu0 0.0
        %1700 = vmatpush1.xpose.msra.mxu0 0.0
        %1701 = vmatprep.subr.mxu0 0.0
        %1702 = vmatpush1.xpose.msra.mxu0 0.0
        %1703 = vmatprep.subr.mxu0 0.0
        %1704 = vmatpush1.xpose.msra.mxu0 0.0
        %1705 = vmatprep.subr.mxu0 0.0
        %1706 = vmatpush1.xpose.msra.mxu0 0.0
        %1707 = vmatprep.subr.mxu0 0.0
        %1708 = vmatpush1.xpose.msra.mxu0 0.0
        %1709 = vmatprep.subr.mxu0 0.0
        %1710 = vmatpush1.xpose.msra.mxu0 0.0
        %1711 = vmatprep.subr.mxu0 0.0
        %1712 = vmatpush1.xpose.msra.mxu0 0.0
        %1713 = vmatprep.subr.mxu0 0.0
        %1714 = vmatpush1.xpose.msra.mxu0 0.0
        %1715 = vmatprep.subr.mxu0 0.0
        %1716 = vmatpush1.xpose.msra.mxu0 0.0
        %1717 = vmatprep.subr.mxu0 0.0
        %1718 = vmatpush1.xpose.msra.mxu0 0.0
        %1719 = vmatprep.subr.mxu0 0.0
        %1720 = vmatpush1.xpose.msra.mxu0 0.0
        %1721 = vmatprep.subr.mxu0 0.0
        %1722 = vmatpush1.xpose.msra.mxu0 0.0
        %1723 = vmatprep.subr.mxu0 0.0
        %1724 = vmatpush1.xpose.msra.mxu0 0.0
        %1725 = vmatprep.mubr.f32.mxu0 0.0
        %1726 = vmatmul.mubr.f32.gmra.mrb[0].mxu0 %v1635
        %v1727 = vpop.f32.mrb[0].mxu0
        %v1728 = vadd.f32 0.0, %v1727
        %v1729 = vpop.f32.mrb[0].mxu0
        %1730 = vdwg.mxu0
        %v1732 = vsel %vm667, %v602, 0
        %v1735 = vsel %vm667, %v1044, 0
        %v1738 = vsel %vm667, %v1045, 0
        %v1741 = vsel %vm667, %v1046, 0
        %v1744 = vsel %vm667, %v1047, 0
        %v1747 = vsel %vm667, %v1048, 0
        %v1750 = vsel %vm667, %v1049, 0
        %v1753 = vsel %vm667, %v1050, 0
        %v1756 = vsel %vm667, %v1051, 0
        %1758 = vmatprep.subr.mxu0 0.0
        %1759 = vmatpush1.xpose.msra.mxu0 %v1735
        %1760 = vmatprep.subr.mxu0 0.0
        %1761 = vmatpush1.xpose.msra.mxu0 %v1738
        %1762 = vmatprep.subr.mxu0 0.0
        %1763 = vmatpush1.xpose.msra.mxu0 %v1741
        %1764 = vmatprep.subr.mxu0 0.0
        %1765 = vmatpush1.xpose.msra.mxu0 %v1744
        %1766 = vmatprep.subr.mxu0 0.0
        %1767 = vmatpush1.xpose.msra.mxu0 %v1747
        %1768 = vmatprep.subr.mxu0 0.0
        %1769 = vmatpush1.xpose.msra.mxu0 %v1750
        %1770 = vmatprep.subr.mxu0 0.0
        %1771 = vmatpush1.xpose.msra.mxu0 %v1753
        %1772 = vmatprep.subr.mxu0 0.0
        %1773 = vmatpush1.xpose.msra.mxu0 %v1756
        %1774 = vmatprep.subr.mxu0 0.0
        %1775 = vmatpush1.xpose.msra.mxu0 0.0
        %1776 = vmatprep.subr.mxu0 0.0
        %1777 = vmatpush1.xpose.msra.mxu0 0.0
        %1778 = vmatprep.subr.mxu0 0.0
        %1779 = vmatpush1.xpose.msra.mxu0 0.0
        %1780 = vmatprep.subr.mxu0 0.0
        %1781 = vmatpush1.xpose.msra.mxu0 0.0
        %1782 = vmatprep.subr.mxu0 0.0
        %1783 = vmatpush1.xpose.msra.mxu0 0.0
        %1784 = vmatprep.subr.mxu0 0.0
        %1785 = vmatpush1.xpose.msra.mxu0 0.0
        %1786 = vmatprep.subr.mxu0 0.0
        %1787 = vmatpush1.xpose.msra.mxu0 0.0
        %1788 = vmatprep.subr.mxu0 0.0
        %1789 = vmatpush1.xpose.msra.mxu0 0.0
        %1790 = vmatprep.subr.mxu0 0.0
        %1791 = vmatpush1.xpose.msra.mxu0 0.0
        %1792 = vmatprep.subr.mxu0 0.0
        %1793 = vmatpush1.xpose.msra.mxu0 0.0
        %1794 = vmatprep.subr.mxu0 0.0
        %1795 = vmatpush1.xpose.msra.mxu0 0.0
        %1796 = vmatprep.subr.mxu0 0.0
        %1797 = vmatpush1.xpose.msra.mxu0 0.0
        %1798 = vmatprep.subr.mxu0 0.0
        %1799 = vmatpush1.xpose.msra.mxu0 0.0
        %1800 = vmatprep.subr.mxu0 0.0
        %1801 = vmatpush1.xpose.msra.mxu0 0.0
        %1802 = vmatprep.subr.mxu0 0.0
        %1803 = vmatpush1.xpose.msra.mxu0 0.0
        %1804 = vmatprep.subr.mxu0 0.0
        %1805 = vmatpush1.xpose.msra.mxu0 0.0
        %1806 = vmatprep.subr.mxu0 0.0
        %1807 = vmatpush1.xpose.msra.mxu0 0.0
        %1808 = vmatprep.subr.mxu0 0.0
        %1809 = vmatpush1.xpose.msra.mxu0 0.0
        %1810 = vmatprep.subr.mxu0 0.0
        %1811 = vmatpush1.xpose.msra.mxu0 0.0
        %1812 = vmatprep.subr.mxu0 0.0
        %1813 = vmatpush1.xpose.msra.mxu0 0.0
        %1814 = vmatprep.subr.mxu0 0.0
        %1815 = vmatpush1.xpose.msra.mxu0 0.0
        %1816 = vmatprep.subr.mxu0 0.0
        %1817 = vmatpush1.xpose.msra.mxu0 0.0
        %1818 = vmatprep.subr.mxu0 0.0
        %1819 = vmatpush1.xpose.msra.mxu0 0.0
        %1820 = vmatprep.subr.mxu0 0.0
        %1821 = vmatpush1.xpose.msra.mxu0 0.0
        %1822 = vmatprep.mubr.f32.mxu0 0.0
        %1823 = vmatmul.mubr.f32.gmra.mrb[0].mxu0 %v1732
        %v1824 = vpop.f32.mrb[0].mxu0
        %v1825 = vadd.f32 0.0, %v1824
        %v1826 = vpop.f32.mrb[0].mxu0
        %1827 = vdwg.mxu0
        %v1828 = vstv %s399
        %v1829 = vmul.f32 %v1828, %v1146
        %v1830 = vmul.f32 %v1828, %v1243
        %v1831 = vmul.f32 %v1828, %v1340
        %v1832 = vmul.f32 %v1828, %v1437
        %v1833 = vmul.f32 %v1828, %v1534
        %v1834 = vmul.f32 %v1828, %v1631
        %v1835 = vmul.f32 %v1828, %v1728
        %v1836 = vmul.f32 %v1828, %v1825
        %v1837 = vstv %s400
        %v1838 = vadd.f32 %v1837, %v1829
        %v1839 = vadd.f32 %v1837, %v1830
        %v1840 = vadd.f32 %v1837, %v1831
        %v1841 = vadd.f32 %v1837, %v1832
        %v1842 = vadd.f32 %v1837, %v1833
        %v1843 = vadd.f32 %v1837, %v1834
        %v1844 = vadd.f32 %v1837, %v1835
        %v1845 = vadd.f32 %v1837, %v1836
        %vm1846 = vcmask 519168
        %v1847 = vsel %vm1846, %v1838, 0.0
        %1848 = vadd.xlane.f32.xlu0 %v1847
        %v1849 = vpop.xlane.xlu0 %1848
        %v1850 = vsel %vm1846, %v1839, 0.0
        %1851 = vadd.xlane.f32.xlu0 %v1850
        %v1852 = vpop.xlane.xlu0 %1851
        %v1853 = vsel %vm1846, %v1840, 0.0
        %1854 = vadd.xlane.f32.xlu0 %v1853
        %v1855 = vpop.xlane.xlu0 %1854
        %v1856 = vsel %vm1846, %v1841, 0.0
        %1857 = vadd.xlane.f32.xlu0 %v1856
        %v1858 = vpop.xlane.xlu0 %1857
        %v1859 = vsel %vm1846, %v1842, 0.0
        %1860 = vadd.xlane.f32.xlu0 %v1859
        %v1861 = vpop.xlane.xlu0 %1860
        %v1862 = vsel %vm1846, %v1843, 0.0
        %1863 = vadd.xlane.f32.xlu0 %v1862
        %v1864 = vpop.xlane.xlu0 %1863
        %v1865 = vsel %vm1846, %v1844, 0.0
        %1866 = vadd.xlane.f32.xlu0 %v1865
        %v1867 = vpop.xlane.xlu0 %1866
        %v1868 = vsel %vm1846, %v1845, 0.0
        %1869 = vadd.xlane.f32.xlu0 %v1868
        %v1870 = vpop.xlane.xlu0 %1869
        %vm1871 = vcmask 3072
        %1872 = vst.msk [vmem:[%s397] sm:$0xf] %vm1871, %v1849
        %1873 = vst.msk [vmem:[%s397 + $0x4] sm:$0xf] %vm1871, %v1852
        %1874 = vst.msk [vmem:[%s397 + $0x8] sm:$0xf] %vm1871, %v1855
        %1875 = vst.msk [vmem:[%s397 + $0xc] sm:$0xf] %vm1871, %v1858
        %1876 = vst.msk [vmem:[%s397 + $0x10] sm:$0xf] %vm1871, %v1861
        %1877 = vst.msk [vmem:[%s397 + $0x14] sm:$0xf] %vm1871, %v1864
        %1878 = vst.msk [vmem:[%s397 + $0x18] sm:$0xf] %vm1871, %v1867
        %1879 = vst.msk [vmem:[%s397 + $0x1c] sm:$0xf] %vm1871, %v1870
        %vm1880 = vcmask 523264
        %v1882 = vsel %vm1880, %v1838, 0
        %1884 = vmatprep.subr.mxu0 0.0
        %1885 = vmatpush1.msra.mxu0 %v474
        %1886 = vmatprep.subr.mxu0 0.0
        %1887 = vmatpush1.msra.mxu0 %v475
        %1888 = vmatprep.subr.mxu0 0.0
        %1889 = vmatpush1.msra.mxu0 %v476
        %1890 = vmatprep.subr.mxu0 0.0
        %1891 = vmatpush1.msra.mxu0 %v477
        %1892 = vmatprep.subr.mxu0 0.0
        %1893 = vmatpush1.msra.mxu0 %v478
        %1894 = vmatprep.subr.mxu0 0.0
        %1895 = vmatpush1.msra.mxu0 %v479
        %1896 = vmatprep.subr.mxu0 0.0
        %1897 = vmatpush1.msra.mxu0 %v480
        %1898 = vmatprep.subr.mxu0 0.0
        %1899 = vmatpush1.msra.mxu0 %v481
        %1900 = vmatprep.subr.mxu0 0.0
        %1901 = vmatpush1.msra.mxu0 0.0
        %1902 = vmatprep.subr.mxu0 0.0
        %1903 = vmatpush1.msra.mxu0 0.0
        %1904 = vmatprep.subr.mxu0 0.0
        %1905 = vmatpush1.msra.mxu0 0.0
        %1906 = vmatprep.subr.mxu0 0.0
        %1907 = vmatpush1.msra.mxu0 0.0
        %1908 = vmatprep.subr.mxu0 0.0
        %1909 = vmatpush1.msra.mxu0 0.0
        %1910 = vmatprep.subr.mxu0 0.0
        %1911 = vmatpush1.msra.mxu0 0.0
        %1912 = vmatprep.subr.mxu0 0.0
        %1913 = vmatpush1.msra.mxu0 0.0
        %1914 = vmatprep.subr.mxu0 0.0
        %1915 = vmatpush1.msra.mxu0 0.0
        %1916 = vmatprep.subr.mxu0 0.0
        %1917 = vmatpush1.msra.mxu0 0.0
        %1918 = vmatprep.subr.mxu0 0.0
        %1919 = vmatpush1.msra.mxu0 0.0
        %1920 = vmatprep.subr.mxu0 0.0
        %1921 = vmatpush1.msra.mxu0 0.0
        %1922 = vmatprep.subr.mxu0 0.0
        %1923 = vmatpush1.msra.mxu0 0.0
        %1924 = vmatprep.subr.mxu0 0.0
        %1925 = vmatpush1.msra.mxu0 0.0
        %1926 = vmatprep.subr.mxu0 0.0
        %1927 = vmatpush1.msra.mxu0 0.0
        %1928 = vmatprep.subr.mxu0 0.0
        %1929 = vmatpush1.msra.mxu0 0.0
        %1930 = vmatprep.subr.mxu0 0.0
        %1931 = vmatpush1.msra.mxu0 0.0
        %1932 = vmatprep.subr.mxu0 0.0
        %1933 = vmatpush1.msra.mxu0 0.0
        %1934 = vmatprep.subr.mxu0 0.0
        %1935 = vmatpush1.msra.mxu0 0.0
        %1936 = vmatprep.subr.mxu0 0.0
        %1937 = vmatpush1.msra.mxu0 0.0
        %1938 = vmatprep.subr.mxu0 0.0
        %1939 = vmatpush1.msra.mxu0 0.0
        %1940 = vmatprep.subr.mxu0 0.0
        %1941 = vmatpush1.msra.mxu0 0.0
        %1942 = vmatprep.subr.mxu0 0.0
        %1943 = vmatpush1.msra.mxu0 0.0
        %1944 = vmatprep.subr.mxu0 0.0
        %1945 = vmatpush1.msra.mxu0 0.0
        %1946 = vmatprep.subr.mxu0 0.0
        %1947 = vmatpush1.msra.mxu0 0.0
        %1948 = vmatprep.mubr.f32.mxu0 0.0
        %1949 = vmatmul.mubr.f32.gmra.mrb[0].mxu0 %v1882
        %v1950 = vpop.f32.mrb[0].mxu0
        %v1951 = vadd.f32 0.0, %v1950
        %v1952 = vpop.f32.mrb[0].mxu0
        %1953 = vdwg.mxu0
        %v1955 = vsel %vm1880, %v1839, 0
        %1957 = vmatprep.subr.mxu0 0.0
        %1958 = vmatpush1.msra.mxu0 %v482
        %1959 = vmatprep.subr.mxu0 0.0
        %1960 = vmatpush1.msra.mxu0 %v483
        %1961 = vmatprep.subr.mxu0 0.0
        %1962 = vmatpush1.msra.mxu0 %v484
        %1963 = vmatprep.subr.mxu0 0.0
        %1964 = vmatpush1.msra.mxu0 %v485
        %1965 = vmatprep.subr.mxu0 0.0
        %1966 = vmatpush1.msra.mxu0 %v486
        %1967 = vmatprep.subr.mxu0 0.0
        %1968 = vmatpush1.msra.mxu0 %v487
        %1969 = vmatprep.subr.mxu0 0.0
        %1970 = vmatpush1.msra.mxu0 %v488
        %1971 = vmatprep.subr.mxu0 0.0
        %1972 = vmatpush1.msra.mxu0 %v489
        %1973 = vmatprep.subr.mxu0 0.0
        %1974 = vmatpush1.msra.mxu0 0.0
        %1975 = vmatprep.subr.mxu0 0.0
        %1976 = vmatpush1.msra.mxu0 0.0
        %1977 = vmatprep.subr.mxu0 0.0
        %1978 = vmatpush1.msra.mxu0 0.0
        %1979 = vmatprep.subr.mxu0 0.0
        %1980 = vmatpush1.msra.mxu0 0.0
        %1981 = vmatprep.subr.mxu0 0.0
        %1982 = vmatpush1.msra.mxu0 0.0
        %1983 = vmatprep.subr.mxu0 0.0
        %1984 = vmatpush1.msra.mxu0 0.0
        %1985 = vmatprep.subr.mxu0 0.0
        %1986 = vmatpush1.msra.mxu0 0.0
        %1987 = vmatprep.subr.mxu0 0.0
        %1988 = vmatpush1.msra.mxu0 0.0
        %1989 = vmatprep.subr.mxu0 0.0
        %1990 = vmatpush1.msra.mxu0 0.0
        %1991 = vmatprep.subr.mxu0 0.0
        %1992 = vmatpush1.msra.mxu0 0.0
        %1993 = vmatprep.subr.mxu0 0.0
        %1994 = vmatpush1.msra.mxu0 0.0
        %1995 = vmatprep.subr.mxu0 0.0
        %1996 = vmatpush1.msra.mxu0 0.0
        %1997 = vmatprep.subr.mxu0 0.0
        %1998 = vmatpush1.msra.mxu0 0.0
        %1999 = vmatprep.subr.mxu0 0.0
        %2000 = vmatpush1.msra.mxu0 0.0
        %2001 = vmatprep.subr.mxu0 0.0
        %2002 = vmatpush1.msra.mxu0 0.0
        %2003 = vmatprep.subr.mxu0 0.0
        %2004 = vmatpush1.msra.mxu0 0.0
        %2005 = vmatprep.subr.mxu0 0.0
        %2006 = vmatpush1.msra.mxu0 0.0
        %2007 = vmatprep.subr.mxu0 0.0
        %2008 = vmatpush1.msra.mxu0 0.0
        %2009 = vmatprep.subr.mxu0 0.0
        %2010 = vmatpush1.msra.mxu0 0.0
        %2011 = vmatprep.subr.mxu0 0.0
        %2012 = vmatpush1.msra.mxu0 0.0
        %2013 = vmatprep.subr.mxu0 0.0
        %2014 = vmatpush1.msra.mxu0 0.0
        %2015 = vmatprep.subr.mxu0 0.0
        %2016 = vmatpush1.msra.mxu0 0.0
        %2017 = vmatprep.subr.mxu0 0.0
        %2018 = vmatpush1.msra.mxu0 0.0
        %2019 = vmatprep.subr.mxu0 0.0
        %2020 = vmatpush1.msra.mxu0 0.0
        %2021 = vmatprep.mubr.f32.mxu0 0.0
        %2022 = vmatmul.mubr.f32.gmra.mrb[0].mxu0 %v1955
        %v2023 = vpop.f32.mrb[0].mxu0
        %v2024 = vadd.f32 0.0, %v2023
        %v2025 = vpop.f32.mrb[0].mxu0
        %2026 = vdwg.mxu0
        %v2028 = vsel %vm1880, %v1840, 0
        %2030 = vmatprep.subr.mxu0 0.0
        %2031 = vmatpush1.msra.mxu0 %v490
        %2032 = vmatprep.subr.mxu0 0.0
        %2033 = vmatpush1.msra.mxu0 %v491
        %2034 = vmatprep.subr.mxu0 0.0
        %2035 = vmatpush1.msra.mxu0 %v492
        %2036 = vmatprep.subr.mxu0 0.0
        %2037 = vmatpush1.msra.mxu0 %v493
        %2038 = vmatprep.subr.mxu0 0.0
        %2039 = vmatpush1.msra.mxu0 %v494
        %2040 = vmatprep.subr.mxu0 0.0
        %2041 = vmatpush1.msra.mxu0 %v495
        %2042 = vmatprep.subr.mxu0 0.0
        %2043 = vmatpush1.msra.mxu0 %v496
        %2044 = vmatprep.subr.mxu0 0.0
        %2045 = vmatpush1.msra.mxu0 %v497
        %2046 = vmatprep.subr.mxu0 0.0
        %2047 = vmatpush1.msra.mxu0 0.0
        %2048 = vmatprep.subr.mxu0 0.0
        %2049 = vmatpush1.msra.mxu0 0.0
        %2050 = vmatprep.subr.mxu0 0.0
        %2051 = vmatpush1.msra.mxu0 0.0
        %2052 = vmatprep.subr.mxu0 0.0
        %2053 = vmatpush1.msra.mxu0 0.0
        %2054 = vmatprep.subr.mxu0 0.0
        %2055 = vmatpush1.msra.mxu0 0.0
        %2056 = vmatprep.subr.mxu0 0.0
        %2057 = vmatpush1.msra.mxu0 0.0
        %2058 = vmatprep.subr.mxu0 0.0
        %2059 = vmatpush1.msra.mxu0 0.0
        %2060 = vmatprep.subr.mxu0 0.0
        %2061 = vmatpush1.msra.mxu0 0.0
        %2062 = vmatprep.subr.mxu0 0.0
        %2063 = vmatpush1.msra.mxu0 0.0
        %2064 = vmatprep.subr.mxu0 0.0
        %2065 = vmatpush1.msra.mxu0 0.0
        %2066 = vmatprep.subr.mxu0 0.0
        %2067 = vmatpush1.msra.mxu0 0.0
        %2068 = vmatprep.subr.mxu0 0.0
        %2069 = vmatpush1.msra.mxu0 0.0
        %2070 = vmatprep.subr.mxu0 0.0
        %2071 = vmatpush1.msra.mxu0 0.0
        %2072 = vmatprep.subr.mxu0 0.0
        %2073 = vmatpush1.msra.mxu0 0.0
        %2074 = vmatprep.subr.mxu0 0.0
        %2075 = vmatpush1.msra.mxu0 0.0
        %2076 = vmatprep.subr.mxu0 0.0
        %2077 = vmatpush1.msra.mxu0 0.0
        %2078 = vmatprep.subr.mxu0 0.0
        %2079 = vmatpush1.msra.mxu0 0.0
        %2080 = vmatprep.subr.mxu0 0.0
        %2081 = vmatpush1.msra.mxu0 0.0
        %2082 = vmatprep.subr.mxu0 0.0
        %2083 = vmatpush1.msra.mxu0 0.0
        %2084 = vmatprep.subr.mxu0 0.0
        %2085 = vmatpush1.msra.mxu0 0.0
        %2086 = vmatprep.subr.mxu0 0.0
        %2087 = vmatpush1.msra.mxu0 0.0
        %2088 = vmatprep.subr.mxu0 0.0
        %2089 = vmatpush1.msra.mxu0 0.0
        %2090 = vmatprep.subr.mxu0 0.0
        %2091 = vmatpush1.msra.mxu0 0.0
        %2092 = vmatprep.subr.mxu0 0.0
        %2093 = vmatpush1.msra.mxu0 0.0
        %2094 = vmatprep.mubr.f32.mxu0 0.0
        %2095 = vmatmul.mubr.f32.gmra.mrb[0].mxu0 %v2028
        %v2096 = vpop.f32.mrb[0].mxu0
        %v2097 = vadd.f32 0.0, %v2096
        %v2098 = vpop.f32.mrb[0].mxu0
        %2099 = vdwg.mxu0
        %v2101 = vsel %vm1880, %v1841, 0
        %2103 = vmatprep.subr.mxu0 0.0
        %2104 = vmatpush1.msra.mxu0 %v498
        %2105 = vmatprep.subr.mxu0 0.0
        %2106 = vmatpush1.msra.mxu0 %v499
        %2107 = vmatprep.subr.mxu0 0.0
        %2108 = vmatpush1.msra.mxu0 %v500
        %2109 = vmatprep.subr.mxu0 0.0
        %2110 = vmatpush1.msra.mxu0 %v501
        %2111 = vmatprep.subr.mxu0 0.0
        %2112 = vmatpush1.msra.mxu0 %v502
        %2113 = vmatprep.subr.mxu0 0.0
        %2114 = vmatpush1.msra.mxu0 %v503
        %2115 = vmatprep.subr.mxu0 0.0
        %2116 = vmatpush1.msra.mxu0 %v504
        %2117 = vmatprep.subr.mxu0 0.0
        %2118 = vmatpush1.msra.mxu0 %v505
        %2119 = vmatprep.subr.mxu0 0.0
        %2120 = vmatpush1.msra.mxu0 0.0
        %2121 = vmatprep.subr.mxu0 0.0
        %2122 = vmatpush1.msra.mxu0 0.0
        %2123 = vmatprep.subr.mxu0 0.0
        %2124 = vmatpush1.msra.mxu0 0.0
        %2125 = vmatprep.subr.mxu0 0.0
        %2126 = vmatpush1.msra.mxu0 0.0
        %2127 = vmatprep.subr.mxu0 0.0
        %2128 = vmatpush1.msra.mxu0 0.0
        %2129 = vmatprep.subr.mxu0 0.0
        %2130 = vmatpush1.msra.mxu0 0.0
        %2131 = vmatprep.subr.mxu0 0.0
        %2132 = vmatpush1.msra.mxu0 0.0
        %2133 = vmatprep.subr.mxu0 0.0
        %2134 = vmatpush1.msra.mxu0 0.0
        %2135 = vmatprep.subr.mxu0 0.0
        %2136 = vmatpush1.msra.mxu0 0.0
        %2137 = vmatprep.subr.mxu0 0.0
        %2138 = vmatpush1.msra.mxu0 0.0
        %2139 = vmatprep.subr.mxu0 0.0
        %2140 = vmatpush1.msra.mxu0 0.0
        %2141 = vmatprep.subr.mxu0 0.0
        %2142 = vmatpush1.msra.mxu0 0.0
        %2143 = vmatprep.subr.mxu0 0.0
        %2144 = vmatpush1.msra.mxu0 0.0
        %2145 = vmatprep.subr.mxu0 0.0
        %2146 = vmatpush1.msra.mxu0 0.0
        %2147 = vmatprep.subr.mxu0 0.0
        %2148 = vmatpush1.msra.mxu0 0.0
        %2149 = vmatprep.subr.mxu0 0.0
        %2150 = vmatpush1.msra.mxu0 0.0
        %2151 = vmatprep.subr.mxu0 0.0
        %2152 = vmatpush1.msra.mxu0 0.0
        %2153 = vmatprep.subr.mxu0 0.0
        %2154 = vmatpush1.msra.mxu0 0.0
        %2155 = vmatprep.subr.mxu0 0.0
        %2156 = vmatpush1.msra.mxu0 0.0
        %2157 = vmatprep.subr.mxu0 0.0
        %2158 = vmatpush1.msra.mxu0 0.0
        %2159 = vmatprep.subr.mxu0 0.0
        %2160 = vmatpush1.msra.mxu0 0.0
        %2161 = vmatprep.subr.mxu0 0.0
        %2162 = vmatpush1.msra.mxu0 0.0
        %2163 = vmatprep.subr.mxu0 0.0
        %2164 = vmatpush1.msra.mxu0 0.0
        %2165 = vmatprep.subr.mxu0 0.0
        %2166 = vmatpush1.msra.mxu0 0.0
        %2167 = vmatprep.mubr.f32.mxu0 0.0
        %2168 = vmatmul.mubr.f32.gmra.mrb[0].mxu0 %v2101
        %v2169 = vpop.f32.mrb[0].mxu0
        %v2170 = vadd.f32 0.0, %v2169
        %v2171 = vpop.f32.mrb[0].mxu0
        %2172 = vdwg.mxu0
        %v2174 = vsel %vm1880, %v1842, 0
        %2176 = vmatprep.subr.mxu0 0.0
        %2177 = vmatpush1.msra.mxu0 %v506
        %2178 = vmatprep.subr.mxu0 0.0
        %2179 = vmatpush1.msra.mxu0 %v507
        %2180 = vmatprep.subr.mxu0 0.0
        %2181 = vmatpush1.msra.mxu0 %v508
        %2182 = vmatprep.subr.mxu0 0.0
        %2183 = vmatpush1.msra.mxu0 %v509
        %2184 = vmatprep.subr.mxu0 0.0
        %2185 = vmatpush1.msra.mxu0 %v510
        %2186 = vmatprep.subr.mxu0 0.0
        %2187 = vmatpush1.msra.mxu0 %v511
        %2188 = vmatprep.subr.mxu0 0.0
        %2189 = vmatpush1.msra.mxu0 %v512
        %2190 = vmatprep.subr.mxu0 0.0
        %2191 = vmatpush1.msra.mxu0 %v513
        %2192 = vmatprep.subr.mxu0 0.0
        %2193 = vmatpush1.msra.mxu0 0.0
        %2194 = vmatprep.subr.mxu0 0.0
        %2195 = vmatpush1.msra.mxu0 0.0
        %2196 = vmatprep.subr.mxu0 0.0
        %2197 = vmatpush1.msra.mxu0 0.0
        %2198 = vmatprep.subr.mxu0 0.0
        %2199 = vmatpush1.msra.mxu0 0.0
        %2200 = vmatprep.subr.mxu0 0.0
        %2201 = vmatpush1.msra.mxu0 0.0
        %2202 = vmatprep.subr.mxu0 0.0
        %2203 = vmatpush1.msra.mxu0 0.0
        %2204 = vmatprep.subr.mxu0 0.0
        %2205 = vmatpush1.msra.mxu0 0.0
        %2206 = vmatprep.subr.mxu0 0.0
        %2207 = vmatpush1.msra.mxu0 0.0
        %2208 = vmatprep.subr.mxu0 0.0
        %2209 = vmatpush1.msra.mxu0 0.0
        %2210 = vmatprep.subr.mxu0 0.0
        %2211 = vmatpush1.msra.mxu0 0.0
        %2212 = vmatprep.subr.mxu0 0.0
        %2213 = vmatpush1.msra.mxu0 0.0
        %2214 = vmatprep.subr.mxu0 0.0
        %2215 = vmatpush1.msra.mxu0 0.0
        %2216 = vmatprep.subr.mxu0 0.0
        %2217 = vmatpush1.msra.mxu0 0.0
        %2218 = vmatprep.subr.mxu0 0.0
        %2219 = vmatpush1.msra.mxu0 0.0
        %2220 = vmatprep.subr.mxu0 0.0
        %2221 = vmatpush1.msra.mxu0 0.0
        %2222 = vmatprep.subr.mxu0 0.0
        %2223 = vmatpush1.msra.mxu0 0.0
        %2224 = vmatprep.subr.mxu0 0.0
        %2225 = vmatpush1.msra.mxu0 0.0
        %2226 = vmatprep.subr.mxu0 0.0
        %2227 = vmatpush1.msra.mxu0 0.0
        %2228 = vmatprep.subr.mxu0 0.0
        %2229 = vmatpush1.msra.mxu0 0.0
        %2230 = vmatprep.subr.mxu0 0.0
        %2231 = vmatpush1.msra.mxu0 0.0
        %2232 = vmatprep.subr.mxu0 0.0
        %2233 = vmatpush1.msra.mxu0 0.0
        %2234 = vmatprep.subr.mxu0 0.0
        %2235 = vmatpush1.msra.mxu0 0.0
        %2236 = vmatprep.subr.mxu0 0.0
        %2237 = vmatpush1.msra.mxu0 0.0
        %2238 = vmatprep.subr.mxu0 0.0
        %2239 = vmatpush1.msra.mxu0 0.0
        %2240 = vmatprep.mubr.f32.mxu0 0.0
        %2241 = vmatmul.mubr.f32.gmra.mrb[0].mxu0 %v2174
        %v2242 = vpop.f32.mrb[0].mxu0
        %v2243 = vadd.f32 0.0, %v2242
        %v2244 = vpop.f32.mrb[0].mxu0
        %2245 = vdwg.mxu0
        %v2247 = vsel %vm1880, %v1843, 0
        %2249 = vmatprep.subr.mxu0 0.0
        %2250 = vmatpush1.msra.mxu0 %v514
        %2251 = vmatprep.subr.mxu0 0.0
        %2252 = vmatpush1.msra.mxu0 %v515
        %2253 = vmatprep.subr.mxu0 0.0
        %2254 = vmatpush1.msra.mxu0 %v516
        %2255 = vmatprep.subr.mxu0 0.0
        %2256 = vmatpush1.msra.mxu0 %v517
        %2257 = vmatprep.subr.mxu0 0.0
        %2258 = vmatpush1.msra.mxu0 %v518
        %2259 = vmatprep.subr.mxu0 0.0
        %2260 = vmatpush1.msra.mxu0 %v519
        %2261 = vmatprep.subr.mxu0 0.0
        %2262 = vmatpush1.msra.mxu0 %v520
        %2263 = vmatprep.subr.mxu0 0.0
        %2264 = vmatpush1.msra.mxu0 %v521
        %2265 = vmatprep.subr.mxu0 0.0
        %2266 = vmatpush1.msra.mxu0 0.0
        %2267 = vmatprep.subr.mxu0 0.0
        %2268 = vmatpush1.msra.mxu0 0.0
        %2269 = vmatprep.subr.mxu0 0.0
        %2270 = vmatpush1.msra.mxu0 0.0
        %2271 = vmatprep.subr.mxu0 0.0
        %2272 = vmatpush1.msra.mxu0 0.0
        %2273 = vmatprep.subr.mxu0 0.0
        %2274 = vmatpush1.msra.mxu0 0.0
        %2275 = vmatprep.subr.mxu0 0.0
        %2276 = vmatpush1.msra.mxu0 0.0
        %2277 = vmatprep.subr.mxu0 0.0
        %2278 = vmatpush1.msra.mxu0 0.0
        %2279 = vmatprep.subr.mxu0 0.0
        %2280 = vmatpush1.msra.mxu0 0.0
        %2281 = vmatprep.subr.mxu0 0.0
        %2282 = vmatpush1.msra.mxu0 0.0
        %2283 = vmatprep.subr.mxu0 0.0
        %2284 = vmatpush1.msra.mxu0 0.0
        %2285 = vmatprep.subr.mxu0 0.0
        %2286 = vmatpush1.msra.mxu0 0.0
        %2287 = vmatprep.subr.mxu0 0.0
        %2288 = vmatpush1.msra.mxu0 0.0
        %2289 = vmatprep.subr.mxu0 0.0
        %2290 = vmatpush1.msra.mxu0 0.0
        %2291 = vmatprep.subr.mxu0 0.0
        %2292 = vmatpush1.msra.mxu0 0.0
        %2293 = vmatprep.subr.mxu0 0.0
        %2294 = vmatpush1.msra.mxu0 0.0
        %2295 = vmatprep.subr.mxu0 0.0
        %2296 = vmatpush1.msra.mxu0 0.0
        %2297 = vmatprep.subr.mxu0 0.0
        %2298 = vmatpush1.msra.mxu0 0.0
        %2299 = vmatprep.subr.mxu0 0.0
        %2300 = vmatpush1.msra.mxu0 0.0
        %2301 = vmatprep.subr.mxu0 0.0
        %2302 = vmatpush1.msra.mxu0 0.0
        %2303 = vmatprep.subr.mxu0 0.0
        %2304 = vmatpush1.msra.mxu0 0.0
        %2305 = vmatprep.subr.mxu0 0.0
        %2306 = vmatpush1.msra.mxu0 0.0
        %2307 = vmatprep.subr.mxu0 0.0
        %2308 = vmatpush1.msra.mxu0 0.0
        %2309 = vmatprep.subr.mxu0 0.0
        %2310 = vmatpush1.msra.mxu0 0.0
        %2311 = vmatprep.subr.mxu0 0.0
        %2312 = vmatpush1.msra.mxu0 0.0
        %2313 = vmatprep.mubr.f32.mxu0 0.0
        %2314 = vmatmul.mubr.f32.gmra.mrb[0].mxu0 %v2247
        %v2315 = vpop.f32.mrb[0].mxu0
        %v2316 = vadd.f32 0.0, %v2315
        %v2317 = vpop.f32.mrb[0].mxu0
        %2318 = vdwg.mxu0
        %v2320 = vsel %vm1880, %v1844, 0
        %2322 = vmatprep.subr.mxu0 0.0
        %2323 = vmatpush1.msra.mxu0 %v522
        %2324 = vmatprep.subr.mxu0 0.0
        %2325 = vmatpush1.msra.mxu0 %v523
        %2326 = vmatprep.subr.mxu0 0.0
        %2327 = vmatpush1.msra.mxu0 %v524
        %2328 = vmatprep.subr.mxu0 0.0
        %2329 = vmatpush1.msra.mxu0 %v525
        %2330 = vmatprep.subr.mxu0 0.0
        %2331 = vmatpush1.msra.mxu0 %v526
        %2332 = vmatprep.subr.mxu0 0.0
        %2333 = vmatpush1.msra.mxu0 %v527
        %2334 = vmatprep.subr.mxu0 0.0
        %2335 = vmatpush1.msra.mxu0 %v528
        %2336 = vmatprep.subr.mxu0 0.0
        %2337 = vmatpush1.msra.mxu0 %v529
        %2338 = vmatprep.subr.mxu0 0.0
        %2339 = vmatpush1.msra.mxu0 0.0
        %2340 = vmatprep.subr.mxu0 0.0
        %2341 = vmatpush1.msra.mxu0 0.0
        %2342 = vmatprep.subr.mxu0 0.0
        %2343 = vmatpush1.msra.mxu0 0.0
        %2344 = vmatprep.subr.mxu0 0.0
        %2345 = vmatpush1.msra.mxu0 0.0
        %2346 = vmatprep.subr.mxu0 0.0
        %2347 = vmatpush1.msra.mxu0 0.0
        %2348 = vmatprep.subr.mxu0 0.0
        %2349 = vmatpush1.msra.mxu0 0.0
        %2350 = vmatprep.subr.mxu0 0.0
        %2351 = vmatpush1.msra.mxu0 0.0
        %2352 = vmatprep.subr.mxu0 0.0
        %2353 = vmatpush1.msra.mxu0 0.0
        %2354 = vmatprep.subr.mxu0 0.0
        %2355 = vmatpush1.msra.mxu0 0.0
        %2356 = vmatprep.subr.mxu0 0.0
        %2357 = vmatpush1.msra.mxu0 0.0
        %2358 = vmatprep.subr.mxu0 0.0
        %2359 = vmatpush1.msra.mxu0 0.0
        %2360 = vmatprep.subr.mxu0 0.0
        %2361 = vmatpush1.msra.mxu0 0.0
        %2362 = vmatprep.subr.mxu0 0.0
        %2363 = vmatpush1.msra.mxu0 0.0
        %2364 = vmatprep.subr.mxu0 0.0
        %2365 = vmatpush1.msra.mxu0 0.0
        %2366 = vmatprep.subr.mxu0 0.0
        %2367 = vmatpush1.msra.mxu0 0.0
        %2368 = vmatprep.subr.mxu0 0.0
        %2369 = vmatpush1.msra.mxu0 0.0
        %2370 = vmatprep.subr.mxu0 0.0
        %2371 = vmatpush1.msra.mxu0 0.0
        %2372 = vmatprep.subr.mxu0 0.0
        %2373 = vmatpush1.msra.mxu0 0.0
        %2374 = vmatprep.subr.mxu0 0.0
        %2375 = vmatpush1.msra.mxu0 0.0
        %2376 = vmatprep.subr.mxu0 0.0
        %2377 = vmatpush1.msra.mxu0 0.0
        %2378 = vmatprep.subr.mxu0 0.0
        %2379 = vmatpush1.msra.mxu0 0.0
        %2380 = vmatprep.subr.mxu0 0.0
        %2381 = vmatpush1.msra.mxu0 0.0
        %2382 = vmatprep.subr.mxu0 0.0
        %2383 = vmatpush1.msra.mxu0 0.0
        %2384 = vmatprep.subr.mxu0 0.0
        %2385 = vmatpush1.msra.mxu0 0.0
        %2386 = vmatprep.mubr.f32.mxu0 0.0
        %2387 = vmatmul.mubr.f32.gmra.mrb[0].mxu0 %v2320
        %v2388 = vpop.f32.mrb[0].mxu0
        %v2389 = vadd.f32 0.0, %v2388
        %v2390 = vpop.f32.mrb[0].mxu0
        %2391 = vdwg.mxu0
        %v2393 = vsel %vm1880, %v1845, 0
        %2395 = vmatprep.subr.mxu0 0.0
        %2396 = vmatpush1.msra.mxu0 %v530
        %2397 = vmatprep.subr.mxu0 0.0
        %2398 = vmatpush1.msra.mxu0 %v531
        %2399 = vmatprep.subr.mxu0 0.0
        %2400 = vmatpush1.msra.mxu0 %v532
        %2401 = vmatprep.subr.mxu0 0.0
        %2402 = vmatpush1.msra.mxu0 %v533
        %2403 = vmatprep.subr.mxu0 0.0
        %2404 = vmatpush1.msra.mxu0 %v534
        %2405 = vmatprep.subr.mxu0 0.0
        %2406 = vmatpush1.msra.mxu0 %v535
        %2407 = vmatprep.subr.mxu0 0.0
        %2408 = vmatpush1.msra.mxu0 %v536
        %2409 = vmatprep.subr.mxu0 0.0
        %2410 = vmatpush1.msra.mxu0 %v537
        %2411 = vmatprep.subr.mxu0 0.0
        %2412 = vmatpush1.msra.mxu0 0.0
        %2413 = vmatprep.subr.mxu0 0.0
        %2414 = vmatpush1.msra.mxu0 0.0
        %2415 = vmatprep.subr.mxu0 0.0
        %2416 = vmatpush1.msra.mxu0 0.0
        %2417 = vmatprep.subr.mxu0 0.0
        %2418 = vmatpush1.msra.mxu0 0.0
        %2419 = vmatprep.subr.mxu0 0.0
        %2420 = vmatpush1.msra.mxu0 0.0
        %2421 = vmatprep.subr.mxu0 0.0
        %2422 = vmatpush1.msra.mxu0 0.0
        %2423 = vmatprep.subr.mxu0 0.0
        %2424 = vmatpush1.msra.mxu0 0.0
        %2425 = vmatprep.subr.mxu0 0.0
        %2426 = vmatpush1.msra.mxu0 0.0
        %2427 = vmatprep.subr.mxu0 0.0
        %2428 = vmatpush1.msra.mxu0 0.0
        %2429 = vmatprep.subr.mxu0 0.0
        %2430 = vmatpush1.msra.mxu0 0.0
        %2431 = vmatprep.subr.mxu0 0.0
        %2432 = vmatpush1.msra.mxu0 0.0
        %2433 = vmatprep.subr.mxu0 0.0
        %2434 = vmatpush1.msra.mxu0 0.0
        %2435 = vmatprep.subr.mxu0 0.0
        %2436 = vmatpush1.msra.mxu0 0.0
        %2437 = vmatprep.subr.mxu0 0.0
        %2438 = vmatpush1.msra.mxu0 0.0
        %2439 = vmatprep.subr.mxu0 0.0
        %2440 = vmatpush1.msra.mxu0 0.0
        %2441 = vmatprep.subr.mxu0 0.0
        %2442 = vmatpush1.msra.mxu0 0.0
        %2443 = vmatprep.subr.mxu0 0.0
        %2444 = vmatpush1.msra.mxu0 0.0
        %2445 = vmatprep.subr.mxu0 0.0
        %2446 = vmatpush1.msra.mxu0 0.0
        %2447 = vmatprep.subr.mxu0 0.0
        %2448 = vmatpush1.msra.mxu0 0.0
        %2449 = vmatprep.subr.mxu0 0.0
        %2450 = vmatpush1.msra.mxu0 0.0
        %2451 = vmatprep.subr.mxu0 0.0
        %2452 = vmatpush1.msra.mxu0 0.0
        %2453 = vmatprep.subr.mxu0 0.0
        %2454 = vmatpush1.msra.mxu0 0.0
        %2455 = vmatprep.subr.mxu0 0.0
        %2456 = vmatpush1.msra.mxu0 0.0
        %2457 = vmatprep.subr.mxu0 0.0
        %2458 = vmatpush1.msra.mxu0 0.0
        %2459 = vmatprep.mubr.f32.mxu0 0.0
        %2460 = vmatmul.mubr.f32.gmra.mrb[0].mxu0 %v2393
        %v2461 = vpop.f32.mrb[0].mxu0
        %v2462 = vadd.f32 0.0, %v2461
        %v2463 = vpop.f32.mrb[0].mxu0
        %2464 = vdwg.mxu0
        %v2465 = vstv %s401
        %v2466 = vadd.f32 %v538, %v2465
        %v2467 = vadd.f32 %v539, %v2465
        %v2468 = vadd.f32 %v540, %v2465
        %v2469 = vadd.f32 %v541, %v2465
        %v2470 = vadd.f32 %v542, %v2465
        %v2471 = vadd.f32 %v543, %v2465
        %v2472 = vadd.f32 %v544, %v2465
        %v2473 = vadd.f32 %v545, %v2465
        %2474 = vxpose.xlu0.b32.start [1/16] %v1838, 128
        %2475 = vxpose.xlu0.b32.cont [2/16] 0.0, 128
        %2476 = vxpose.xlu0.b32.cont [3/16] 0.0, 128
        %2477 = vxpose.xlu0.b32.cont [4/16] 0.0, 128
        %2478 = vxpose.xlu0.b32.cont [5/16] 0.0, 128
        %2479 = vxpose.xlu0.b32.cont [6/16] 0.0, 128
        %2480 = vxpose.xlu0.b32.cont [7/16] 0.0, 128
        %2481 = vxpose.xlu0.b32.cont [8/16] 0.0, 128
        %2482 = vxpose.xlu0.b32.cont [9/16] 0.0, 128
        %2483 = vxpose.xlu0.b32.cont [10/16] 0.0, 128
        %2484 = vxpose.xlu0.b32.cont [11/16] 0.0, 128
        %2485 = vxpose.xlu0.b32.cont [12/16] 0.0, 128
        %2486 = vxpose.xlu0.b32.cont [13/16] 0.0, 128
        %2487 = vxpose.xlu0.b32.cont [14/16] 0.0, 128
        %2488 = vxpose.xlu0.b32.cont [15/16] 0.0, 128
        %2489 = vxpose.xlu0.b32.end [16/16] 0.0, 128
        %v2490 = vpop.trf.xlu0
        %v2491 = vpop.trf.xlu0
        %v2492 = vpop.trf.xlu0
        %v2493 = vpop.trf.xlu0
        %v2494 = vpop.trf.xlu0
        %v2495 = vpop.trf.xlu0
        %v2496 = vpop.trf.xlu0
        %v2497 = vpop.trf.xlu0
        %v2498 = vpop.trf.xlu0
        %v2499 = vpop.trf.xlu0
        %v2500 = vpop.trf.xlu0
        %v2501 = vpop.trf.xlu0
        %v2502 = vpop.trf.xlu0
        %v2503 = vpop.trf.xlu0
        %v2504 = vpop.trf.xlu0
        %v2505 = vpop.trf.xlu0
        %vm2506 = vcmask 31744
        %v2508 = vsel %vm2506, %v2490, 0
        %v2511 = vsel %vm2506, %v2491, 0
        %v2514 = vsel %vm2506, %v2492, 0
        %v2517 = vsel %vm2506, %v2493, 0
        %v2520 = vsel %vm2506, %v2494, 0
        %v2523 = vsel %vm2506, %v2495, 0
        %v2526 = vsel %vm2506, %v2496, 0
        %v2529 = vsel %vm2506, %v2497, 0
        %vm2531 = vcmask 1043456
        %v2533 = vsel %vm2531, %v2466, 0
        %2535 = vmatprep.subr.mxu0 0.0
        %2536 = vmatpush1.msra.mxu0 %v2533
        %2537 = vmatprep.subr.mxu0 0.0
        %2538 = vmatpush1.msra.mxu0 0.0
        %2539 = vmatprep.subr.mxu0 0.0
        %2540 = vmatpush1.msra.mxu0 0.0
        %2541 = vmatprep.subr.mxu0 0.0
        %2542 = vmatpush1.msra.mxu0 0.0
        %2543 = vmatprep.subr.mxu0 0.0
        %2544 = vmatpush1.msra.mxu0 0.0
        %2545 = vmatprep.subr.mxu0 0.0
        %2546 = vmatpush1.msra.mxu0 0.0
        %2547 = vmatprep.subr.mxu0 0.0
        %2548 = vmatpush1.msra.mxu0 0.0
        %2549 = vmatprep.subr.mxu0 0.0
        %2550 = vmatpush1.msra.mxu0 0.0
        %2551 = vmatprep.subr.mxu0 0.0
        %2552 = vmatpush1.msra.mxu0 0.0
        %2553 = vmatprep.subr.mxu0 0.0
        %2554 = vmatpush1.msra.mxu0 0.0
        %2555 = vmatprep.subr.mxu0 0.0
        %2556 = vmatpush1.msra.mxu0 0.0
        %2557 = vmatprep.subr.mxu0 0.0
        %2558 = vmatpush1.msra.mxu0 0.0
        %2559 = vmatprep.subr.mxu0 0.0
        %2560 = vmatpush1.msra.mxu0 0.0
        %2561 = vmatprep.subr.mxu0 0.0
        %2562 = vmatpush1.msra.mxu0 0.0
        %2563 = vmatprep.subr.mxu0 0.0
        %2564 = vmatpush1.msra.mxu0 0.0
        %2565 = vmatprep.subr.mxu0 0.0
        %2566 = vmatpush1.msra.mxu0 0.0
        %2567 = vmatprep.subr.mxu0 0.0
        %2568 = vmatpush1.msra.mxu0 0.0
        %2569 = vmatprep.subr.mxu0 0.0
        %2570 = vmatpush1.msra.mxu0 0.0
        %2571 = vmatprep.subr.mxu0 0.0
        %2572 = vmatpush1.msra.mxu0 0.0
        %2573 = vmatprep.subr.mxu0 0.0
        %2574 = vmatpush1.msra.mxu0 0.0
        %2575 = vmatprep.subr.mxu0 0.0
        %2576 = vmatpush1.msra.mxu0 0.0
        %2577 = vmatprep.subr.mxu0 0.0
        %2578 = vmatpush1.msra.mxu0 0.0
        %2579 = vmatprep.subr.mxu0 0.0
        %2580 = vmatpush1.msra.mxu0 0.0
        %2581 = vmatprep.subr.mxu0 0.0
        %2582 = vmatpush1.msra.mxu0 0.0
        %2583 = vmatprep.subr.mxu0 0.0
        %2584 = vmatpush1.msra.mxu0 0.0
        %2585 = vmatprep.subr.mxu0 0.0
        %2586 = vmatpush1.msra.mxu0 0.0
        %2587 = vmatprep.subr.mxu0 0.0
        %2588 = vmatpush1.msra.mxu0 0.0
        %2589 = vmatprep.subr.mxu0 0.0
        %2590 = vmatpush1.msra.mxu0 0.0
        %2591 = vmatprep.subr.mxu0 0.0
        %2592 = vmatpush1.msra.mxu0 0.0
        %2593 = vmatprep.subr.mxu0 0.0
        %2594 = vmatpush1.msra.mxu0 0.0
        %2595 = vmatprep.subr.mxu0 0.0
        %2596 = vmatpush1.msra.mxu0 0.0
        %2597 = vmatprep.subr.mxu0 0.0
        %2598 = vmatpush1.msra.mxu0 0.0
        %2599 = vmatprep.mubr.f32.mxu0 0.0
        %2600 = vmatmul.mubr.f32.gmra.mrb[0].mxu0 %v2508
        %v2601 = vpop.f32.mrb[0].mxu0
        %v2602 = vadd.f32 0.0, %v2601
        %v2603 = vpop.f32.mrb[0].mxu0
        %2604 = vmatprep.mubr.f32.mxu0 0.0
        %2605 = vmatmul.mubr.f32.gmra.mrb[0].mxu0 %v2511
        %v2606 = vpop.f32.mrb[0].mxu0
        %v2607 = vadd.f32 0.0, %v2606
        %v2608 = vpop.f32.mrb[0].mxu0
        %2609 = vmatprep.mubr.f32.mxu0 0.0
        %2610 = vmatmul.mubr.f32.gmra.mrb[0].mxu0 %v2514
        %v2611 = vpop.f32.mrb[0].mxu0
        %v2612 = vadd.f32 0.0, %v2611
        %v2613 = vpop.f32.mrb[0].mxu0
        %2614 = vmatprep.mubr.f32.mxu0 0.0
        %2615 = vmatmul.mubr.f32.gmra.mrb[0].mxu0 %v2517
        %v2616 = vpop.f32.mrb[0].mxu0
        %v2617 = vadd.f32 0.0, %v2616
        %v2618 = vpop.f32.mrb[0].mxu0
        %2619 = vmatprep.mubr.f32.mxu0 0.0
        %2620 = vmatmul.mubr.f32.gmra.mrb[0].mxu0 %v2520
        %v2621 = vpop.f32.mrb[0].mxu0
        %v2622 = vadd.f32 0.0, %v2621
        %v2623 = vpop.f32.mrb[0].mxu0
        %2624 = vmatprep.mubr.f32.mxu0 0.0
        %2625 = vmatmul.mubr.f32.gmra.mrb[0].mxu0 %v2523
        %v2626 = vpop.f32.mrb[0].mxu0
        %v2627 = vadd.f32 0.0, %v2626
        %v2628 = vpop.f32.mrb[0].mxu0
        %2629 = vmatprep.mubr.f32.mxu0 0.0
        %2630 = vmatmul.mubr.f32.gmra.mrb[0].mxu0 %v2526
        %v2631 = vpop.f32.mrb[0].mxu0
        %v2632 = vadd.f32 0.0, %v2631
        %v2633 = vpop.f32.mrb[0].mxu0
        %2634 = vmatprep.mubr.f32.mxu0 0.0
        %2635 = vmatmul.mubr.f32.gmra.mrb[0].mxu0 %v2529
        %v2636 = vpop.f32.mrb[0].mxu0
        %v2637 = vadd.f32 0.0, %v2636
        %v2638 = vpop.f32.mrb[0].mxu0
        %2639 = vdwg.mxu0
        %2640 = vxpose.xlu0.b32.start [1/16] %v1839, 128
        %2641 = vxpose.xlu0.b32.cont [2/16] 0.0, 128
        %2642 = vxpose.xlu0.b32.cont [3/16] 0.0, 128
        %2643 = vxpose.xlu0.b32.cont [4/16] 0.0, 128
        %2644 = vxpose.xlu0.b32.cont [5/16] 0.0, 128
        %2645 = vxpose.xlu0.b32.cont [6/16] 0.0, 128
        %2646 = vxpose.xlu0.b32.cont [7/16] 0.0, 128
        %2647 = vxpose.xlu0.b32.cont [8/16] 0.0, 128
        %2648 = vxpose.xlu0.b32.cont [9/16] 0.0, 128
        %2649 = vxpose.xlu0.b32.cont [10/16] 0.0, 128
        %2650 = vxpose.xlu0.b32.cont [11/16] 0.0, 128
        %2651 = vxpose.xlu0.b32.cont [12/16] 0.0, 128
        %2652 = vxpose.xlu0.b32.cont [13/16] 0.0, 128
        %2653 = vxpose.xlu0.b32.cont [14/16] 0.0, 128
        %2654 = vxpose.xlu0.b32.cont [15/16] 0.0, 128
        %2655 = vxpose.xlu0.b32.end [16/16] 0.0, 128
        %v2656 = vpop.trf.xlu0
        %v2657 = vpop.trf.xlu0
        %v2658 = vpop.trf.xlu0
        %v2659 = vpop.trf.xlu0
        %v2660 = vpop.trf.xlu0
        %v2661 = vpop.trf.xlu0
        %v2662 = vpop.trf.xlu0
        %v2663 = vpop.trf.xlu0
        %v2664 = vpop.trf.xlu0
        %v2665 = vpop.trf.xlu0
        %v2666 = vpop.trf.xlu0
        %v2667 = vpop.trf.xlu0
        %v2668 = vpop.trf.xlu0
        %v2669 = vpop.trf.xlu0
        %v2670 = vpop.trf.xlu0
        %v2671 = vpop.trf.xlu0
        %v2673 = vsel %vm2506, %v2656, 0
        %v2676 = vsel %vm2506, %v2657, 0
        %v2679 = vsel %vm2506, %v2658, 0
        %v2682 = vsel %vm2506, %v2659, 0
        %v2685 = vsel %vm2506, %v2660, 0
        %v2688 = vsel %vm2506, %v2661, 0
        %v2691 = vsel %vm2506, %v2662, 0
        %v2694 = vsel %vm2506, %v2663, 0
        %v2697 = vsel %vm2531, %v2467, 0
        %2699 = vmatprep.subr.mxu0 0.0
        %2700 = vmatpush1.msra.mxu0 %v2697
        %2701 = vmatprep.subr.mxu0 0.0
        %2702 = vmatpush1.msra.mxu0 0.0
        %2703 = vmatprep.subr.mxu0 0.0
        %2704 = vmatpush1.msra.mxu0 0.0
        %2705 = vmatprep.subr.mxu0 0.0
        %2706 = vmatpush1.msra.mxu0 0.0
        %2707 = vmatprep.subr.mxu0 0.0
        %2708 = vmatpush1.msra.mxu0 0.0
        %2709 = vmatprep.subr.mxu0 0.0
        %2710 = vmatpush1.msra.mxu0 0.0
        %2711 = vmatprep.subr.mxu0 0.0
        %2712 = vmatpush1.msra.mxu0 0.0
        %2713 = vmatprep.subr.mxu0 0.0
        %2714 = vmatpush1.msra.mxu0 0.0
        %2715 = vmatprep.subr.mxu0 0.0
        %2716 = vmatpush1.msra.mxu0 0.0
        %2717 = vmatprep.subr.mxu0 0.0
        %2718 = vmatpush1.msra.mxu0 0.0
        %2719 = vmatprep.subr.mxu0 0.0
        %2720 = vmatpush1.msra.mxu0 0.0
        %2721 = vmatprep.subr.mxu0 0.0
        %2722 = vmatpush1.msra.mxu0 0.0
        %2723 = vmatprep.subr.mxu0 0.0
        %2724 = vmatpush1.msra.mxu0 0.0
        %2725 = vmatprep.subr.mxu0 0.0
        %2726 = vmatpush1.msra.mxu0 0.0
        %2727 = vmatprep.subr.mxu0 0.0
        %2728 = vmatpush1.msra.mxu0 0.0
        %2729 = vmatprep.subr.mxu0 0.0
        %2730 = vmatpush1.msra.mxu0 0.0
        %2731 = vmatprep.subr.mxu0 0.0
        %2732 = vmatpush1.msra.mxu0 0.0
        %2733 = vmatprep.subr.mxu0 0.0
        %2734 = vmatpush1.msra.mxu0 0.0
        %2735 = vmatprep.subr.mxu0 0.0
        %2736 = vmatpush1.msra.mxu0 0.0
        %2737 = vmatprep.subr.mxu0 0.0
        %2738 = vmatpush1.msra.mxu0 0.0
        %2739 = vmatprep.subr.mxu0 0.0
        %2740 = vmatpush1.msra.mxu0 0.0
        %2741 = vmatprep.subr.mxu0 0.0
        %2742 = vmatpush1.msra.mxu0 0.0
        %2743 = vmatprep.subr.mxu0 0.0
        %2744 = vmatpush1.msra.mxu0 0.0
        %2745 = vmatprep.subr.mxu0 0.0
        %2746 = vmatpush1.msra.mxu0 0.0
        %2747 = vmatprep.subr.mxu0 0.0
        %2748 = vmatpush1.msra.mxu0 0.0
        %2749 = vmatprep.subr.mxu0 0.0
        %2750 = vmatpush1.msra.mxu0 0.0
        %2751 = vmatprep.subr.mxu0 0.0
        %2752 = vmatpush1.msra.mxu0 0.0
        %2753 = vmatprep.subr.mxu0 0.0
        %2754 = vmatpush1.msra.mxu0 0.0
        %2755 = vmatprep.subr.mxu0 0.0
        %2756 = vmatpush1.msra.mxu0 0.0
        %2757 = vmatprep.subr.mxu0 0.0
        %2758 = vmatpush1.msra.mxu0 0.0
        %2759 = vmatprep.subr.mxu0 0.0
        %2760 = vmatpush1.msra.mxu0 0.0
        %2761 = vmatprep.subr.mxu0 0.0
        %2762 = vmatpush1.msra.mxu0 0.0
        %2763 = vmatprep.mubr.f32.mxu0 0.0
        %2764 = vmatmul.mubr.f32.gmra.mrb[0].mxu0 %v2673
        %v2765 = vpop.f32.mrb[0].mxu0
        %v2766 = vadd.f32 0.0, %v2765
        %v2767 = vpop.f32.mrb[0].mxu0
        %2768 = vmatprep.mubr.f32.mxu0 0.0
        %2769 = vmatmul.mubr.f32.gmra.mrb[0].mxu0 %v2676
        %v2770 = vpop.f32.mrb[0].mxu0
        %v2771 = vadd.f32 0.0, %v2770
        %v2772 = vpop.f32.mrb[0].mxu0
        %2773 = vmatprep.mubr.f32.mxu0 0.0
        %2774 = vmatmul.mubr.f32.gmra.mrb[0].mxu0 %v2679
        %v2775 = vpop.f32.mrb[0].mxu0
        %v2776 = vadd.f32 0.0, %v2775
        %v2777 = vpop.f32.mrb[0].mxu0
        %2778 = vmatprep.mubr.f32.mxu0 0.0
        %2779 = vmatmul.mubr.f32.gmra.mrb[0].mxu0 %v2682
        %v2780 = vpop.f32.mrb[0].mxu0
        %v2781 = vadd.f32 0.0, %v2780
        %v2782 = vpop.f32.mrb[0].mxu0
        %2783 = vmatprep.mubr.f32.mxu0 0.0
        %2784 = vmatmul.mubr.f32.gmra.mrb[0].mxu0 %v2685
        %v2785 = vpop.f32.mrb[0].mxu0
        %v2786 = vadd.f32 0.0, %v2785
        %v2787 = vpop.f32.mrb[0].mxu0
        %2788 = vmatprep.mubr.f32.mxu0 0.0
        %2789 = vmatmul.mubr.f32.gmra.mrb[0].mxu0 %v2688
        %v2790 = vpop.f32.mrb[0].mxu0
        %v2791 = vadd.f32 0.0, %v2790
        %v2792 = vpop.f32.mrb[0].mxu0
        %2793 = vmatprep.mubr.f32.mxu0 0.0
        %2794 = vmatmul.mubr.f32.gmra.mrb[0].mxu0 %v2691
        %v2795 = vpop.f32.mrb[0].mxu0
        %v2796 = vadd.f32 0.0, %v2795
        %v2797 = vpop.f32.mrb[0].mxu0
        %2798 = vmatprep.mubr.f32.mxu0 0.0
        %2799 = vmatmul.mubr.f32.gmra.mrb[0].mxu0 %v2694
        %v2800 = vpop.f32.mrb[0].mxu0
        %v2801 = vadd.f32 0.0, %v2800
        %v2802 = vpop.f32.mrb[0].mxu0
        %2803 = vdwg.mxu0
        %2804 = vxpose.xlu0.b32.start [1/16] %v1840, 128
        %2805 = vxpose.xlu0.b32.cont [2/16] 0.0, 128
        %2806 = vxpose.xlu0.b32.cont [3/16] 0.0, 128
        %2807 = vxpose.xlu0.b32.cont [4/16] 0.0, 128
        %2808 = vxpose.xlu0.b32.cont [5/16] 0.0, 128
        %2809 = vxpose.xlu0.b32.cont [6/16] 0.0, 128
        %2810 = vxpose.xlu0.b32.cont [7/16] 0.0, 128
        %2811 = vxpose.xlu0.b32.cont [8/16] 0.0, 128
        %2812 = vxpose.xlu0.b32.cont [9/16] 0.0, 128
        %2813 = vxpose.xlu0.b32.cont [10/16] 0.0, 128
        %2814 = vxpose.xlu0.b32.cont [11/16] 0.0, 128
        %2815 = vxpose.xlu0.b32.cont [12/16] 0.0, 128
        %2816 = vxpose.xlu0.b32.cont [13/16] 0.0, 128
        %2817 = vxpose.xlu0.b32.cont [14/16] 0.0, 128
        %2818 = vxpose.xlu0.b32.cont [15/16] 0.0, 128
        %2819 = vxpose.xlu0.b32.end [16/16] 0.0, 128
        %v2820 = vpop.trf.xlu0
        %v2821 = vpop.trf.xlu0
        %v2822 = vpop.trf.xlu0
        %v2823 = vpop.trf.xlu0
        %v2824 = vpop.trf.xlu0
        %v2825 = vpop.trf.xlu0
        %v2826 = vpop.trf.xlu0
        %v2827 = vpop.trf.xlu0
        %v2828 = vpop.trf.xlu0
        %v2829 = vpop.trf.xlu0
        %v2830 = vpop.trf.xlu0
        %v2831 = vpop.trf.xlu0
        %v2832 = vpop.trf.xlu0
        %v2833 = vpop.trf.xlu0
        %v2834 = vpop.trf.xlu0
        %v2835 = vpop.trf.xlu0
        %v2837 = vsel %vm2506, %v2820, 0
        %v2840 = vsel %vm2506, %v2821, 0
        %v2843 = vsel %vm2506, %v2822, 0
        %v2846 = vsel %vm2506, %v2823, 0
        %v2849 = vsel %vm2506, %v2824, 0
        %v2852 = vsel %vm2506, %v2825, 0
        %v2855 = vsel %vm2506, %v2826, 0
        %v2858 = vsel %vm2506, %v2827, 0
        %v2861 = vsel %vm2531, %v2468, 0
        %2863 = vmatprep.subr.mxu0 0.0
        %2864 = vmatpush1.msra.mxu0 %v2861
        %2865 = vmatprep.subr.mxu0 0.0
        %2866 = vmatpush1.msra.mxu0 0.0
        %2867 = vmatprep.subr.mxu0 0.0
        %2868 = vmatpush1.msra.mxu0 0.0
        %2869 = vmatprep.subr.mxu0 0.0
        %2870 = vmatpush1.msra.mxu0 0.0
        %2871 = vmatprep.subr.mxu0 0.0
        %2872 = vmatpush1.msra.mxu0 0.0
        %2873 = vmatprep.subr.mxu0 0.0
        %2874 = vmatpush1.msra.mxu0 0.0
        %2875 = vmatprep.subr.mxu0 0.0
        %2876 = vmatpush1.msra.mxu0 0.0
        %2877 = vmatprep.subr.mxu0 0.0
        %2878 = vmatpush1.msra.mxu0 0.0
        %2879 = vmatprep.subr.mxu0 0.0
        %2880 = vmatpush1.msra.mxu0 0.0
        %2881 = vmatprep.subr.mxu0 0.0
        %2882 = vmatpush1.msra.mxu0 0.0
        %2883 = vmatprep.subr.mxu0 0.0
        %2884 = vmatpush1.msra.mxu0 0.0
        %2885 = vmatprep.subr.mxu0 0.0
        %2886 = vmatpush1.msra.mxu0 0.0
        %2887 = vmatprep.subr.mxu0 0.0
        %2888 = vmatpush1.msra.mxu0 0.0
        %2889 = vmatprep.subr.mxu0 0.0
        %2890 = vmatpush1.msra.mxu0 0.0
        %2891 = vmatprep.subr.mxu0 0.0
        %2892 = vmatpush1.msra.mxu0 0.0
        %2893 = vmatprep.subr.mxu0 0.0
        %2894 = vmatpush1.msra.mxu0 0.0
        %2895 = vmatprep.subr.mxu0 0.0
        %2896 = vmatpush1.msra.mxu0 0.0
        %2897 = vmatprep.subr.mxu0 0.0
        %2898 = vmatpush1.msra.mxu0 0.0
        %2899 = vmatprep.subr.mxu0 0.0
        %2900 = vmatpush1.msra.mxu0 0.0
        %2901 = vmatprep.subr.mxu0 0.0
        %2902 = vmatpush1.msra.mxu0 0.0
        %2903 = vmatprep.subr.mxu0 0.0
        %2904 = vmatpush1.msra.mxu0 0.0
        %2905 = vmatprep.subr.mxu0 0.0
        %2906 = vmatpush1.msra.mxu0 0.0
        %2907 = vmatprep.subr.mxu0 0.0
        %2908 = vmatpush1.msra.mxu0 0.0
        %2909 = vmatprep.subr.mxu0 0.0
        %2910 = vmatpush1.msra.mxu0 0.0
        %2911 = vmatprep.subr.mxu0 0.0
        %2912 = vmatpush1.msra.mxu0 0.0
        %2913 = vmatprep.subr.mxu0 0.0
        %2914 = vmatpush1.msra.mxu0 0.0
        %2915 = vmatprep.subr.mxu0 0.0
        %2916 = vmatpush1.msra.mxu0 0.0
        %2917 = vmatprep.subr.mxu0 0.0
        %2918 = vmatpush1.msra.mxu0 0.0
        %2919 = vmatprep.subr.mxu0 0.0
        %2920 = vmatpush1.msra.mxu0 0.0
        %2921 = vmatprep.subr.mxu0 0.0
        %2922 = vmatpush1.msra.mxu0 0.0
        %2923 = vmatprep.subr.mxu0 0.0
        %2924 = vmatpush1.msra.mxu0 0.0
        %2925 = vmatprep.subr.mxu0 0.0
        %2926 = vmatpush1.msra.mxu0 0.0
        %2927 = vmatprep.mubr.f32.mxu0 0.0
        %2928 = vmatmul.mubr.f32.gmra.mrb[0].mxu0 %v2837
        %v2929 = vpop.f32.mrb[0].mxu0
        %v2930 = vadd.f32 0.0, %v2929
        %v2931 = vpop.f32.mrb[0].mxu0
        %2932 = vmatprep.mubr.f32.mxu0 0.0
        %2933 = vmatmul.mubr.f32.gmra.mrb[0].mxu0 %v2840
        %v2934 = vpop.f32.mrb[0].mxu0
        %v2935 = vadd.f32 0.0, %v2934
        %v2936 = vpop.f32.mrb[0].mxu0
        %2937 = vmatprep.mubr.f32.mxu0 0.0
        %2938 = vmatmul.mubr.f32.gmra.mrb[0].mxu0 %v2843
        %v2939 = vpop.f32.mrb[0].mxu0
        %v2940 = vadd.f32 0.0, %v2939
        %v2941 = vpop.f32.mrb[0].mxu0
        %2942 = vmatprep.mubr.f32.mxu0 0.0
        %2943 = vmatmul.mubr.f32.gmra.mrb[0].mxu0 %v2846
        %v2944 = vpop.f32.mrb[0].mxu0
        %v2945 = vadd.f32 0.0, %v2944
        %v2946 = vpop.f32.mrb[0].mxu0
        %2947 = vmatprep.mubr.f32.mxu0 0.0
        %2948 = vmatmul.mubr.f32.gmra.mrb[0].mxu0 %v2849
        %v2949 = vpop.f32.mrb[0].mxu0
        %v2950 = vadd.f32 0.0, %v2949
        %v2951 = vpop.f32.mrb[0].mxu0
        %2952 = vmatprep.mubr.f32.mxu0 0.0
        %2953 = vmatmul.mubr.f32.gmra.mrb[0].mxu0 %v2852
        %v2954 = vpop.f32.mrb[0].mxu0
        %v2955 = vadd.f32 0.0, %v2954
        %v2956 = vpop.f32.mrb[0].mxu0
        %2957 = vmatprep.mubr.f32.mxu0 0.0
        %2958 = vmatmul.mubr.f32.gmra.mrb[0].mxu0 %v2855
        %v2959 = vpop.f32.mrb[0].mxu0
        %v2960 = vadd.f32 0.0, %v2959
        %v2961 = vpop.f32.mrb[0].mxu0
        %2962 = vmatprep.mubr.f32.mxu0 0.0
        %2963 = vmatmul.mubr.f32.gmra.mrb[0].mxu0 %v2858
        %v2964 = vpop.f32.mrb[0].mxu0
        %v2965 = vadd.f32 0.0, %v2964
        %v2966 = vpop.f32.mrb[0].mxu0
        %2967 = vdwg.mxu0
        %2968 = vxpose.xlu0.b32.start [1/16] %v1841, 128
        %2969 = vxpose.xlu0.b32.cont [2/16] 0.0, 128
        %2970 = vxpose.xlu0.b32.cont [3/16] 0.0, 128
        %2971 = vxpose.xlu0.b32.cont [4/16] 0.0, 128
        %2972 = vxpose.xlu0.b32.cont [5/16] 0.0, 128
        %2973 = vxpose.xlu0.b32.cont [6/16] 0.0, 128
        %2974 = vxpose.xlu0.b32.cont [7/16] 0.0, 128
        %2975 = vxpose.xlu0.b32.cont [8/16] 0.0, 128
        %2976 = vxpose.xlu0.b32.cont [9/16] 0.0, 128
        %2977 = vxpose.xlu0.b32.cont [10/16] 0.0, 128
        %2978 = vxpose.xlu0.b32.cont [11/16] 0.0, 128
        %2979 = vxpose.xlu0.b32.cont [12/16] 0.0, 128
        %2980 = vxpose.xlu0.b32.cont [13/16] 0.0, 128
        %2981 = vxpose.xlu0.b32.cont [14/16] 0.0, 128
        %2982 = vxpose.xlu0.b32.cont [15/16] 0.0, 128
        %2983 = vxpose.xlu0.b32.end [16/16] 0.0, 128
        %v2984 = vpop.trf.xlu0
        %v2985 = vpop.trf.xlu0
        %v2986 = vpop.trf.xlu0
        %v2987 = vpop.trf.xlu0
        %v2988 = vpop.trf.xlu0
        %v2989 = vpop.trf.xlu0
        %v2990 = vpop.trf.xlu0
        %v2991 = vpop.trf.xlu0
        %v2992 = vpop.trf.xlu0
        %v2993 = vpop.trf.xlu0
        %v2994 = vpop.trf.xlu0
        %v2995 = vpop.trf.xlu0
        %v2996 = vpop.trf.xlu0
        %v2997 = vpop.trf.xlu0
        %v2998 = vpop.trf.xlu0
        %v2999 = vpop.trf.xlu0
        %v3001 = vsel %vm2506, %v2984, 0
        %v3004 = vsel %vm2506, %v2985, 0
        %v3007 = vsel %vm2506, %v2986, 0
        %v3010 = vsel %vm2506, %v2987, 0
        %v3013 = vsel %vm2506, %v2988, 0
        %v3016 = vsel %vm2506, %v2989, 0
        %v3019 = vsel %vm2506, %v2990, 0
        %v3022 = vsel %vm2506, %v2991, 0
        %v3025 = vsel %vm2531, %v2469, 0
        %3027 = vmatprep.subr.mxu0 0.0
        %3028 = vmatpush1.msra.mxu0 %v3025
        %3029 = vmatprep.subr.mxu0 0.0
        %3030 = vmatpush1.msra.mxu0 0.0
        %3031 = vmatprep.subr.mxu0 0.0
        %3032 = vmatpush1.msra.mxu0 0.0
        %3033 = vmatprep.subr.mxu0 0.0
        %3034 = vmatpush1.msra.mxu0 0.0
        %3035 = vmatprep.subr.mxu0 0.0
        %3036 = vmatpush1.msra.mxu0 0.0
        %3037 = vmatprep.subr.mxu0 0.0
        %3038 = vmatpush1.msra.mxu0 0.0
        %3039 = vmatprep.subr.mxu0 0.0
        %3040 = vmatpush1.msra.mxu0 0.0
        %3041 = vmatprep.subr.mxu0 0.0
        %3042 = vmatpush1.msra.mxu0 0.0
        %3043 = vmatprep.subr.mxu0 0.0
        %3044 = vmatpush1.msra.mxu0 0.0
        %3045 = vmatprep.subr.mxu0 0.0
        %3046 = vmatpush1.msra.mxu0 0.0
        %3047 = vmatprep.subr.mxu0 0.0
        %3048 = vmatpush1.msra.mxu0 0.0
        %3049 = vmatprep.subr.mxu0 0.0
        %3050 = vmatpush1.msra.mxu0 0.0
        %3051 = vmatprep.subr.mxu0 0.0
        %3052 = vmatpush1.msra.mxu0 0.0
        %3053 = vmatprep.subr.mxu0 0.0
        %3054 = vmatpush1.msra.mxu0 0.0
        %3055 = vmatprep.subr.mxu0 0.0
        %3056 = vmatpush1.msra.mxu0 0.0
        %3057 = vmatprep.subr.mxu0 0.0
        %3058 = vmatpush1.msra.mxu0 0.0
        %3059 = vmatprep.subr.mxu0 0.0
        %3060 = vmatpush1.msra.mxu0 0.0
        %3061 = vmatprep.subr.mxu0 0.0
        %3062 = vmatpush1.msra.mxu0 0.0
        %3063 = vmatprep.subr.mxu0 0.0
        %3064 = vmatpush1.msra.mxu0 0.0
        %3065 = vmatprep.subr.mxu0 0.0
        %3066 = vmatpush1.msra.mxu0 0.0
        %3067 = vmatprep.subr.mxu0 0.0
        %3068 = vmatpush1.msra.mxu0 0.0
        %3069 = vmatprep.subr.mxu0 0.0
        %3070 = vmatpush1.msra.mxu0 0.0
        %3071 = vmatprep.subr.mxu0 0.0
        %3072 = vmatpush1.msra.mxu0 0.0
        %3073 = vmatprep.subr.mxu0 0.0
        %3074 = vmatpush1.msra.mxu0 0.0
        %3075 = vmatprep.subr.mxu0 0.0
        %3076 = vmatpush1.msra.mxu0 0.0
        %3077 = vmatprep.subr.mxu0 0.0
        %3078 = vmatpush1.msra.mxu0 0.0
        %3079 = vmatprep.subr.mxu0 0.0
        %3080 = vmatpush1.msra.mxu0 0.0
        %3081 = vmatprep.subr.mxu0 0.0
        %3082 = vmatpush1.msra.mxu0 0.0
        %3083 = vmatprep.subr.mxu0 0.0
        %3084 = vmatpush1.msra.mxu0 0.0
        %3085 = vmatprep.subr.mxu0 0.0
        %3086 = vmatpush1.msra.mxu0 0.0
        %3087 = vmatprep.subr.mxu0 0.0
        %3088 = vmatpush1.msra.mxu0 0.0
        %3089 = vmatprep.subr.mxu0 0.0
        %3090 = vmatpush1.msra.mxu0 0.0
        %3091 = vmatprep.mubr.f32.mxu0 0.0
        %3092 = vmatmul.mubr.f32.gmra.mrb[0].mxu0 %v3001
        %v3093 = vpop.f32.mrb[0].mxu0
        %v3094 = vadd.f32 0.0, %v3093
        %v3095 = vpop.f32.mrb[0].mxu0
        %3096 = vmatprep.mubr.f32.mxu0 0.0
        %3097 = vmatmul.mubr.f32.gmra.mrb[0].mxu0 %v3004
        %v3098 = vpop.f32.mrb[0].mxu0
        %v3099 = vadd.f32 0.0, %v3098
        %v3100 = vpop.f32.mrb[0].mxu0
        %3101 = vmatprep.mubr.f32.mxu0 0.0
        %3102 = vmatmul.mubr.f32.gmra.mrb[0].mxu0 %v3007
        %v3103 = vpop.f32.mrb[0].mxu0
        %v3104 = vadd.f32 0.0, %v3103
        %v3105 = vpop.f32.mrb[0].mxu0
        %3106 = vmatprep.mubr.f32.mxu0 0.0
        %3107 = vmatmul.mubr.f32.gmra.mrb[0].mxu0 %v3010
        %v3108 = vpop.f32.mrb[0].mxu0
        %v3109 = vadd.f32 0.0, %v3108
        %v3110 = vpop.f32.mrb[0].mxu0
        %3111 = vmatprep.mubr.f32.mxu0 0.0
        %3112 = vmatmul.mubr.f32.gmra.mrb[0].mxu0 %v3013
        %v3113 = vpop.f32.mrb[0].mxu0
        %v3114 = vadd.f32 0.0, %v3113
        %v3115 = vpop.f32.mrb[0].mxu0
        %3116 = vmatprep.mubr.f32.mxu0 0.0
        %3117 = vmatmul.mubr.f32.gmra.mrb[0].mxu0 %v3016
        %v3118 = vpop.f32.mrb[0].mxu0
        %v3119 = vadd.f32 0.0, %v3118
        %v3120 = vpop.f32.mrb[0].mxu0
        %3121 = vmatprep.mubr.f32.mxu0 0.0
        %3122 = vmatmul.mubr.f32.gmra.mrb[0].mxu0 %v3019
        %v3123 = vpop.f32.mrb[0].mxu0
        %v3124 = vadd.f32 0.0, %v3123
        %v3125 = vpop.f32.mrb[0].mxu0
        %3126 = vmatprep.mubr.f32.mxu0 0.0
        %3127 = vmatmul.mubr.f32.gmra.mrb[0].mxu0 %v3022
        %v3128 = vpop.f32.mrb[0].mxu0
        %v3129 = vadd.f32 0.0, %v3128
        %v3130 = vpop.f32.mrb[0].mxu0
        %3131 = vdwg.mxu0
        %3132 = vxpose.xlu0.b32.start [1/16] %v1842, 128
        %3133 = vxpose.xlu0.b32.cont [2/16] 0.0, 128
        %3134 = vxpose.xlu0.b32.cont [3/16] 0.0, 128
        %3135 = vxpose.xlu0.b32.cont [4/16] 0.0, 128
        %3136 = vxpose.xlu0.b32.cont [5/16] 0.0, 128
        %3137 = vxpose.xlu0.b32.cont [6/16] 0.0, 128
        %3138 = vxpose.xlu0.b32.cont [7/16] 0.0, 128
        %3139 = vxpose.xlu0.b32.cont [8/16] 0.0, 128
        %3140 = vxpose.xlu0.b32.cont [9/16] 0.0, 128
        %3141 = vxpose.xlu0.b32.cont [10/16] 0.0, 128
        %3142 = vxpose.xlu0.b32.cont [11/16] 0.0, 128
        %3143 = vxpose.xlu0.b32.cont [12/16] 0.0, 128
        %3144 = vxpose.xlu0.b32.cont [13/16] 0.0, 128
        %3145 = vxpose.xlu0.b32.cont [14/16] 0.0, 128
        %3146 = vxpose.xlu0.b32.cont [15/16] 0.0, 128
        %3147 = vxpose.xlu0.b32.end [16/16] 0.0, 128
        %v3148 = vpop.trf.xlu0
        %v3149 = vpop.trf.xlu0
        %v3150 = vpop.trf.xlu0
        %v3151 = vpop.trf.xlu0
        %v3152 = vpop.trf.xlu0
        %v3153 = vpop.trf.xlu0
        %v3154 = vpop.trf.xlu0
        %v3155 = vpop.trf.xlu0
        %v3156 = vpop.trf.xlu0
        %v3157 = vpop.trf.xlu0
        %v3158 = vpop.trf.xlu0
        %v3159 = vpop.trf.xlu0
        %v3160 = vpop.trf.xlu0
        %v3161 = vpop.trf.xlu0
        %v3162 = vpop.trf.xlu0
        %v3163 = vpop.trf.xlu0
        %v3165 = vsel %vm2506, %v3148, 0
        %v3168 = vsel %vm2506, %v3149, 0
        %v3171 = vsel %vm2506, %v3150, 0
        %v3174 = vsel %vm2506, %v3151, 0
        %v3177 = vsel %vm2506, %v3152, 0
        %v3180 = vsel %vm2506, %v3153, 0
        %v3183 = vsel %vm2506, %v3154, 0
        %v3186 = vsel %vm2506, %v3155, 0
        %v3189 = vsel %vm2531, %v2470, 0
        %3191 = vmatprep.subr.mxu0 0.0
        %3192 = vmatpush1.msra.mxu0 %v3189
        %3193 = vmatprep.subr.mxu0 0.0
        %3194 = vmatpush1.msra.mxu0 0.0
        %3195 = vmatprep.subr.mxu0 0.0
        %3196 = vmatpush1.msra.mxu0 0.0
        %3197 = vmatprep.subr.mxu0 0.0
        %3198 = vmatpush1.msra.mxu0 0.0
        %3199 = vmatprep.subr.mxu0 0.0
        %3200 = vmatpush1.msra.mxu0 0.0
        %3201 = vmatprep.subr.mxu0 0.0
        %3202 = vmatpush1.msra.mxu0 0.0
        %3203 = vmatprep.subr.mxu0 0.0
        %3204 = vmatpush1.msra.mxu0 0.0
        %3205 = vmatprep.subr.mxu0 0.0
        %3206 = vmatpush1.msra.mxu0 0.0
        %3207 = vmatprep.subr.mxu0 0.0
        %3208 = vmatpush1.msra.mxu0 0.0
        %3209 = vmatprep.subr.mxu0 0.0
        %3210 = vmatpush1.msra.mxu0 0.0
        %3211 = vmatprep.subr.mxu0 0.0
        %3212 = vmatpush1.msra.mxu0 0.0
        %3213 = vmatprep.subr.mxu0 0.0
        %3214 = vmatpush1.msra.mxu0 0.0
        %3215 = vmatprep.subr.mxu0 0.0
        %3216 = vmatpush1.msra.mxu0 0.0
        %3217 = vmatprep.subr.mxu0 0.0
        %3218 = vmatpush1.msra.mxu0 0.0
        %3219 = vmatprep.subr.mxu0 0.0
        %3220 = vmatpush1.msra.mxu0 0.0
        %3221 = vmatprep.subr.mxu0 0.0
        %3222 = vmatpush1.msra.mxu0 0.0
        %3223 = vmatprep.subr.mxu0 0.0
        %3224 = vmatpush1.msra.mxu0 0.0
        %3225 = vmatprep.subr.mxu0 0.0
        %3226 = vmatpush1.msra.mxu0 0.0
        %3227 = vmatprep.subr.mxu0 0.0
        %3228 = vmatpush1.msra.mxu0 0.0
        %3229 = vmatprep.subr.mxu0 0.0
        %3230 = vmatpush1.msra.mxu0 0.0
        %3231 = vmatprep.subr.mxu0 0.0
        %3232 = vmatpush1.msra.mxu0 0.0
        %3233 = vmatprep.subr.mxu0 0.0
        %3234 = vmatpush1.msra.mxu0 0.0
        %3235 = vmatprep.subr.mxu0 0.0
        %3236 = vmatpush1.msra.mxu0 0.0
        %3237 = vmatprep.subr.mxu0 0.0
        %3238 = vmatpush1.msra.mxu0 0.0
        %3239 = vmatprep.subr.mxu0 0.0
        %3240 = vmatpush1.msra.mxu0 0.0
        %3241 = vmatprep.subr.mxu0 0.0
        %3242 = vmatpush1.msra.mxu0 0.0
        %3243 = vmatprep.subr.mxu0 0.0
        %3244 = vmatpush1.msra.mxu0 0.0
        %3245 = vmatprep.subr.mxu0 0.0
        %3246 = vmatpush1.msra.mxu0 0.0
        %3247 = vmatprep.subr.mxu0 0.0
        %3248 = vmatpush1.msra.mxu0 0.0
        %3249 = vmatprep.subr.mxu0 0.0
        %3250 = vmatpush1.msra.mxu0 0.0
        %3251 = vmatprep.subr.mxu0 0.0
        %3252 = vmatpush1.msra.mxu0 0.0
        %3253 = vmatprep.subr.mxu0 0.0
        %3254 = vmatpush1.msra.mxu0 0.0
        %3255 = vmatprep.mubr.f32.mxu0 0.0
        %3256 = vmatmul.mubr.f32.gmra.mrb[0].mxu0 %v3165
        %v3257 = vpop.f32.mrb[0].mxu0
        %v3258 = vadd.f32 0.0, %v3257
        %v3259 = vpop.f32.mrb[0].mxu0
        %3260 = vmatprep.mubr.f32.mxu0 0.0
        %3261 = vmatmul.mubr.f32.gmra.mrb[0].mxu0 %v3168
        %v3262 = vpop.f32.mrb[0].mxu0
        %v3263 = vadd.f32 0.0, %v3262
        %v3264 = vpop.f32.mrb[0].mxu0
        %3265 = vmatprep.mubr.f32.mxu0 0.0
        %3266 = vmatmul.mubr.f32.gmra.mrb[0].mxu0 %v3171
        %v3267 = vpop.f32.mrb[0].mxu0
        %v3268 = vadd.f32 0.0, %v3267
        %v3269 = vpop.f32.mrb[0].mxu0
        %3270 = vmatprep.mubr.f32.mxu0 0.0
        %3271 = vmatmul.mubr.f32.gmra.mrb[0].mxu0 %v3174
        %v3272 = vpop.f32.mrb[0].mxu0
        %v3273 = vadd.f32 0.0, %v3272
        %v3274 = vpop.f32.mrb[0].mxu0
        %3275 = vmatprep.mubr.f32.mxu0 0.0
        %3276 = vmatmul.mubr.f32.gmra.mrb[0].mxu0 %v3177
        %v3277 = vpop.f32.mrb[0].mxu0
        %v3278 = vadd.f32 0.0, %v3277
        %v3279 = vpop.f32.mrb[0].mxu0
        %3280 = vmatprep.mubr.f32.mxu0 0.0
        %3281 = vmatmul.mubr.f32.gmra.mrb[0].mxu0 %v3180
        %v3282 = vpop.f32.mrb[0].mxu0
        %v3283 = vadd.f32 0.0, %v3282
        %v3284 = vpop.f32.mrb[0].mxu0
        %3285 = vmatprep.mubr.f32.mxu0 0.0
        %3286 = vmatmul.mubr.f32.gmra.mrb[0].mxu0 %v3183
        %v3287 = vpop.f32.mrb[0].mxu0
        %v3288 = vadd.f32 0.0, %v3287
        %v3289 = vpop.f32.mrb[0].mxu0
        %3290 = vmatprep.mubr.f32.mxu0 0.0
        %3291 = vmatmul.mubr.f32.gmra.mrb[0].mxu0 %v3186
        %v3292 = vpop.f32.mrb[0].mxu0
        %v3293 = vadd.f32 0.0, %v3292
        %v3294 = vpop.f32.mrb[0].mxu0
        %3295 = vdwg.mxu0
        %3296 = vxpose.xlu0.b32.start [1/16] %v1843, 128
        %3297 = vxpose.xlu0.b32.cont [2/16] 0.0, 128
        %3298 = vxpose.xlu0.b32.cont [3/16] 0.0, 128
        %3299 = vxpose.xlu0.b32.cont [4/16] 0.0, 128
        %3300 = vxpose.xlu0.b32.cont [5/16] 0.0, 128
        %3301 = vxpose.xlu0.b32.cont [6/16] 0.0, 128
        %3302 = vxpose.xlu0.b32.cont [7/16] 0.0, 128
        %3303 = vxpose.xlu0.b32.cont [8/16] 0.0, 128
        %3304 = vxpose.xlu0.b32.cont [9/16] 0.0, 128
        %3305 = vxpose.xlu0.b32.cont [10/16] 0.0, 128
        %3306 = vxpose.xlu0.b32.cont [11/16] 0.0, 128
        %3307 = vxpose.xlu0.b32.cont [12/16] 0.0, 128
        %3308 = vxpose.xlu0.b32.cont [13/16] 0.0, 128
        %3309 = vxpose.xlu0.b32.cont [14/16] 0.0, 128
        %3310 = vxpose.xlu0.b32.cont [15/16] 0.0, 128
        %3311 = vxpose.xlu0.b32.end [16/16] 0.0, 128
        %v3312 = vpop.trf.xlu0
        %v3313 = vpop.trf.xlu0
        %v3314 = vpop.trf.xlu0
        %v3315 = vpop.trf.xlu0
        %v3316 = vpop.trf.xlu0
        %v3317 = vpop.trf.xlu0
        %v3318 = vpop.trf.xlu0
        %v3319 = vpop.trf.xlu0
        %v3320 = vpop.trf.xlu0
        %v3321 = vpop.trf.xlu0
        %v3322 = vpop.trf.xlu0
        %v3323 = vpop.trf.xlu0
        %v3324 = vpop.trf.xlu0
        %v3325 = vpop.trf.xlu0
        %v3326 = vpop.trf.xlu0
        %v3327 = vpop.trf.xlu0
        %v3329 = vsel %vm2506, %v3312, 0
        %v3332 = vsel %vm2506, %v3313, 0
        %v3335 = vsel %vm2506, %v3314, 0
        %v3338 = vsel %vm2506, %v3315, 0
        %v3341 = vsel %vm2506, %v3316, 0
        %v3344 = vsel %vm2506, %v3317, 0
        %v3347 = vsel %vm2506, %v3318, 0
        %v3350 = vsel %vm2506, %v3319, 0
        %v3353 = vsel %vm2531, %v2471, 0
        %3355 = vmatprep.subr.mxu0 0.0
        %3356 = vmatpush1.msra.mxu0 %v3353
        %3357 = vmatprep.subr.mxu0 0.0
        %3358 = vmatpush1.msra.mxu0 0.0
        %3359 = vmatprep.subr.mxu0 0.0
        %3360 = vmatpush1.msra.mxu0 0.0
        %3361 = vmatprep.subr.mxu0 0.0
        %3362 = vmatpush1.msra.mxu0 0.0
        %3363 = vmatprep.subr.mxu0 0.0
        %3364 = vmatpush1.msra.mxu0 0.0
        %3365 = vmatprep.subr.mxu0 0.0
        %3366 = vmatpush1.msra.mxu0 0.0
        %3367 = vmatprep.subr.mxu0 0.0
        %3368 = vmatpush1.msra.mxu0 0.0
        %3369 = vmatprep.subr.mxu0 0.0
        %3370 = vmatpush1.msra.mxu0 0.0
        %3371 = vmatprep.subr.mxu0 0.0
        %3372 = vmatpush1.msra.mxu0 0.0
        %3373 = vmatprep.subr.mxu0 0.0
        %3374 = vmatpush1.msra.mxu0 0.0
        %3375 = vmatprep.subr.mxu0 0.0
        %3376 = vmatpush1.msra.mxu0 0.0
        %3377 = vmatprep.subr.mxu0 0.0
        %3378 = vmatpush1.msra.mxu0 0.0
        %3379 = vmatprep.subr.mxu0 0.0
        %3380 = vmatpush1.msra.mxu0 0.0
        %3381 = vmatprep.subr.mxu0 0.0
        %3382 = vmatpush1.msra.mxu0 0.0
        %3383 = vmatprep.subr.mxu0 0.0
        %3384 = vmatpush1.msra.mxu0 0.0
        %3385 = vmatprep.subr.mxu0 0.0
        %3386 = vmatpush1.msra.mxu0 0.0
        %3387 = vmatprep.subr.mxu0 0.0
        %3388 = vmatpush1.msra.mxu0 0.0
        %3389 = vmatprep.subr.mxu0 0.0
        %3390 = vmatpush1.msra.mxu0 0.0
        %3391 = vmatprep.subr.mxu0 0.0
        %3392 = vmatpush1.msra.mxu0 0.0
        %3393 = vmatprep.subr.mxu0 0.0
        %3394 = vmatpush1.msra.mxu0 0.0
        %3395 = vmatprep.subr.mxu0 0.0
        %3396 = vmatpush1.msra.mxu0 0.0
        %3397 = vmatprep.subr.mxu0 0.0
        %3398 = vmatpush1.msra.mxu0 0.0
        %3399 = vmatprep.subr.mxu0 0.0
        %3400 = vmatpush1.msra.mxu0 0.0
        %3401 = vmatprep.subr.mxu0 0.0
        %3402 = vmatpush1.msra.mxu0 0.0
        %3403 = vmatprep.subr.mxu0 0.0
        %3404 = vmatpush1.msra.mxu0 0.0
        %3405 = vmatprep.subr.mxu0 0.0
        %3406 = vmatpush1.msra.mxu0 0.0
        %3407 = vmatprep.subr.mxu0 0.0
        %3408 = vmatpush1.msra.mxu0 0.0
        %3409 = vmatprep.subr.mxu0 0.0
        %3410 = vmatpush1.msra.mxu0 0.0
        %3411 = vmatprep.subr.mxu0 0.0
        %3412 = vmatpush1.msra.mxu0 0.0
        %3413 = vmatprep.subr.mxu0 0.0
        %3414 = vmatpush1.msra.mxu0 0.0
        %3415 = vmatprep.subr.mxu0 0.0
        %3416 = vmatpush1.msra.mxu0 0.0
        %3417 = vmatprep.subr.mxu0 0.0
        %3418 = vmatpush1.msra.mxu0 0.0
        %3419 = vmatprep.mubr.f32.mxu0 0.0
        %3420 = vmatmul.mubr.f32.gmra.mrb[0].mxu0 %v3329
        %v3421 = vpop.f32.mrb[0].mxu0
        %v3422 = vadd.f32 0.0, %v3421
        %v3423 = vpop.f32.mrb[0].mxu0
        %3424 = vmatprep.mubr.f32.mxu0 0.0
        %3425 = vmatmul.mubr.f32.gmra.mrb[0].mxu0 %v3332
        %v3426 = vpop.f32.mrb[0].mxu0
        %v3427 = vadd.f32 0.0, %v3426
        %v3428 = vpop.f32.mrb[0].mxu0
        %3429 = vmatprep.mubr.f32.mxu0 0.0
        %3430 = vmatmul.mubr.f32.gmra.mrb[0].mxu0 %v3335
        %v3431 = vpop.f32.mrb[0].mxu0
        %v3432 = vadd.f32 0.0, %v3431
        %v3433 = vpop.f32.mrb[0].mxu0
        %3434 = vmatprep.mubr.f32.mxu0 0.0
        %3435 = vmatmul.mubr.f32.gmra.mrb[0].mxu0 %v3338
        %v3436 = vpop.f32.mrb[0].mxu0
        %v3437 = vadd.f32 0.0, %v3436
        %v3438 = vpop.f32.mrb[0].mxu0
        %3439 = vmatprep.mubr.f32.mxu0 0.0
        %3440 = vmatmul.mubr.f32.gmra.mrb[0].mxu0 %v3341
        %v3441 = vpop.f32.mrb[0].mxu0
        %v3442 = vadd.f32 0.0, %v3441
        %v3443 = vpop.f32.mrb[0].mxu0
        %3444 = vmatprep.mubr.f32.mxu0 0.0
        %3445 = vmatmul.mubr.f32.gmra.mrb[0].mxu0 %v3344
        %v3446 = vpop.f32.mrb[0].mxu0
        %v3447 = vadd.f32 0.0, %v3446
        %v3448 = vpop.f32.mrb[0].mxu0
        %3449 = vmatprep.mubr.f32.mxu0 0.0
        %3450 = vmatmul.mubr.f32.gmra.mrb[0].mxu0 %v3347
        %v3451 = vpop.f32.mrb[0].mxu0
        %v3452 = vadd.f32 0.0, %v3451
        %v3453 = vpop.f32.mrb[0].mxu0
        %3454 = vmatprep.mubr.f32.mxu0 0.0
        %3455 = vmatmul.mubr.f32.gmra.mrb[0].mxu0 %v3350
        %v3456 = vpop.f32.mrb[0].mxu0
        %v3457 = vadd.f32 0.0, %v3456
        %v3458 = vpop.f32.mrb[0].mxu0
        %3459 = vdwg.mxu0
        %3460 = vxpose.xlu0.b32.start [1/16] %v1844, 128
        %3461 = vxpose.xlu0.b32.cont [2/16] 0.0, 128
        %3462 = vxpose.xlu0.b32.cont [3/16] 0.0, 128
        %3463 = vxpose.xlu0.b32.cont [4/16] 0.0, 128
        %3464 = vxpose.xlu0.b32.cont [5/16] 0.0, 128
        %3465 = vxpose.xlu0.b32.cont [6/16] 0.0, 128
        %3466 = vxpose.xlu0.b32.cont [7/16] 0.0, 128
        %3467 = vxpose.xlu0.b32.cont [8/16] 0.0, 128
        %3468 = vxpose.xlu0.b32.cont [9/16] 0.0, 128
        %3469 = vxpose.xlu0.b32.cont [10/16] 0.0, 128
        %3470 = vxpose.xlu0.b32.cont [11/16] 0.0, 128
        %3471 = vxpose.xlu0.b32.cont [12/16] 0.0, 128
        %3472 = vxpose.xlu0.b32.cont [13/16] 0.0, 128
        %3473 = vxpose.xlu0.b32.cont [14/16] 0.0, 128
        %3474 = vxpose.xlu0.b32.cont [15/16] 0.0, 128
        %3475 = vxpose.xlu0.b32.end [16/16] 0.0, 128
        %v3476 = vpop.trf.xlu0
        %v3477 = vpop.trf.xlu0
        %v3478 = vpop.trf.xlu0
        %v3479 = vpop.trf.xlu0
        %v3480 = vpop.trf.xlu0
        %v3481 = vpop.trf.xlu0
        %v3482 = vpop.trf.xlu0
        %v3483 = vpop.trf.xlu0
        %v3484 = vpop.trf.xlu0
        %v3485 = vpop.trf.xlu0
        %v3486 = vpop.trf.xlu0
        %v3487 = vpop.trf.xlu0
        %v3488 = vpop.trf.xlu0
        %v3489 = vpop.trf.xlu0
        %v3490 = vpop.trf.xlu0
        %v3491 = vpop.trf.xlu0
        %v3493 = vsel %vm2506, %v3476, 0
        %v3496 = vsel %vm2506, %v3477, 0
        %v3499 = vsel %vm2506, %v3478, 0
        %v3502 = vsel %vm2506, %v3479, 0
        %v3505 = vsel %vm2506, %v3480, 0
        %v3508 = vsel %vm2506, %v3481, 0
        %v3511 = vsel %vm2506, %v3482, 0
        %v3514 = vsel %vm2506, %v3483, 0
        %v3517 = vsel %vm2531, %v2472, 0
        %3519 = vmatprep.subr.mxu0 0.0
        %3520 = vmatpush1.msra.mxu0 %v3517
        %3521 = vmatprep.subr.mxu0 0.0
        %3522 = vmatpush1.msra.mxu0 0.0
        %3523 = vmatprep.subr.mxu0 0.0
        %3524 = vmatpush1.msra.mxu0 0.0
        %3525 = vmatprep.subr.mxu0 0.0
        %3526 = vmatpush1.msra.mxu0 0.0
        %3527 = vmatprep.subr.mxu0 0.0
        %3528 = vmatpush1.msra.mxu0 0.0
        %3529 = vmatprep.subr.mxu0 0.0
        %3530 = vmatpush1.msra.mxu0 0.0
        %3531 = vmatprep.subr.mxu0 0.0
        %3532 = vmatpush1.msra.mxu0 0.0
        %3533 = vmatprep.subr.mxu0 0.0
        %3534 = vmatpush1.msra.mxu0 0.0
        %3535 = vmatprep.subr.mxu0 0.0
        %3536 = vmatpush1.msra.mxu0 0.0
        %3537 = vmatprep.subr.mxu0 0.0
        %3538 = vmatpush1.msra.mxu0 0.0
        %3539 = vmatprep.subr.mxu0 0.0
        %3540 = vmatpush1.msra.mxu0 0.0
        %3541 = vmatprep.subr.mxu0 0.0
        %3542 = vmatpush1.msra.mxu0 0.0
        %3543 = vmatprep.subr.mxu0 0.0
        %3544 = vmatpush1.msra.mxu0 0.0
        %3545 = vmatprep.subr.mxu0 0.0
        %3546 = vmatpush1.msra.mxu0 0.0
        %3547 = vmatprep.subr.mxu0 0.0
        %3548 = vmatpush1.msra.mxu0 0.0
        %3549 = vmatprep.subr.mxu0 0.0
        %3550 = vmatpush1.msra.mxu0 0.0
        %3551 = vmatprep.subr.mxu0 0.0
        %3552 = vmatpush1.msra.mxu0 0.0
        %3553 = vmatprep.subr.mxu0 0.0
        %3554 = vmatpush1.msra.mxu0 0.0
        %3555 = vmatprep.subr.mxu0 0.0
        %3556 = vmatpush1.msra.mxu0 0.0
        %3557 = vmatprep.subr.mxu0 0.0
        %3558 = vmatpush1.msra.mxu0 0.0
        %3559 = vmatprep.subr.mxu0 0.0
        %3560 = vmatpush1.msra.mxu0 0.0
        %3561 = vmatprep.subr.mxu0 0.0
        %3562 = vmatpush1.msra.mxu0 0.0
        %3563 = vmatprep.subr.mxu0 0.0
        %3564 = vmatpush1.msra.mxu0 0.0
        %3565 = vmatprep.subr.mxu0 0.0
        %3566 = vmatpush1.msra.mxu0 0.0
        %3567 = vmatprep.subr.mxu0 0.0
        %3568 = vmatpush1.msra.mxu0 0.0
        %3569 = vmatprep.subr.mxu0 0.0
        %3570 = vmatpush1.msra.mxu0 0.0
        %3571 = vmatprep.subr.mxu0 0.0
        %3572 = vmatpush1.msra.mxu0 0.0
        %3573 = vmatprep.subr.mxu0 0.0
        %3574 = vmatpush1.msra.mxu0 0.0
        %3575 = vmatprep.subr.mxu0 0.0
        %3576 = vmatpush1.msra.mxu0 0.0
        %3577 = vmatprep.subr.mxu0 0.0
        %3578 = vmatpush1.msra.mxu0 0.0
        %3579 = vmatprep.subr.mxu0 0.0
        %3580 = vmatpush1.msra.mxu0 0.0
        %3581 = vmatprep.subr.mxu0 0.0
        %3582 = vmatpush1.msra.mxu0 0.0
        %3583 = vmatprep.mubr.f32.mxu0 0.0
        %3584 = vmatmul.mubr.f32.gmra.mrb[0].mxu0 %v3493
        %v3585 = vpop.f32.mrb[0].mxu0
        %v3586 = vadd.f32 0.0, %v3585
        %v3587 = vpop.f32.mrb[0].mxu0
        %3588 = vmatprep.mubr.f32.mxu0 0.0
        %3589 = vmatmul.mubr.f32.gmra.mrb[0].mxu0 %v3496
        %v3590 = vpop.f32.mrb[0].mxu0
        %v3591 = vadd.f32 0.0, %v3590
        %v3592 = vpop.f32.mrb[0].mxu0
        %3593 = vmatprep.mubr.f32.mxu0 0.0
        %3594 = vmatmul.mubr.f32.gmra.mrb[0].mxu0 %v3499
        %v3595 = vpop.f32.mrb[0].mxu0
        %v3596 = vadd.f32 0.0, %v3595
        %v3597 = vpop.f32.mrb[0].mxu0
        %3598 = vmatprep.mubr.f32.mxu0 0.0
        %3599 = vmatmul.mubr.f32.gmra.mrb[0].mxu0 %v3502
        %v3600 = vpop.f32.mrb[0].mxu0
        %v3601 = vadd.f32 0.0, %v3600
        %v3602 = vpop.f32.mrb[0].mxu0
        %3603 = vmatprep.mubr.f32.mxu0 0.0
        %3604 = vmatmul.mubr.f32.gmra.mrb[0].mxu0 %v3505
        %v3605 = vpop.f32.mrb[0].mxu0
        %v3606 = vadd.f32 0.0, %v3605
        %v3607 = vpop.f32.mrb[0].mxu0
        %3608 = vmatprep.mubr.f32.mxu0 0.0
        %3609 = vmatmul.mubr.f32.gmra.mrb[0].mxu0 %v3508
        %v3610 = vpop.f32.mrb[0].mxu0
        %v3611 = vadd.f32 0.0, %v3610
        %v3612 = vpop.f32.mrb[0].mxu0
        %3613 = vmatprep.mubr.f32.mxu0 0.0
        %3614 = vmatmul.mubr.f32.gmra.mrb[0].mxu0 %v3511
        %v3615 = vpop.f32.mrb[0].mxu0
        %v3616 = vadd.f32 0.0, %v3615
        %v3617 = vpop.f32.mrb[0].mxu0
        %3618 = vmatprep.mubr.f32.mxu0 0.0
        %3619 = vmatmul.mubr.f32.gmra.mrb[0].mxu0 %v3514
        %v3620 = vpop.f32.mrb[0].mxu0
        %v3621 = vadd.f32 0.0, %v3620
        %v3622 = vpop.f32.mrb[0].mxu0
        %3623 = vdwg.mxu0
        %3624 = vxpose.xlu0.b32.start [1/16] %v1845, 128
        %3625 = vxpose.xlu0.b32.cont [2/16] 0.0, 128
        %3626 = vxpose.xlu0.b32.cont [3/16] 0.0, 128
        %3627 = vxpose.xlu0.b32.cont [4/16] 0.0, 128
        %3628 = vxpose.xlu0.b32.cont [5/16] 0.0, 128
        %3629 = vxpose.xlu0.b32.cont [6/16] 0.0, 128
        %3630 = vxpose.xlu0.b32.cont [7/16] 0.0, 128
        %3631 = vxpose.xlu0.b32.cont [8/16] 0.0, 128
        %3632 = vxpose.xlu0.b32.cont [9/16] 0.0, 128
        %3633 = vxpose.xlu0.b32.cont [10/16] 0.0, 128
        %3634 = vxpose.xlu0.b32.cont [11/16] 0.0, 128
        %3635 = vxpose.xlu0.b32.cont [12/16] 0.0, 128
        %3636 = vxpose.xlu0.b32.cont [13/16] 0.0, 128
        %3637 = vxpose.xlu0.b32.cont [14/16] 0.0, 128
        %3638 = vxpose.xlu0.b32.cont [15/16] 0.0, 128
        %3639 = vxpose.xlu0.b32.end [16/16] 0.0, 128
        %v3640 = vpop.trf.xlu0
        %v3641 = vpop.trf.xlu0
        %v3642 = vpop.trf.xlu0
        %v3643 = vpop.trf.xlu0
        %v3644 = vpop.trf.xlu0
        %v3645 = vpop.trf.xlu0
        %v3646 = vpop.trf.xlu0
        %v3647 = vpop.trf.xlu0
        %v3648 = vpop.trf.xlu0
        %v3649 = vpop.trf.xlu0
        %v3650 = vpop.trf.xlu0
        %v3651 = vpop.trf.xlu0
        %v3652 = vpop.trf.xlu0
        %v3653 = vpop.trf.xlu0
        %v3654 = vpop.trf.xlu0
        %v3655 = vpop.trf.xlu0
        %v3657 = vsel %vm2506, %v3640, 0
        %v3660 = vsel %vm2506, %v3641, 0
        %v3663 = vsel %vm2506, %v3642, 0
        %v3666 = vsel %vm2506, %v3643, 0
        %v3669 = vsel %vm2506, %v3644, 0
        %v3672 = vsel %vm2506, %v3645, 0
        %v3675 = vsel %vm2506, %v3646, 0
        %v3678 = vsel %vm2506, %v3647, 0
        %v3681 = vsel %vm2531, %v2473, 0
        %3683 = vmatprep.subr.mxu0 0.0
        %3684 = vmatpush1.msra.mxu0 %v3681
        %3685 = vmatprep.subr.mxu0 0.0
        %3686 = vmatpush1.msra.mxu0 0.0
        %3687 = vmatprep.subr.mxu0 0.0
        %3688 = vmatpush1.msra.mxu0 0.0
        %3689 = vmatprep.subr.mxu0 0.0
        %3690 = vmatpush1.msra.mxu0 0.0
        %3691 = vmatprep.subr.mxu0 0.0
        %3692 = vmatpush1.msra.mxu0 0.0
        %3693 = vmatprep.subr.mxu0 0.0
        %3694 = vmatpush1.msra.mxu0 0.0
        %3695 = vmatprep.subr.mxu0 0.0
        %3696 = vmatpush1.msra.mxu0 0.0
        %3697 = vmatprep.subr.mxu0 0.0
        %3698 = vmatpush1.msra.mxu0 0.0
        %3699 = vmatprep.subr.mxu0 0.0
        %3700 = vmatpush1.msra.mxu0 0.0
        %3701 = vmatprep.subr.mxu0 0.0
        %3702 = vmatpush1.msra.mxu0 0.0
        %3703 = vmatprep.subr.mxu0 0.0
        %3704 = vmatpush1.msra.mxu0 0.0
        %3705 = vmatprep.subr.mxu0 0.0
        %3706 = vmatpush1.msra.mxu0 0.0
        %3707 = vmatprep.subr.mxu0 0.0
        %3708 = vmatpush1.msra.mxu0 0.0
        %3709 = vmatprep.subr.mxu0 0.0
        %3710 = vmatpush1.msra.mxu0 0.0
        %3711 = vmatprep.subr.mxu0 0.0
        %3712 = vmatpush1.msra.mxu0 0.0
        %3713 = vmatprep.subr.mxu0 0.0
        %3714 = vmatpush1.msra.mxu0 0.0
        %3715 = vmatprep.subr.mxu0 0.0
        %3716 = vmatpush1.msra.mxu0 0.0
        %3717 = vmatprep.subr.mxu0 0.0
        %3718 = vmatpush1.msra.mxu0 0.0
        %3719 = vmatprep.subr.mxu0 0.0
        %3720 = vmatpush1.msra.mxu0 0.0
        %3721 = vmatprep.subr.mxu0 0.0
        %3722 = vmatpush1.msra.mxu0 0.0
        %3723 = vmatprep.subr.mxu0 0.0
        %3724 = vmatpush1.msra.mxu0 0.0
        %3725 = vmatprep.subr.mxu0 0.0
        %3726 = vmatpush1.msra.mxu0 0.0
        %3727 = vmatprep.subr.mxu0 0.0
        %3728 = vmatpush1.msra.mxu0 0.0
        %3729 = vmatprep.subr.mxu0 0.0
        %3730 = vmatpush1.msra.mxu0 0.0
        %3731 = vmatprep.subr.mxu0 0.0
        %3732 = vmatpush1.msra.mxu0 0.0
        %3733 = vmatprep.subr.mxu0 0.0
        %3734 = vmatpush1.msra.mxu0 0.0
        %3735 = vmatprep.subr.mxu0 0.0
        %3736 = vmatpush1.msra.mxu0 0.0
        %3737 = vmatprep.subr.mxu0 0.0
        %3738 = vmatpush1.msra.mxu0 0.0
        %3739 = vmatprep.subr.mxu0 0.0
        %3740 = vmatpush1.msra.mxu0 0.0
        %3741 = vmatprep.subr.mxu0 0.0
        %3742 = vmatpush1.msra.mxu0 0.0
        %3743 = vmatprep.subr.mxu0 0.0
        %3744 = vmatpush1.msra.mxu0 0.0
        %3745 = vmatprep.subr.mxu0 0.0
        %3746 = vmatpush1.msra.mxu0 0.0
        %3747 = vmatprep.mubr.f32.mxu0 0.0
        %3748 = vmatmul.mubr.f32.gmra.mrb[0].mxu0 %v3657
        %v3749 = vpop.f32.mrb[0].mxu0
        %v3750 = vadd.f32 0.0, %v3749
        %v3751 = vpop.f32.mrb[0].mxu0
        %3752 = vmatprep.mubr.f32.mxu0 0.0
        %3753 = vmatmul.mubr.f32.gmra.mrb[0].mxu0 %v3660
        %v3754 = vpop.f32.mrb[0].mxu0
        %v3755 = vadd.f32 0.0, %v3754
        %v3756 = vpop.f32.mrb[0].mxu0
        %3757 = vmatprep.mubr.f32.mxu0 0.0
        %3758 = vmatmul.mubr.f32.gmra.mrb[0].mxu0 %v3663
        %v3759 = vpop.f32.mrb[0].mxu0
        %v3760 = vadd.f32 0.0, %v3759
        %v3761 = vpop.f32.mrb[0].mxu0
        %3762 = vmatprep.mubr.f32.mxu0 0.0
        %3763 = vmatmul.mubr.f32.gmra.mrb[0].mxu0 %v3666
        %v3764 = vpop.f32.mrb[0].mxu0
        %v3765 = vadd.f32 0.0, %v3764
        %v3766 = vpop.f32.mrb[0].mxu0
        %3767 = vmatprep.mubr.f32.mxu0 0.0
        %3768 = vmatmul.mubr.f32.gmra.mrb[0].mxu0 %v3669
        %v3769 = vpop.f32.mrb[0].mxu0
        %v3770 = vadd.f32 0.0, %v3769
        %v3771 = vpop.f32.mrb[0].mxu0
        %3772 = vmatprep.mubr.f32.mxu0 0.0
        %3773 = vmatmul.mubr.f32.gmra.mrb[0].mxu0 %v3672
        %v3774 = vpop.f32.mrb[0].mxu0
        %v3775 = vadd.f32 0.0, %v3774
        %v3776 = vpop.f32.mrb[0].mxu0
        %3777 = vmatprep.mubr.f32.mxu0 0.0
        %3778 = vmatmul.mubr.f32.gmra.mrb[0].mxu0 %v3675
        %v3779 = vpop.f32.mrb[0].mxu0
        %v3780 = vadd.f32 0.0, %v3779
        %v3781 = vpop.f32.mrb[0].mxu0
        %3782 = vmatprep.mubr.f32.mxu0 0.0
        %3783 = vmatmul.mubr.f32.gmra.mrb[0].mxu0 %v3678
        %v3784 = vpop.f32.mrb[0].mxu0
        %v3785 = vadd.f32 0.0, %v3784
        %v3786 = vpop.f32.mrb[0].mxu0
        %3787 = vdwg.mxu0
        %3788 = vst.msk [vmem:[%s384] sm:$0xff] %vm667, %v2602
        %3789 = vst.msk [vmem:[%s384 + $0x8] sm:$0xff] %vm667, %v2607
        %3790 = vst.msk [vmem:[%s384 + $0x10] sm:$0xff] %vm667, %v2612
        %3791 = vst.msk [vmem:[%s384 + $0x18] sm:$0xff] %vm667, %v2617
        %3792 = vst.msk [vmem:[%s384 + $0x20] sm:$0xff] %vm667, %v2622
        %3793 = vst.msk [vmem:[%s384 + $0x28] sm:$0xff] %vm667, %v2627
        %3794 = vst.msk [vmem:[%s384 + $0x30] sm:$0xff] %vm667, %v2632
        %3795 = vst.msk [vmem:[%s384 + $0x38] sm:$0xff] %vm667, %v2637
        %3796 = vst.msk [vmem:[%s384 + $0x40] sm:$0xff] %vm667, %v2766
        %3797 = vst.msk [vmem:[%s384 + $0x48] sm:$0xff] %vm667, %v2771
        %3798 = vst.msk [vmem:[%s384 + $0x50] sm:$0xff] %vm667, %v2776
        %3799 = vst.msk [vmem:[%s384 + $0x58] sm:$0xff] %vm667, %v2781
        %3800 = vst.msk [vmem:[%s384 + $0x60] sm:$0xff] %vm667, %v2786
        %3801 = vst.msk [vmem:[%s384 + $0x68] sm:$0xff] %vm667, %v2791
        %3802 = vst.msk [vmem:[%s384 + $0x70] sm:$0xff] %vm667, %v2796
        %3803 = vst.msk [vmem:[%s384 + $0x78] sm:$0xff] %vm667, %v2801
        %3804 = vst.msk [vmem:[%s384 + $0x80] sm:$0xff] %vm667, %v2930
        %3805 = vst.msk [vmem:[%s384 + $0x88] sm:$0xff] %vm667, %v2935
        %3806 = vst.msk [vmem:[%s384 + $0x90] sm:$0xff] %vm667, %v2940
        %3807 = vst.msk [vmem:[%s384 + $0x98] sm:$0xff] %vm667, %v2945
        %3808 = vst.msk [vmem:[%s384 + $0xa0] sm:$0xff] %vm667, %v2950
        %3809 = vst.msk [vmem:[%s384 + $0xa8] sm:$0xff] %vm667, %v2955
        %3810 = vst.msk [vmem:[%s384 + $0xb0] sm:$0xff] %vm667, %v2960
        %3811 = vst.msk [vmem:[%s384 + $0xb8] sm:$0xff] %vm667, %v2965
        %3812 = vst.msk [vmem:[%s384 + $0xc0] sm:$0xff] %vm667, %v3094
        %3813 = vst.msk [vmem:[%s384 + $0xc8] sm:$0xff] %vm667, %v3099
        %3814 = vst.msk [vmem:[%s384 + $0xd0] sm:$0xff] %vm667, %v3104
        %3815 = vst.msk [vmem:[%s384 + $0xd8] sm:$0xff] %vm667, %v3109
        %3816 = vst.msk [vmem:[%s384 + $0xe0] sm:$0xff] %vm667, %v3114
        %3817 = vst.msk [vmem:[%s384 + $0xe8] sm:$0xff] %vm667, %v3119
        %3818 = vst.msk [vmem:[%s384 + $0xf0] sm:$0xff] %vm667, %v3124
        %3819 = vst.msk [vmem:[%s384 + $0xf8] sm:$0xff] %vm667, %v3129
        %3820 = vst.msk [vmem:[%s384 + $0x100] sm:$0xff] %vm667, %v3258
        %3821 = vst.msk [vmem:[%s384 + $0x108] sm:$0xff] %vm667, %v3263
        %3822 = vst.msk [vmem:[%s384 + $0x110] sm:$0xff] %vm667, %v3268
        %3823 = vst.msk [vmem:[%s384 + $0x118] sm:$0xff] %vm667, %v3273
        %3824 = vst.msk [vmem:[%s384 + $0x120] sm:$0xff] %vm667, %v3278
        %3825 = vst.msk [vmem:[%s384 + $0x128] sm:$0xff] %vm667, %v3283
        %3826 = vst.msk [vmem:[%s384 + $0x130] sm:$0xff] %vm667, %v3288
        %3827 = vst.msk [vmem:[%s384 + $0x138] sm:$0xff] %vm667, %v3293
        %3828 = vst.msk [vmem:[%s384 + $0x140] sm:$0xff] %vm667, %v3422
        %3829 = vst.msk [vmem:[%s384 + $0x148] sm:$0xff] %vm667, %v3427
        %3830 = vst.msk [vmem:[%s384 + $0x150] sm:$0xff] %vm667, %v3432
        %3831 = vst.msk [vmem:[%s384 + $0x158] sm:$0xff] %vm667, %v3437
        %3832 = vst.msk [vmem:[%s384 + $0x160] sm:$0xff] %vm667, %v3442
        %3833 = vst.msk [vmem:[%s384 + $0x168] sm:$0xff] %vm667, %v3447
        %3834 = vst.msk [vmem:[%s384 + $0x170] sm:$0xff] %vm667, %v3452
        %3835 = vst.msk [vmem:[%s384 + $0x178] sm:$0xff] %vm667, %v3457
        %3836 = vst.msk [vmem:[%s384 + $0x180] sm:$0xff] %vm667, %v3586
        %3837 = vst.msk [vmem:[%s384 + $0x188] sm:$0xff] %vm667, %v3591
        %3838 = vst.msk [vmem:[%s384 + $0x190] sm:$0xff] %vm667, %v3596
        %3839 = vst.msk [vmem:[%s384 + $0x198] sm:$0xff] %vm667, %v3601
        %3840 = vst.msk [vmem:[%s384 + $0x1a0] sm:$0xff] %vm667, %v3606
        %3841 = vst.msk [vmem:[%s384 + $0x1a8] sm:$0xff] %vm667, %v3611
        %3842 = vst.msk [vmem:[%s384 + $0x1b0] sm:$0xff] %vm667, %v3616
        %3843 = vst.msk [vmem:[%s384 + $0x1b8] sm:$0xff] %vm667, %v3621
        %3844 = vst.msk [vmem:[%s384 + $0x1c0] sm:$0xff] %vm667, %v3750
        %3845 = vst.msk [vmem:[%s384 + $0x1c8] sm:$0xff] %vm667, %v3755
        %3846 = vst.msk [vmem:[%s384 + $0x1d0] sm:$0xff] %vm667, %v3760
        %3847 = vst.msk [vmem:[%s384 + $0x1d8] sm:$0xff] %vm667, %v3765
        %3848 = vst.msk [vmem:[%s384 + $0x1e0] sm:$0xff] %vm667, %v3770
        %3849 = vst.msk [vmem:[%s384 + $0x1e8] sm:$0xff] %vm667, %v3775
        %3850 = vst.msk [vmem:[%s384 + $0x1f0] sm:$0xff] %vm667, %v3780
        %3851 = vst.msk [vmem:[%s384 + $0x1f8] sm:$0xff] %vm667, %v3785
        %v3853 = vsel %vm2531, %v1951, 0
        %3855 = vmatprep.subr.mxu0 0.0
        %3856 = vmatpush1.msra.mxu0 %v3853
        %3857 = vmatprep.subr.mxu0 0.0
        %3858 = vmatpush1.msra.mxu0 0.0
        %3859 = vmatprep.subr.mxu0 0.0
        %3860 = vmatpush1.msra.mxu0 0.0
        %3861 = vmatprep.subr.mxu0 0.0
        %3862 = vmatpush1.msra.mxu0 0.0
        %3863 = vmatprep.subr.mxu0 0.0
        %3864 = vmatpush1.msra.mxu0 0.0
        %3865 = vmatprep.subr.mxu0 0.0
        %3866 = vmatpush1.msra.mxu0 0.0
        %3867 = vmatprep.subr.mxu0 0.0
        %3868 = vmatpush1.msra.mxu0 0.0
        %3869 = vmatprep.subr.mxu0 0.0
        %3870 = vmatpush1.msra.mxu0 0.0
        %3871 = vmatprep.subr.mxu0 0.0
        %3872 = vmatpush1.msra.mxu0 0.0
        %3873 = vmatprep.subr.mxu0 0.0
        %3874 = vmatpush1.msra.mxu0 0.0
        %3875 = vmatprep.subr.mxu0 0.0
        %3876 = vmatpush1.msra.mxu0 0.0
        %3877 = vmatprep.subr.mxu0 0.0
        %3878 = vmatpush1.msra.mxu0 0.0
        %3879 = vmatprep.subr.mxu0 0.0
        %3880 = vmatpush1.msra.mxu0 0.0
        %3881 = vmatprep.subr.mxu0 0.0
        %3882 = vmatpush1.msra.mxu0 0.0
        %3883 = vmatprep.subr.mxu0 0.0
        %3884 = vmatpush1.msra.mxu0 0.0
        %3885 = vmatprep.subr.mxu0 0.0
        %3886 = vmatpush1.msra.mxu0 0.0
        %3887 = vmatprep.subr.mxu0 0.0
        %3888 = vmatpush1.msra.mxu0 0.0
        %3889 = vmatprep.subr.mxu0 0.0
        %3890 = vmatpush1.msra.mxu0 0.0
        %3891 = vmatprep.subr.mxu0 0.0
        %3892 = vmatpush1.msra.mxu0 0.0
        %3893 = vmatprep.subr.mxu0 0.0
        %3894 = vmatpush1.msra.mxu0 0.0
        %3895 = vmatprep.subr.mxu0 0.0
        %3896 = vmatpush1.msra.mxu0 0.0
        %3897 = vmatprep.subr.mxu0 0.0
        %3898 = vmatpush1.msra.mxu0 0.0
        %3899 = vmatprep.subr.mxu0 0.0
        %3900 = vmatpush1.msra.mxu0 0.0
        %3901 = vmatprep.subr.mxu0 0.0
        %3902 = vmatpush1.msra.mxu0 0.0
        %3903 = vmatprep.subr.mxu0 0.0
        %3904 = vmatpush1.msra.mxu0 0.0
        %3905 = vmatprep.subr.mxu0 0.0
        %3906 = vmatpush1.msra.mxu0 0.0
        %3907 = vmatprep.subr.mxu0 0.0
        %3908 = vmatpush1.msra.mxu0 0.0
        %3909 = vmatprep.subr.mxu0 0.0
        %3910 = vmatpush1.msra.mxu0 0.0
        %3911 = vmatprep.subr.mxu0 0.0
        %3912 = vmatpush1.msra.mxu0 0.0
        %3913 = vmatprep.subr.mxu0 0.0
        %3914 = vmatpush1.msra.mxu0 0.0
        %3915 = vmatprep.subr.mxu0 0.0
        %3916 = vmatpush1.msra.mxu0 0.0
        %3917 = vmatprep.subr.mxu0 0.0
        %3918 = vmatpush1.msra.mxu0 0.0
        %3919 = vmatprep.mubr.f32.mxu0 0.0
        %3920 = vmatmul.mubr.f32.gmra.mrb[0].mxu0 %v2508
        %v3921 = vpop.f32.mrb[0].mxu0
        %v3922 = vadd.f32 0.0, %v3921
        %v3923 = vpop.f32.mrb[0].mxu0
        %3924 = vmatprep.mubr.f32.mxu0 0.0
        %3925 = vmatmul.mubr.f32.gmra.mrb[0].mxu0 %v2511
        %v3926 = vpop.f32.mrb[0].mxu0
        %v3927 = vadd.f32 0.0, %v3926
        %v3928 = vpop.f32.mrb[0].mxu0
        %3929 = vmatprep.mubr.f32.mxu0 0.0
        %3930 = vmatmul.mubr.f32.gmra.mrb[0].mxu0 %v2514
        %v3931 = vpop.f32.mrb[0].mxu0
        %v3932 = vadd.f32 0.0, %v3931
        %v3933 = vpop.f32.mrb[0].mxu0
        %3934 = vmatprep.mubr.f32.mxu0 0.0
        %3935 = vmatmul.mubr.f32.gmra.mrb[0].mxu0 %v2517
        %v3936 = vpop.f32.mrb[0].mxu0
        %v3937 = vadd.f32 0.0, %v3936
        %v3938 = vpop.f32.mrb[0].mxu0
        %3939 = vmatprep.mubr.f32.mxu0 0.0
        %3940 = vmatmul.mubr.f32.gmra.mrb[0].mxu0 %v2520
        %v3941 = vpop.f32.mrb[0].mxu0
        %v3942 = vadd.f32 0.0, %v3941
        %v3943 = vpop.f32.mrb[0].mxu0
        %3944 = vmatprep.mubr.f32.mxu0 0.0
        %3945 = vmatmul.mubr.f32.gmra.mrb[0].mxu0 %v2523
        %v3946 = vpop.f32.mrb[0].mxu0
        %v3947 = vadd.f32 0.0, %v3946
        %v3948 = vpop.f32.mrb[0].mxu0
        %3949 = vmatprep.mubr.f32.mxu0 0.0
        %3950 = vmatmul.mubr.f32.gmra.mrb[0].mxu0 %v2526
        %v3951 = vpop.f32.mrb[0].mxu0
        %v3952 = vadd.f32 0.0, %v3951
        %v3953 = vpop.f32.mrb[0].mxu0
        %3954 = vmatprep.mubr.f32.mxu0 0.0
        %3955 = vmatmul.mubr.f32.gmra.mrb[0].mxu0 %v2529
        %v3956 = vpop.f32.mrb[0].mxu0
        %v3957 = vadd.f32 0.0, %v3956
        %v3958 = vpop.f32.mrb[0].mxu0
        %3959 = vdwg.mxu0
        %v3961 = vsel %vm2531, %v2024, 0
        %3963 = vmatprep.subr.mxu0 0.0
        %3964 = vmatpush1.msra.mxu0 %v3961
        %3965 = vmatprep.subr.mxu0 0.0
        %3966 = vmatpush1.msra.mxu0 0.0
        %3967 = vmatprep.subr.mxu0 0.0
        %3968 = vmatpush1.msra.mxu0 0.0
        %3969 = vmatprep.subr.mxu0 0.0
        %3970 = vmatpush1.msra.mxu0 0.0
        %3971 = vmatprep.subr.mxu0 0.0
        %3972 = vmatpush1.msra.mxu0 0.0
        %3973 = vmatprep.subr.mxu0 0.0
        %3974 = vmatpush1.msra.mxu0 0.0
        %3975 = vmatprep.subr.mxu0 0.0
        %3976 = vmatpush1.msra.mxu0 0.0
        %3977 = vmatprep.subr.mxu0 0.0
        %3978 = vmatpush1.msra.mxu0 0.0
        %3979 = vmatprep.subr.mxu0 0.0
        %3980 = vmatpush1.msra.mxu0 0.0
        %3981 = vmatprep.subr.mxu0 0.0
        %3982 = vmatpush1.msra.mxu0 0.0
        %3983 = vmatprep.subr.mxu0 0.0
        %3984 = vmatpush1.msra.mxu0 0.0
        %3985 = vmatprep.subr.mxu0 0.0
        %3986 = vmatpush1.msra.mxu0 0.0
        %3987 = vmatprep.subr.mxu0 0.0
        %3988 = vmatpush1.msra.mxu0 0.0
        %3989 = vmatprep.subr.mxu0 0.0
        %3990 = vmatpush1.msra.mxu0 0.0
        %3991 = vmatprep.subr.mxu0 0.0
        %3992 = vmatpush1.msra.mxu0 0.0
        %3993 = vmatprep.subr.mxu0 0.0
        %3994 = vmatpush1.msra.mxu0 0.0
        %3995 = vmatprep.subr.mxu0 0.0
        %3996 = vmatpush1.msra.mxu0 0.0
        %3997 = vmatprep.subr.mxu0 0.0
        %3998 = vmatpush1.msra.mxu0 0.0
        %3999 = vmatprep.subr.mxu0 0.0
        %4000 = vmatpush1.msra.mxu0 0.0
        %4001 = vmatprep.subr.mxu0 0.0
        %4002 = vmatpush1.msra.mxu0 0.0
        %4003 = vmatprep.subr.mxu0 0.0
        %4004 = vmatpush1.msra.mxu0 0.0
        %4005 = vmatprep.subr.mxu0 0.0
        %4006 = vmatpush1.msra.mxu0 0.0
        %4007 = vmatprep.subr.mxu0 0.0
        %4008 = vmatpush1.msra.mxu0 0.0
        %4009 = vmatprep.subr.mxu0 0.0
        %4010 = vmatpush1.msra.mxu0 0.0
        %4011 = vmatprep.subr.mxu0 0.0
        %4012 = vmatpush1.msra.mxu0 0.0
        %4013 = vmatprep.subr.mxu0 0.0
        %4014 = vmatpush1.msra.mxu0 0.0
        %4015 = vmatprep.subr.mxu0 0.0
        %4016 = vmatpush1.msra.mxu0 0.0
        %4017 = vmatprep.subr.mxu0 0.0
        %4018 = vmatpush1.msra.mxu0 0.0
        %4019 = vmatprep.subr.mxu0 0.0
        %4020 = vmatpush1.msra.mxu0 0.0
        %4021 = vmatprep.subr.mxu0 0.0
        %4022 = vmatpush1.msra.mxu0 0.0
        %4023 = vmatprep.subr.mxu0 0.0
        %4024 = vmatpush1.msra.mxu0 0.0
        %4025 = vmatprep.subr.mxu0 0.0
        %4026 = vmatpush1.msra.mxu0 0.0
        %4027 = vmatprep.mubr.f32.mxu0 0.0
        %4028 = vmatmul.mubr.f32.gmra.mrb[0].mxu0 %v2673
        %v4029 = vpop.f32.mrb[0].mxu0
        %v4030 = vadd.f32 0.0, %v4029
        %v4031 = vpop.f32.mrb[0].mxu0
        %4032 = vmatprep.mubr.f32.mxu0 0.0
        %4033 = vmatmul.mubr.f32.gmra.mrb[0].mxu0 %v2676
        %v4034 = vpop.f32.mrb[0].mxu0
        %v4035 = vadd.f32 0.0, %v4034
        %v4036 = vpop.f32.mrb[0].mxu0
        %4037 = vmatprep.mubr.f32.mxu0 0.0
        %4038 = vmatmul.mubr.f32.gmra.mrb[0].mxu0 %v2679
        %v4039 = vpop.f32.mrb[0].mxu0
        %v4040 = vadd.f32 0.0, %v4039
        %v4041 = vpop.f32.mrb[0].mxu0
        %4042 = vmatprep.mubr.f32.mxu0 0.0
        %4043 = vmatmul.mubr.f32.gmra.mrb[0].mxu0 %v2682
        %v4044 = vpop.f32.mrb[0].mxu0
        %v4045 = vadd.f32 0.0, %v4044
        %v4046 = vpop.f32.mrb[0].mxu0
        %4047 = vmatprep.mubr.f32.mxu0 0.0
        %4048 = vmatmul.mubr.f32.gmra.mrb[0].mxu0 %v2685
        %v4049 = vpop.f32.mrb[0].mxu0
        %v4050 = vadd.f32 0.0, %v4049
        %v4051 = vpop.f32.mrb[0].mxu0
        %4052 = vmatprep.mubr.f32.mxu0 0.0
        %4053 = vmatmul.mubr.f32.gmra.mrb[0].mxu0 %v2688
        %v4054 = vpop.f32.mrb[0].mxu0
        %v4055 = vadd.f32 0.0, %v4054
        %v4056 = vpop.f32.mrb[0].mxu0
        %4057 = vmatprep.mubr.f32.mxu0 0.0
        %4058 = vmatmul.mubr.f32.gmra.mrb[0].mxu0 %v2691
        %v4059 = vpop.f32.mrb[0].mxu0
        %v4060 = vadd.f32 0.0, %v4059
        %v4061 = vpop.f32.mrb[0].mxu0
        %4062 = vmatprep.mubr.f32.mxu0 0.0
        %4063 = vmatmul.mubr.f32.gmra.mrb[0].mxu0 %v2694
        %v4064 = vpop.f32.mrb[0].mxu0
        %v4065 = vadd.f32 0.0, %v4064
        %v4066 = vpop.f32.mrb[0].mxu0
        %4067 = vdwg.mxu0
        %v4069 = vsel %vm2531, %v2097, 0
        %4071 = vmatprep.subr.mxu0 0.0
        %4072 = vmatpush1.msra.mxu0 %v4069
        %4073 = vmatprep.subr.mxu0 0.0
        %4074 = vmatpush1.msra.mxu0 0.0
        %4075 = vmatprep.subr.mxu0 0.0
        %4076 = vmatpush1.msra.mxu0 0.0
        %4077 = vmatprep.subr.mxu0 0.0
        %4078 = vmatpush1.msra.mxu0 0.0
        %4079 = vmatprep.subr.mxu0 0.0
        %4080 = vmatpush1.msra.mxu0 0.0
        %4081 = vmatprep.subr.mxu0 0.0
        %4082 = vmatpush1.msra.mxu0 0.0
        %4083 = vmatprep.subr.mxu0 0.0
        %4084 = vmatpush1.msra.mxu0 0.0
        %4085 = vmatprep.subr.mxu0 0.0
        %4086 = vmatpush1.msra.mxu0 0.0
        %4087 = vmatprep.subr.mxu0 0.0
        %4088 = vmatpush1.msra.mxu0 0.0
        %4089 = vmatprep.subr.mxu0 0.0
        %4090 = vmatpush1.msra.mxu0 0.0
        %4091 = vmatprep.subr.mxu0 0.0
        %4092 = vmatpush1.msra.mxu0 0.0
        %4093 = vmatprep.subr.mxu0 0.0
        %4094 = vmatpush1.msra.mxu0 0.0
        %4095 = vmatprep.subr.mxu0 0.0
        %4096 = vmatpush1.msra.mxu0 0.0
        %4097 = vmatprep.subr.mxu0 0.0
        %4098 = vmatpush1.msra.mxu0 0.0
        %4099 = vmatprep.subr.mxu0 0.0
        %4100 = vmatpush1.msra.mxu0 0.0
        %4101 = vmatprep.subr.mxu0 0.0
        %4102 = vmatpush1.msra.mxu0 0.0
        %4103 = vmatprep.subr.mxu0 0.0
        %4104 = vmatpush1.msra.mxu0 0.0
        %4105 = vmatprep.subr.mxu0 0.0
        %4106 = vmatpush1.msra.mxu0 0.0
        %4107 = vmatprep.subr.mxu0 0.0
        %4108 = vmatpush1.msra.mxu0 0.0
        %4109 = vmatprep.subr.mxu0 0.0
        %4110 = vmatpush1.msra.mxu0 0.0
        %4111 = vmatprep.subr.mxu0 0.0
        %4112 = vmatpush1.msra.mxu0 0.0
        %4113 = vmatprep.subr.mxu0 0.0
        %4114 = vmatpush1.msra.mxu0 0.0
        %4115 = vmatprep.subr.mxu0 0.0
        %4116 = vmatpush1.msra.mxu0 0.0
        %4117 = vmatprep.subr.mxu0 0.0
        %4118 = vmatpush1.msra.mxu0 0.0
        %4119 = vmatprep.subr.mxu0 0.0
        %4120 = vmatpush1.msra.mxu0 0.0
        %4121 = vmatprep.subr.mxu0 0.0
        %4122 = vmatpush1.msra.mxu0 0.0
        %4123 = vmatprep.subr.mxu0 0.0
        %4124 = vmatpush1.msra.mxu0 0.0
        %4125 = vmatprep.subr.mxu0 0.0
        %4126 = vmatpush1.msra.mxu0 0.0
        %4127 = vmatprep.subr.mxu0 0.0
        %4128 = vmatpush1.msra.mxu0 0.0
        %4129 = vmatprep.subr.mxu0 0.0
        %4130 = vmatpush1.msra.mxu0 0.0
        %4131 = vmatprep.subr.mxu0 0.0
        %4132 = vmatpush1.msra.mxu0 0.0
        %4133 = vmatprep.subr.mxu0 0.0
        %4134 = vmatpush1.msra.mxu0 0.0
        %4135 = vmatprep.mubr.f32.mxu0 0.0
        %4136 = vmatmul.mubr.f32.gmra.mrb[0].mxu0 %v2837
        %v4137 = vpop.f32.mrb[0].mxu0
        %v4138 = vadd.f32 0.0, %v4137
        %v4139 = vpop.f32.mrb[0].mxu0
        %4140 = vmatprep.mubr.f32.mxu0 0.0
        %4141 = vmatmul.mubr.f32.gmra.mrb[0].mxu0 %v2840
        %v4142 = vpop.f32.mrb[0].mxu0
        %v4143 = vadd.f32 0.0, %v4142
        %v4144 = vpop.f32.mrb[0].mxu0
        %4145 = vmatprep.mubr.f32.mxu0 0.0
        %4146 = vmatmul.mubr.f32.gmra.mrb[0].mxu0 %v2843
        %v4147 = vpop.f32.mrb[0].mxu0
        %v4148 = vadd.f32 0.0, %v4147
        %v4149 = vpop.f32.mrb[0].mxu0
        %4150 = vmatprep.mubr.f32.mxu0 0.0
        %4151 = vmatmul.mubr.f32.gmra.mrb[0].mxu0 %v2846
        %v4152 = vpop.f32.mrb[0].mxu0
        %v4153 = vadd.f32 0.0, %v4152
        %v4154 = vpop.f32.mrb[0].mxu0
        %4155 = vmatprep.mubr.f32.mxu0 0.0
        %4156 = vmatmul.mubr.f32.gmra.mrb[0].mxu0 %v2849
        %v4157 = vpop.f32.mrb[0].mxu0
        %v4158 = vadd.f32 0.0, %v4157
        %v4159 = vpop.f32.mrb[0].mxu0
        %4160 = vmatprep.mubr.f32.mxu0 0.0
        %4161 = vmatmul.mubr.f32.gmra.mrb[0].mxu0 %v2852
        %v4162 = vpop.f32.mrb[0].mxu0
        %v4163 = vadd.f32 0.0, %v4162
        %v4164 = vpop.f32.mrb[0].mxu0
        %4165 = vmatprep.mubr.f32.mxu0 0.0
        %4166 = vmatmul.mubr.f32.gmra.mrb[0].mxu0 %v2855
        %v4167 = vpop.f32.mrb[0].mxu0
        %v4168 = vadd.f32 0.0, %v4167
        %v4169 = vpop.f32.mrb[0].mxu0
        %4170 = vmatprep.mubr.f32.mxu0 0.0
        %4171 = vmatmul.mubr.f32.gmra.mrb[0].mxu0 %v2858
        %v4172 = vpop.f32.mrb[0].mxu0
        %v4173 = vadd.f32 0.0, %v4172
        %v4174 = vpop.f32.mrb[0].mxu0
        %4175 = vdwg.mxu0
        %v4177 = vsel %vm2531, %v2170, 0
        %4179 = vmatprep.subr.mxu0 0.0
        %4180 = vmatpush1.msra.mxu0 %v4177
        %4181 = vmatprep.subr.mxu0 0.0
        %4182 = vmatpush1.msra.mxu0 0.0
        %4183 = vmatprep.subr.mxu0 0.0
        %4184 = vmatpush1.msra.mxu0 0.0
        %4185 = vmatprep.subr.mxu0 0.0
        %4186 = vmatpush1.msra.mxu0 0.0
        %4187 = vmatprep.subr.mxu0 0.0
        %4188 = vmatpush1.msra.mxu0 0.0
        %4189 = vmatprep.subr.mxu0 0.0
        %4190 = vmatpush1.msra.mxu0 0.0
        %4191 = vmatprep.subr.mxu0 0.0
        %4192 = vmatpush1.msra.mxu0 0.0
        %4193 = vmatprep.subr.mxu0 0.0
        %4194 = vmatpush1.msra.mxu0 0.0
        %4195 = vmatprep.subr.mxu0 0.0
        %4196 = vmatpush1.msra.mxu0 0.0
        %4197 = vmatprep.subr.mxu0 0.0
        %4198 = vmatpush1.msra.mxu0 0.0
        %4199 = vmatprep.subr.mxu0 0.0
        %4200 = vmatpush1.msra.mxu0 0.0
        %4201 = vmatprep.subr.mxu0 0.0
        %4202 = vmatpush1.msra.mxu0 0.0
        %4203 = vmatprep.subr.mxu0 0.0
        %4204 = vmatpush1.msra.mxu0 0.0
        %4205 = vmatprep.subr.mxu0 0.0
        %4206 = vmatpush1.msra.mxu0 0.0
        %4207 = vmatprep.subr.mxu0 0.0
        %4208 = vmatpush1.msra.mxu0 0.0
        %4209 = vmatprep.subr.mxu0 0.0
        %4210 = vmatpush1.msra.mxu0 0.0
        %4211 = vmatprep.subr.mxu0 0.0
        %4212 = vmatpush1.msra.mxu0 0.0
        %4213 = vmatprep.subr.mxu0 0.0
        %4214 = vmatpush1.msra.mxu0 0.0
        %4215 = vmatprep.subr.mxu0 0.0
        %4216 = vmatpush1.msra.mxu0 0.0
        %4217 = vmatprep.subr.mxu0 0.0
        %4218 = vmatpush1.msra.mxu0 0.0
        %4219 = vmatprep.subr.mxu0 0.0
        %4220 = vmatpush1.msra.mxu0 0.0
        %4221 = vmatprep.subr.mxu0 0.0
        %4222 = vmatpush1.msra.mxu0 0.0
        %4223 = vmatprep.subr.mxu0 0.0
        %4224 = vmatpush1.msra.mxu0 0.0
        %4225 = vmatprep.subr.mxu0 0.0
        %4226 = vmatpush1.msra.mxu0 0.0
        %4227 = vmatprep.subr.mxu0 0.0
        %4228 = vmatpush1.msra.mxu0 0.0
        %4229 = vmatprep.subr.mxu0 0.0
        %4230 = vmatpush1.msra.mxu0 0.0
        %4231 = vmatprep.subr.mxu0 0.0
        %4232 = vmatpush1.msra.mxu0 0.0
        %4233 = vmatprep.subr.mxu0 0.0
        %4234 = vmatpush1.msra.mxu0 0.0
        %4235 = vmatprep.subr.mxu0 0.0
        %4236 = vmatpush1.msra.mxu0 0.0
        %4237 = vmatprep.subr.mxu0 0.0
        %4238 = vmatpush1.msra.mxu0 0.0
        %4239 = vmatprep.subr.mxu0 0.0
        %4240 = vmatpush1.msra.mxu0 0.0
        %4241 = vmatprep.subr.mxu0 0.0
        %4242 = vmatpush1.msra.mxu0 0.0
        %4243 = vmatprep.mubr.f32.mxu0 0.0
        %4244 = vmatmul.mubr.f32.gmra.mrb[0].mxu0 %v3001
        %v4245 = vpop.f32.mrb[0].mxu0
        %v4246 = vadd.f32 0.0, %v4245
        %v4247 = vpop.f32.mrb[0].mxu0
        %4248 = vmatprep.mubr.f32.mxu0 0.0
        %4249 = vmatmul.mubr.f32.gmra.mrb[0].mxu0 %v3004
        %v4250 = vpop.f32.mrb[0].mxu0
        %v4251 = vadd.f32 0.0, %v4250
        %v4252 = vpop.f32.mrb[0].mxu0
        %4253 = vmatprep.mubr.f32.mxu0 0.0
        %4254 = vmatmul.mubr.f32.gmra.mrb[0].mxu0 %v3007
        %v4255 = vpop.f32.mrb[0].mxu0
        %v4256 = vadd.f32 0.0, %v4255
        %v4257 = vpop.f32.mrb[0].mxu0
        %4258 = vmatprep.mubr.f32.mxu0 0.0
        %4259 = vmatmul.mubr.f32.gmra.mrb[0].mxu0 %v3010
        %v4260 = vpop.f32.mrb[0].mxu0
        %v4261 = vadd.f32 0.0, %v4260
        %v4262 = vpop.f32.mrb[0].mxu0
        %4263 = vmatprep.mubr.f32.mxu0 0.0
        %4264 = vmatmul.mubr.f32.gmra.mrb[0].mxu0 %v3013
        %v4265 = vpop.f32.mrb[0].mxu0
        %v4266 = vadd.f32 0.0, %v4265
        %v4267 = vpop.f32.mrb[0].mxu0
        %4268 = vmatprep.mubr.f32.mxu0 0.0
        %4269 = vmatmul.mubr.f32.gmra.mrb[0].mxu0 %v3016
        %v4270 = vpop.f32.mrb[0].mxu0
        %v4271 = vadd.f32 0.0, %v4270
        %v4272 = vpop.f32.mrb[0].mxu0
        %4273 = vmatprep.mubr.f32.mxu0 0.0
        %4274 = vmatmul.mubr.f32.gmra.mrb[0].mxu0 %v3019
        %v4275 = vpop.f32.mrb[0].mxu0
        %v4276 = vadd.f32 0.0, %v4275
        %v4277 = vpop.f32.mrb[0].mxu0
        %4278 = vmatprep.mubr.f32.mxu0 0.0
        %4279 = vmatmul.mubr.f32.gmra.mrb[0].mxu0 %v3022
        %v4280 = vpop.f32.mrb[0].mxu0
        %v4281 = vadd.f32 0.0, %v4280
        %v4282 = vpop.f32.mrb[0].mxu0
        %4283 = vdwg.mxu0
        %v4285 = vsel %vm2531, %v2243, 0
        %4287 = vmatprep.subr.mxu0 0.0
        %4288 = vmatpush1.msra.mxu0 %v4285
        %4289 = vmatprep.subr.mxu0 0.0
        %4290 = vmatpush1.msra.mxu0 0.0
        %4291 = vmatprep.subr.mxu0 0.0
        %4292 = vmatpush1.msra.mxu0 0.0
        %4293 = vmatprep.subr.mxu0 0.0
        %4294 = vmatpush1.msra.mxu0 0.0
        %4295 = vmatprep.subr.mxu0 0.0
        %4296 = vmatpush1.msra.mxu0 0.0
        %4297 = vmatprep.subr.mxu0 0.0
        %4298 = vmatpush1.msra.mxu0 0.0
        %4299 = vmatprep.subr.mxu0 0.0
        %4300 = vmatpush1.msra.mxu0 0.0
        %4301 = vmatprep.subr.mxu0 0.0
        %4302 = vmatpush1.msra.mxu0 0.0
        %4303 = vmatprep.subr.mxu0 0.0
        %4304 = vmatpush1.msra.mxu0 0.0
        %4305 = vmatprep.subr.mxu0 0.0
        %4306 = vmatpush1.msra.mxu0 0.0
        %4307 = vmatprep.subr.mxu0 0.0
        %4308 = vmatpush1.msra.mxu0 0.0
        %4309 = vmatprep.subr.mxu0 0.0
        %4310 = vmatpush1.msra.mxu0 0.0
        %4311 = vmatprep.subr.mxu0 0.0
        %4312 = vmatpush1.msra.mxu0 0.0
        %4313 = vmatprep.subr.mxu0 0.0
        %4314 = vmatpush1.msra.mxu0 0.0
        %4315 = vmatprep.subr.mxu0 0.0
        %4316 = vmatpush1.msra.mxu0 0.0
        %4317 = vmatprep.subr.mxu0 0.0
        %4318 = vmatpush1.msra.mxu0 0.0
        %4319 = vmatprep.subr.mxu0 0.0
        %4320 = vmatpush1.msra.mxu0 0.0
        %4321 = vmatprep.subr.mxu0 0.0
        %4322 = vmatpush1.msra.mxu0 0.0
        %4323 = vmatprep.subr.mxu0 0.0
        %4324 = vmatpush1.msra.mxu0 0.0
        %4325 = vmatprep.subr.mxu0 0.0
        %4326 = vmatpush1.msra.mxu0 0.0
        %4327 = vmatprep.subr.mxu0 0.0
        %4328 = vmatpush1.msra.mxu0 0.0
        %4329 = vmatprep.subr.mxu0 0.0
        %4330 = vmatpush1.msra.mxu0 0.0
        %4331 = vmatprep.subr.mxu0 0.0
        %4332 = vmatpush1.msra.mxu0 0.0
        %4333 = vmatprep.subr.mxu0 0.0
        %4334 = vmatpush1.msra.mxu0 0.0
        %4335 = vmatprep.subr.mxu0 0.0
        %4336 = vmatpush1.msra.mxu0 0.0
        %4337 = vmatprep.subr.mxu0 0.0
        %4338 = vmatpush1.msra.mxu0 0.0
        %4339 = vmatprep.subr.mxu0 0.0
        %4340 = vmatpush1.msra.mxu0 0.0
        %4341 = vmatprep.subr.mxu0 0.0
        %4342 = vmatpush1.msra.mxu0 0.0
        %4343 = vmatprep.subr.mxu0 0.0
        %4344 = vmatpush1.msra.mxu0 0.0
        %4345 = vmatprep.subr.mxu0 0.0
        %4346 = vmatpush1.msra.mxu0 0.0
        %4347 = vmatprep.subr.mxu0 0.0
        %4348 = vmatpush1.msra.mxu0 0.0
        %4349 = vmatprep.subr.mxu0 0.0
        %4350 = vmatpush1.msra.mxu0 0.0
        %4351 = vmatprep.mubr.f32.mxu0 0.0
        %4352 = vmatmul.mubr.f32.gmra.mrb[0].mxu0 %v3165
        %v4353 = vpop.f32.mrb[0].mxu0
        %v4354 = vadd.f32 0.0, %v4353
        %v4355 = vpop.f32.mrb[0].mxu0
        %4356 = vmatprep.mubr.f32.mxu0 0.0
        %4357 = vmatmul.mubr.f32.gmra.mrb[0].mxu0 %v3168
        %v4358 = vpop.f32.mrb[0].mxu0
        %v4359 = vadd.f32 0.0, %v4358
        %v4360 = vpop.f32.mrb[0].mxu0
        %4361 = vmatprep.mubr.f32.mxu0 0.0
        %4362 = vmatmul.mubr.f32.gmra.mrb[0].mxu0 %v3171
        %v4363 = vpop.f32.mrb[0].mxu0
        %v4364 = vadd.f32 0.0, %v4363
        %v4365 = vpop.f32.mrb[0].mxu0
        %4366 = vmatprep.mubr.f32.mxu0 0.0
        %4367 = vmatmul.mubr.f32.gmra.mrb[0].mxu0 %v3174
        %v4368 = vpop.f32.mrb[0].mxu0
        %v4369 = vadd.f32 0.0, %v4368
        %v4370 = vpop.f32.mrb[0].mxu0
        %4371 = vmatprep.mubr.f32.mxu0 0.0
        %4372 = vmatmul.mubr.f32.gmra.mrb[0].mxu0 %v3177
        %v4373 = vpop.f32.mrb[0].mxu0
        %v4374 = vadd.f32 0.0, %v4373
        %v4375 = vpop.f32.mrb[0].mxu0
        %4376 = vmatprep.mubr.f32.mxu0 0.0
        %4377 = vmatmul.mubr.f32.gmra.mrb[0].mxu0 %v3180
        %v4378 = vpop.f32.mrb[0].mxu0
        %v4379 = vadd.f32 0.0, %v4378
        %v4380 = vpop.f32.mrb[0].mxu0
        %4381 = vmatprep.mubr.f32.mxu0 0.0
        %4382 = vmatmul.mubr.f32.gmra.mrb[0].mxu0 %v3183
        %v4383 = vpop.f32.mrb[0].mxu0
        %v4384 = vadd.f32 0.0, %v4383
        %v4385 = vpop.f32.mrb[0].mxu0
        %4386 = vmatprep.mubr.f32.mxu0 0.0
        %4387 = vmatmul.mubr.f32.gmra.mrb[0].mxu0 %v3186
        %v4388 = vpop.f32.mrb[0].mxu0
        %v4389 = vadd.f32 0.0, %v4388
        %v4390 = vpop.f32.mrb[0].mxu0
        %4391 = vdwg.mxu0
        %v4393 = vsel %vm2531, %v2316, 0
        %4395 = vmatprep.subr.mxu0 0.0
        %4396 = vmatpush1.msra.mxu0 %v4393
        %4397 = vmatprep.subr.mxu0 0.0
        %4398 = vmatpush1.msra.mxu0 0.0
        %4399 = vmatprep.subr.mxu0 0.0
        %4400 = vmatpush1.msra.mxu0 0.0
        %4401 = vmatprep.subr.mxu0 0.0
        %4402 = vmatpush1.msra.mxu0 0.0
        %4403 = vmatprep.subr.mxu0 0.0
        %4404 = vmatpush1.msra.mxu0 0.0
        %4405 = vmatprep.subr.mxu0 0.0
        %4406 = vmatpush1.msra.mxu0 0.0
        %4407 = vmatprep.subr.mxu0 0.0
        %4408 = vmatpush1.msra.mxu0 0.0
        %4409 = vmatprep.subr.mxu0 0.0
        %4410 = vmatpush1.msra.mxu0 0.0
        %4411 = vmatprep.subr.mxu0 0.0
        %4412 = vmatpush1.msra.mxu0 0.0
        %4413 = vmatprep.subr.mxu0 0.0
        %4414 = vmatpush1.msra.mxu0 0.0
        %4415 = vmatprep.subr.mxu0 0.0
        %4416 = vmatpush1.msra.mxu0 0.0
        %4417 = vmatprep.subr.mxu0 0.0
        %4418 = vmatpush1.msra.mxu0 0.0
        %4419 = vmatprep.subr.mxu0 0.0
        %4420 = vmatpush1.msra.mxu0 0.0
        %4421 = vmatprep.subr.mxu0 0.0
        %4422 = vmatpush1.msra.mxu0 0.0
        %4423 = vmatprep.subr.mxu0 0.0
        %4424 = vmatpush1.msra.mxu0 0.0
        %4425 = vmatprep.subr.mxu0 0.0
        %4426 = vmatpush1.msra.mxu0 0.0
        %4427 = vmatprep.subr.mxu0 0.0
        %4428 = vmatpush1.msra.mxu0 0.0
        %4429 = vmatprep.subr.mxu0 0.0
        %4430 = vmatpush1.msra.mxu0 0.0
        %4431 = vmatprep.subr.mxu0 0.0
        %4432 = vmatpush1.msra.mxu0 0.0
        %4433 = vmatprep.subr.mxu0 0.0
        %4434 = vmatpush1.msra.mxu0 0.0
        %4435 = vmatprep.subr.mxu0 0.0
        %4436 = vmatpush1.msra.mxu0 0.0
        %4437 = vmatprep.subr.mxu0 0.0
        %4438 = vmatpush1.msra.mxu0 0.0
        %4439 = vmatprep.subr.mxu0 0.0
        %4440 = vmatpush1.msra.mxu0 0.0
        %4441 = vmatprep.subr.mxu0 0.0
        %4442 = vmatpush1.msra.mxu0 0.0
        %4443 = vmatprep.subr.mxu0 0.0
        %4444 = vmatpush1.msra.mxu0 0.0
        %4445 = vmatprep.subr.mxu0 0.0
        %4446 = vmatpush1.msra.mxu0 0.0
        %4447 = vmatprep.subr.mxu0 0.0
        %4448 = vmatpush1.msra.mxu0 0.0
        %4449 = vmatprep.subr.mxu0 0.0
        %4450 = vmatpush1.msra.mxu0 0.0
        %4451 = vmatprep.subr.mxu0 0.0
        %4452 = vmatpush1.msra.mxu0 0.0
        %4453 = vmatprep.subr.mxu0 0.0
        %4454 = vmatpush1.msra.mxu0 0.0
        %4455 = vmatprep.subr.mxu0 0.0
        %4456 = vmatpush1.msra.mxu0 0.0
        %4457 = vmatprep.subr.mxu0 0.0
        %4458 = vmatpush1.msra.mxu0 0.0
        %4459 = vmatprep.mubr.f32.mxu0 0.0
        %4460 = vmatmul.mubr.f32.gmra.mrb[0].mxu0 %v3329
        %v4461 = vpop.f32.mrb[0].mxu0
        %v4462 = vadd.f32 0.0, %v4461
        %v4463 = vpop.f32.mrb[0].mxu0
        %4464 = vmatprep.mubr.f32.mxu0 0.0
        %4465 = vmatmul.mubr.f32.gmra.mrb[0].mxu0 %v3332
        %v4466 = vpop.f32.mrb[0].mxu0
        %v4467 = vadd.f32 0.0, %v4466
        %v4468 = vpop.f32.mrb[0].mxu0
        %4469 = vmatprep.mubr.f32.mxu0 0.0
        %4470 = vmatmul.mubr.f32.gmra.mrb[0].mxu0 %v3335
        %v4471 = vpop.f32.mrb[0].mxu0
        %v4472 = vadd.f32 0.0, %v4471
        %v4473 = vpop.f32.mrb[0].mxu0
        %4474 = vmatprep.mubr.f32.mxu0 0.0
        %4475 = vmatmul.mubr.f32.gmra.mrb[0].mxu0 %v3338
        %v4476 = vpop.f32.mrb[0].mxu0
        %v4477 = vadd.f32 0.0, %v4476
        %v4478 = vpop.f32.mrb[0].mxu0
        %4479 = vmatprep.mubr.f32.mxu0 0.0
        %4480 = vmatmul.mubr.f32.gmra.mrb[0].mxu0 %v3341
        %v4481 = vpop.f32.mrb[0].mxu0
        %v4482 = vadd.f32 0.0, %v4481
        %v4483 = vpop.f32.mrb[0].mxu0
        %4484 = vmatprep.mubr.f32.mxu0 0.0
        %4485 = vmatmul.mubr.f32.gmra.mrb[0].mxu0 %v3344
        %v4486 = vpop.f32.mrb[0].mxu0
        %v4487 = vadd.f32 0.0, %v4486
        %v4488 = vpop.f32.mrb[0].mxu0
        %4489 = vmatprep.mubr.f32.mxu0 0.0
        %4490 = vmatmul.mubr.f32.gmra.mrb[0].mxu0 %v3347
        %v4491 = vpop.f32.mrb[0].mxu0
        %v4492 = vadd.f32 0.0, %v4491
        %v4493 = vpop.f32.mrb[0].mxu0
        %4494 = vmatprep.mubr.f32.mxu0 0.0
        %4495 = vmatmul.mubr.f32.gmra.mrb[0].mxu0 %v3350
        %v4496 = vpop.f32.mrb[0].mxu0
        %v4497 = vadd.f32 0.0, %v4496
        %v4498 = vpop.f32.mrb[0].mxu0
        %4499 = vdwg.mxu0
        %v4501 = vsel %vm2531, %v2389, 0
        %4503 = vmatprep.subr.mxu0 0.0
        %4504 = vmatpush1.msra.mxu0 %v4501
        %4505 = vmatprep.subr.mxu0 0.0
        %4506 = vmatpush1.msra.mxu0 0.0
        %4507 = vmatprep.subr.mxu0 0.0
        %4508 = vmatpush1.msra.mxu0 0.0
        %4509 = vmatprep.subr.mxu0 0.0
        %4510 = vmatpush1.msra.mxu0 0.0
        %4511 = vmatprep.subr.mxu0 0.0
        %4512 = vmatpush1.msra.mxu0 0.0
        %4513 = vmatprep.subr.mxu0 0.0
        %4514 = vmatpush1.msra.mxu0 0.0
        %4515 = vmatprep.subr.mxu0 0.0
        %4516 = vmatpush1.msra.mxu0 0.0
        %4517 = vmatprep.subr.mxu0 0.0
        %4518 = vmatpush1.msra.mxu0 0.0
        %4519 = vmatprep.subr.mxu0 0.0
        %4520 = vmatpush1.msra.mxu0 0.0
        %4521 = vmatprep.subr.mxu0 0.0
        %4522 = vmatpush1.msra.mxu0 0.0
        %4523 = vmatprep.subr.mxu0 0.0
        %4524 = vmatpush1.msra.mxu0 0.0
        %4525 = vmatprep.subr.mxu0 0.0
        %4526 = vmatpush1.msra.mxu0 0.0
        %4527 = vmatprep.subr.mxu0 0.0
        %4528 = vmatpush1.msra.mxu0 0.0
        %4529 = vmatprep.subr.mxu0 0.0
        %4530 = vmatpush1.msra.mxu0 0.0
        %4531 = vmatprep.subr.mxu0 0.0
        %4532 = vmatpush1.msra.mxu0 0.0
        %4533 = vmatprep.subr.mxu0 0.0
        %4534 = vmatpush1.msra.mxu0 0.0
        %4535 = vmatprep.subr.mxu0 0.0
        %4536 = vmatpush1.msra.mxu0 0.0
        %4537 = vmatprep.subr.mxu0 0.0
        %4538 = vmatpush1.msra.mxu0 0.0
        %4539 = vmatprep.subr.mxu0 0.0
        %4540 = vmatpush1.msra.mxu0 0.0
        %4541 = vmatprep.subr.mxu0 0.0
        %4542 = vmatpush1.msra.mxu0 0.0
        %4543 = vmatprep.subr.mxu0 0.0
        %4544 = vmatpush1.msra.mxu0 0.0
        %4545 = vmatprep.subr.mxu0 0.0
        %4546 = vmatpush1.msra.mxu0 0.0
        %4547 = vmatprep.subr.mxu0 0.0
        %4548 = vmatpush1.msra.mxu0 0.0
        %4549 = vmatprep.subr.mxu0 0.0
        %4550 = vmatpush1.msra.mxu0 0.0
        %4551 = vmatprep.subr.mxu0 0.0
        %4552 = vmatpush1.msra.mxu0 0.0
        %4553 = vmatprep.subr.mxu0 0.0
        %4554 = vmatpush1.msra.mxu0 0.0
        %4555 = vmatprep.subr.mxu0 0.0
        %4556 = vmatpush1.msra.mxu0 0.0
        %4557 = vmatprep.subr.mxu0 0.0
        %4558 = vmatpush1.msra.mxu0 0.0
        %4559 = vmatprep.subr.mxu0 0.0
        %4560 = vmatpush1.msra.mxu0 0.0
        %4561 = vmatprep.subr.mxu0 0.0
        %4562 = vmatpush1.msra.mxu0 0.0
        %4563 = vmatprep.subr.mxu0 0.0
        %4564 = vmatpush1.msra.mxu0 0.0
        %4565 = vmatprep.subr.mxu0 0.0
        %4566 = vmatpush1.msra.mxu0 0.0
        %4567 = vmatprep.mubr.f32.mxu0 0.0
        %4568 = vmatmul.mubr.f32.gmra.mrb[0].mxu0 %v3493
        %v4569 = vpop.f32.mrb[0].mxu0
        %v4570 = vadd.f32 0.0, %v4569
        %v4571 = vpop.f32.mrb[0].mxu0
        %4572 = vmatprep.mubr.f32.mxu0 0.0
        %4573 = vmatmul.mubr.f32.gmra.mrb[0].mxu0 %v3496
        %v4574 = vpop.f32.mrb[0].mxu0
        %v4575 = vadd.f32 0.0, %v4574
        %v4576 = vpop.f32.mrb[0].mxu0
        %4577 = vmatprep.mubr.f32.mxu0 0.0
        %4578 = vmatmul.mubr.f32.gmra.mrb[0].mxu0 %v3499
        %v4579 = vpop.f32.mrb[0].mxu0
        %v4580 = vadd.f32 0.0, %v4579
        %v4581 = vpop.f32.mrb[0].mxu0
        %4582 = vmatprep.mubr.f32.mxu0 0.0
        %4583 = vmatmul.mubr.f32.gmra.mrb[0].mxu0 %v3502
        %v4584 = vpop.f32.mrb[0].mxu0
        %v4585 = vadd.f32 0.0, %v4584
        %v4586 = vpop.f32.mrb[0].mxu0
        %4587 = vmatprep.mubr.f32.mxu0 0.0
        %4588 = vmatmul.mubr.f32.gmra.mrb[0].mxu0 %v3505
        %v4589 = vpop.f32.mrb[0].mxu0
        %v4590 = vadd.f32 0.0, %v4589
        %v4591 = vpop.f32.mrb[0].mxu0
        %4592 = vmatprep.mubr.f32.mxu0 0.0
        %4593 = vmatmul.mubr.f32.gmra.mrb[0].mxu0 %v3508
        %v4594 = vpop.f32.mrb[0].mxu0
        %v4595 = vadd.f32 0.0, %v4594
        %v4596 = vpop.f32.mrb[0].mxu0
        %4597 = vmatprep.mubr.f32.mxu0 0.0
        %4598 = vmatmul.mubr.f32.gmra.mrb[0].mxu0 %v3511
        %v4599 = vpop.f32.mrb[0].mxu0
        %v4600 = vadd.f32 0.0, %v4599
        %v4601 = vpop.f32.mrb[0].mxu0
        %4602 = vmatprep.mubr.f32.mxu0 0.0
        %4603 = vmatmul.mubr.f32.gmra.mrb[0].mxu0 %v3514
        %v4604 = vpop.f32.mrb[0].mxu0
        %v4605 = vadd.f32 0.0, %v4604
        %v4606 = vpop.f32.mrb[0].mxu0
        %4607 = vdwg.mxu0
        %v4609 = vsel %vm2531, %v2462, 0
        %4611 = vmatprep.subr.mxu0 0.0
        %4612 = vmatpush1.msra.mxu0 %v4609
        %4613 = vmatprep.subr.mxu0 0.0
        %4614 = vmatpush1.msra.mxu0 0.0
        %4615 = vmatprep.subr.mxu0 0.0
        %4616 = vmatpush1.msra.mxu0 0.0
        %4617 = vmatprep.subr.mxu0 0.0
        %4618 = vmatpush1.msra.mxu0 0.0
        %4619 = vmatprep.subr.mxu0 0.0
        %4620 = vmatpush1.msra.mxu0 0.0
        %4621 = vmatprep.subr.mxu0 0.0
        %4622 = vmatpush1.msra.mxu0 0.0
        %4623 = vmatprep.subr.mxu0 0.0
        %4624 = vmatpush1.msra.mxu0 0.0
        %4625 = vmatprep.subr.mxu0 0.0
        %4626 = vmatpush1.msra.mxu0 0.0
        %4627 = vmatprep.subr.mxu0 0.0
        %4628 = vmatpush1.msra.mxu0 0.0
        %4629 = vmatprep.subr.mxu0 0.0
        %4630 = vmatpush1.msra.mxu0 0.0
        %4631 = vmatprep.subr.mxu0 0.0
        %4632 = vmatpush1.msra.mxu0 0.0
        %4633 = vmatprep.subr.mxu0 0.0
        %4634 = vmatpush1.msra.mxu0 0.0
        %4635 = vmatprep.subr.mxu0 0.0
        %4636 = vmatpush1.msra.mxu0 0.0
        %4637 = vmatprep.subr.mxu0 0.0
        %4638 = vmatpush1.msra.mxu0 0.0
        %4639 = vmatprep.subr.mxu0 0.0
        %4640 = vmatpush1.msra.mxu0 0.0
        %4641 = vmatprep.subr.mxu0 0.0
        %4642 = vmatpush1.msra.mxu0 0.0
        %4643 = vmatprep.subr.mxu0 0.0
        %4644 = vmatpush1.msra.mxu0 0.0
        %4645 = vmatprep.subr.mxu0 0.0
        %4646 = vmatpush1.msra.mxu0 0.0
        %4647 = vmatprep.subr.mxu0 0.0
        %4648 = vmatpush1.msra.mxu0 0.0
        %4649 = vmatprep.subr.mxu0 0.0
        %4650 = vmatpush1.msra.mxu0 0.0
        %4651 = vmatprep.subr.mxu0 0.0
        %4652 = vmatpush1.msra.mxu0 0.0
        %4653 = vmatprep.subr.mxu0 0.0
        %4654 = vmatpush1.msra.mxu0 0.0
        %4655 = vmatprep.subr.mxu0 0.0
        %4656 = vmatpush1.msra.mxu0 0.0
        %4657 = vmatprep.subr.mxu0 0.0
        %4658 = vmatpush1.msra.mxu0 0.0
        %4659 = vmatprep.subr.mxu0 0.0
        %4660 = vmatpush1.msra.mxu0 0.0
        %4661 = vmatprep.subr.mxu0 0.0
        %4662 = vmatpush1.msra.mxu0 0.0
        %4663 = vmatprep.subr.mxu0 0.0
        %4664 = vmatpush1.msra.mxu0 0.0
        %4665 = vmatprep.subr.mxu0 0.0
        %4666 = vmatpush1.msra.mxu0 0.0
        %4667 = vmatprep.subr.mxu0 0.0
        %4668 = vmatpush1.msra.mxu0 0.0
        %4669 = vmatprep.subr.mxu0 0.0
        %4670 = vmatpush1.msra.mxu0 0.0
        %4671 = vmatprep.subr.mxu0 0.0
        %4672 = vmatpush1.msra.mxu0 0.0
        %4673 = vmatprep.subr.mxu0 0.0
        %4674 = vmatpush1.msra.mxu0 0.0
        %4675 = vmatprep.mubr.f32.mxu0 0.0
        %4676 = vmatmul.mubr.f32.gmra.mrb[0].mxu0 %v3657
        %v4677 = vpop.f32.mrb[0].mxu0
        %v4678 = vadd.f32 0.0, %v4677
        %v4679 = vpop.f32.mrb[0].mxu0
        %4680 = vmatprep.mubr.f32.mxu0 0.0
        %4681 = vmatmul.mubr.f32.gmra.mrb[0].mxu0 %v3660
        %v4682 = vpop.f32.mrb[0].mxu0
        %v4683 = vadd.f32 0.0, %v4682
        %v4684 = vpop.f32.mrb[0].mxu0
        %4685 = vmatprep.mubr.f32.mxu0 0.0
        %4686 = vmatmul.mubr.f32.gmra.mrb[0].mxu0 %v3663
        %v4687 = vpop.f32.mrb[0].mxu0
        %v4688 = vadd.f32 0.0, %v4687
        %v4689 = vpop.f32.mrb[0].mxu0
        %4690 = vmatprep.mubr.f32.mxu0 0.0
        %4691 = vmatmul.mubr.f32.gmra.mrb[0].mxu0 %v3666
        %v4692 = vpop.f32.mrb[0].mxu0
        %v4693 = vadd.f32 0.0, %v4692
        %v4694 = vpop.f32.mrb[0].mxu0
        %4695 = vmatprep.mubr.f32.mxu0 0.0
        %4696 = vmatmul.mubr.f32.gmra.mrb[0].mxu0 %v3669
        %v4697 = vpop.f32.mrb[0].mxu0
        %v4698 = vadd.f32 0.0, %v4697
        %v4699 = vpop.f32.mrb[0].mxu0
        %4700 = vmatprep.mubr.f32.mxu0 0.0
        %4701 = vmatmul.mubr.f32.gmra.mrb[0].mxu0 %v3672
        %v4702 = vpop.f32.mrb[0].mxu0
        %v4703 = vadd.f32 0.0, %v4702
        %v4704 = vpop.f32.mrb[0].mxu0
        %4705 = vmatprep.mubr.f32.mxu0 0.0
        %4706 = vmatmul.mubr.f32.gmra.mrb[0].mxu0 %v3675
        %v4707 = vpop.f32.mrb[0].mxu0
        %v4708 = vadd.f32 0.0, %v4707
        %v4709 = vpop.f32.mrb[0].mxu0
        %4710 = vmatprep.mubr.f32.mxu0 0.0
        %4711 = vmatmul.mubr.f32.gmra.mrb[0].mxu0 %v3678
        %v4712 = vpop.f32.mrb[0].mxu0
        %v4713 = vadd.f32 0.0, %v4712
        %v4714 = vpop.f32.mrb[0].mxu0
        %4715 = vdwg.mxu0
        %4716 = vst.msk [vmem:[%s391] sm:$0xff] %vm667, %v3922
        %4717 = vst.msk [vmem:[%s391 + $0x8] sm:$0xff] %vm667, %v3927
        %4718 = vst.msk [vmem:[%s391 + $0x10] sm:$0xff] %vm667, %v3932
        %4719 = vst.msk [vmem:[%s391 + $0x18] sm:$0xff] %vm667, %v3937
        %4720 = vst.msk [vmem:[%s391 + $0x20] sm:$0xff] %vm667, %v3942
        %4721 = vst.msk [vmem:[%s391 + $0x28] sm:$0xff] %vm667, %v3947
        %4722 = vst.msk [vmem:[%s391 + $0x30] sm:$0xff] %vm667, %v3952
        %4723 = vst.msk [vmem:[%s391 + $0x38] sm:$0xff] %vm667, %v3957
        %4724 = vst.msk [vmem:[%s391 + $0x40] sm:$0xff] %vm667, %v4030
        %4725 = vst.msk [vmem:[%s391 + $0x48] sm:$0xff] %vm667, %v4035
        %4726 = vst.msk [vmem:[%s391 + $0x50] sm:$0xff] %vm667, %v4040
        %4727 = vst.msk [vmem:[%s391 + $0x58] sm:$0xff] %vm667, %v4045
        %4728 = vst.msk [vmem:[%s391 + $0x60] sm:$0xff] %vm667, %v4050
        %4729 = vst.msk [vmem:[%s391 + $0x68] sm:$0xff] %vm667, %v4055
        %4730 = vst.msk [vmem:[%s391 + $0x70] sm:$0xff] %vm667, %v4060
        %4731 = vst.msk [vmem:[%s391 + $0x78] sm:$0xff] %vm667, %v4065
        %4732 = vst.msk [vmem:[%s391 + $0x80] sm:$0xff] %vm667, %v4138
        %4733 = vst.msk [vmem:[%s391 + $0x88] sm:$0xff] %vm667, %v4143
        %4734 = vst.msk [vmem:[%s391 + $0x90] sm:$0xff] %vm667, %v4148
        %4735 = vst.msk [vmem:[%s391 + $0x98] sm:$0xff] %vm667, %v4153
        %4736 = vst.msk [vmem:[%s391 + $0xa0] sm:$0xff] %vm667, %v4158
        %4737 = vst.msk [vmem:[%s391 + $0xa8] sm:$0xff] %vm667, %v4163
        %4738 = vst.msk [vmem:[%s391 + $0xb0] sm:$0xff] %vm667, %v4168
        %4739 = vst.msk [vmem:[%s391 + $0xb8] sm:$0xff] %vm667, %v4173
        %4740 = vst.msk [vmem:[%s391 + $0xc0] sm:$0xff] %vm667, %v4246
        %4741 = vst.msk [vmem:[%s391 + $0xc8] sm:$0xff] %vm667, %v4251
        %4742 = vst.msk [vmem:[%s391 + $0xd0] sm:$0xff] %vm667, %v4256
        %4743 = vst.msk [vmem:[%s391 + $0xd8] sm:$0xff] %vm667, %v4261
        %4744 = vst.msk [vmem:[%s391 + $0xe0] sm:$0xff] %vm667, %v4266
        %4745 = vst.msk [vmem:[%s391 + $0xe8] sm:$0xff] %vm667, %v4271
        %4746 = vst.msk [vmem:[%s391 + $0xf0] sm:$0xff] %vm667, %v4276
        %4747 = vst.msk [vmem:[%s391 + $0xf8] sm:$0xff] %vm667, %v4281
        %4748 = vst.msk [vmem:[%s391 + $0x100] sm:$0xff] %vm667, %v4354
        %4749 = vst.msk [vmem:[%s391 + $0x108] sm:$0xff] %vm667, %v4359
        %4750 = vst.msk [vmem:[%s391 + $0x110] sm:$0xff] %vm667, %v4364
        %4751 = vst.msk [vmem:[%s391 + $0x118] sm:$0xff] %vm667, %v4369
        %4752 = vst.msk [vmem:[%s391 + $0x120] sm:$0xff] %vm667, %v4374
        %4753 = vst.msk [vmem:[%s391 + $0x128] sm:$0xff] %vm667, %v4379
        %4754 = vst.msk [vmem:[%s391 + $0x130] sm:$0xff] %vm667, %v4384
        %4755 = vst.msk [vmem:[%s391 + $0x138] sm:$0xff] %vm667, %v4389
        %4756 = vst.msk [vmem:[%s391 + $0x140] sm:$0xff] %vm667, %v4462
        %4757 = vst.msk [vmem:[%s391 + $0x148] sm:$0xff] %vm667, %v4467
        %4758 = vst.msk [vmem:[%s391 + $0x150] sm:$0xff] %vm667, %v4472
        %4759 = vst.msk [vmem:[%s391 + $0x158] sm:$0xff] %vm667, %v4477
        %4760 = vst.msk [vmem:[%s391 + $0x160] sm:$0xff] %vm667, %v4482
        %4761 = vst.msk [vmem:[%s391 + $0x168] sm:$0xff] %vm667, %v4487
        %4762 = vst.msk [vmem:[%s391 + $0x170] sm:$0xff] %vm667, %v4492
        %4763 = vst.msk [vmem:[%s391 + $0x178] sm:$0xff] %vm667, %v4497
        %4764 = vst.msk [vmem:[%s391 + $0x180] sm:$0xff] %vm667, %v4570
        %4765 = vst.msk [vmem:[%s391 + $0x188] sm:$0xff] %vm667, %v4575
        %4766 = vst.msk [vmem:[%s391 + $0x190] sm:$0xff] %vm667, %v4580
        %4767 = vst.msk [vmem:[%s391 + $0x198] sm:$0xff] %vm667, %v4585
        %4768 = vst.msk [vmem:[%s391 + $0x1a0] sm:$0xff] %vm667, %v4590
        %4769 = vst.msk [vmem:[%s391 + $0x1a8] sm:$0xff] %vm667, %v4595
        %4770 = vst.msk [vmem:[%s391 + $0x1b0] sm:$0xff] %vm667, %v4600
        %4771 = vst.msk [vmem:[%s391 + $0x1b8] sm:$0xff] %vm667, %v4605
        %4772 = vst.msk [vmem:[%s391 + $0x1c0] sm:$0xff] %vm667, %v4678
        %4773 = vst.msk [vmem:[%s391 + $0x1c8] sm:$0xff] %vm667, %v4683
        %4774 = vst.msk [vmem:[%s391 + $0x1d0] sm:$0xff] %vm667, %v4688
        %4775 = vst.msk [vmem:[%s391 + $0x1d8] sm:$0xff] %vm667, %v4693
        %4776 = vst.msk [vmem:[%s391 + $0x1e0] sm:$0xff] %vm667, %v4698
        %4777 = vst.msk [vmem:[%s391 + $0x1e8] sm:$0xff] %vm667, %v4703
        %4778 = vst.msk [vmem:[%s391 + $0x1f0] sm:$0xff] %vm667, %v4708
        %4779 = vst.msk [vmem:[%s391 + $0x1f8] sm:$0xff] %vm667, %v4713
        %s4780 = smul.u32 8, %s20
        %p4781 = scmp.lt.s32.totalorder %s4780, 15
        %s4782 = scalar_select %p4781, %s4780, 15
        %s4783 = smul.addr %s4782, 8
        %s4784 = smul.addr %s4783, 8
        %s4785 = scalar_lea.vmem %s5, %s4784
        %s4786 = smul.u32 8, %s20
        %p4787 = scmp.lt.s32.totalorder %s4786, 15
        %s4788 = scalar_select %p4787, %s4786, 15
        %s4789 = smul.addr %s4788, 8
        %s4790 = smul.addr %s4789, 8
        %s4791 = scalar_lea.vmem %s6, %s4790
        %s4792 = smul.u32 8, %s20
        %p4793 = scmp.lt.s32.totalorder %s4792, 15
        %s4794 = scalar_select %p4793, %s4792, 15
        %s4795 = smul.addr %s4794, 4
        %s4796 = scalar_lea.vmem %s7, %s4795
        // Predicated region
        $region45: #{cluster_forward.4} parent=39 // pred_check
          %p4797 = pneg %p163
        $region46: #{cluster_forward.4} parent=39 // pred_check_branch
          %4799 = sbr.rel (%p4797) target = $region48
        $region47: #{cluster_forward.4} parent=39 // pred_region
          %s4800 = smul.u32 8, %s20
        $region48: #{cluster_forward.4} parent=39 // pred_fallthru
          _
        // Predicated region
        $region49: #{cluster_forward.4} parent=39 // pred_check
          %p4801 = pneg %p189
        $region50: #{cluster_forward.4} parent=39 // pred_check_branch
          %4803 = sbr.rel (%p4801) target = $region52
        $region51: #{cluster_forward.4} parent=39 // pred_region
          %s4804 = smul.u32 8, %s20
        $region52: #{cluster_forward.4} parent=39 // pred_fallthru
          _
        // Predicated region
        $region53: #{cluster_forward.4} parent=39 // pred_check
          %p4805 = pneg %p215
        $region54: #{cluster_forward.4} parent=39 // pred_check_branch
          %4807 = sbr.rel (%p4805) target = $region56
        $region55: #{cluster_forward.4} parent=39 // pred_region
          %s4808 = smul.u32 8, %s20
        $region56: #{cluster_forward.4} parent=39 // pred_fallthru
          _
      $region40: #{cluster_forward.4} parent=5 // pred_fallthru
        _
      %p4809 = scmp.le.s32.totalorder 2, %s15
      // Predicated region
      $region57: #{cluster_forward.4} parent=5 // pred_check
        %p4810 = pneg %p4809
      $region58: #{cluster_forward.4} parent=5 // pred_check_branch
        %4812 = sbr.rel (%p4810) target = $region60
      $region59: #{cluster_forward.4} parent=5 // pred_region
        %s4813 = ssub.s32 %s15, 2
        // Predicated region
        $region61: #{cluster_forward.4} parent=59 // pred_check
          %p4814 = pneg %p169
        $region62: #{cluster_forward.4} parent=59 // pred_check_branch
          %4816 = sbr.rel (%p4814) target = $region64
        $region63: #{cluster_forward.4} parent=59 // pred_region
          %s4817 = smul.u32 8, %s21
          %p4818 = scmp.lt.s32.totalorder %s4817, 15
          %s4819 = scalar_select %p4818, %s4817, 15
          %s4820 = smul.addr %s4819, 8
          %s4821 = smul.addr %s4820, 8
          %s4822 = scalar_lea.vmem %s5, %s4821
        $region64: #{cluster_forward.4} parent=59 // pred_fallthru
          _
        // Predicated region
        $region65: #{cluster_forward.4} parent=59 // pred_check
          %p4823 = pneg %p195
        $region66: #{cluster_forward.4} parent=59 // pred_check_branch
          %4825 = sbr.rel (%p4823) target = $region68
        $region67: #{cluster_forward.4} parent=59 // pred_region
          %s4826 = smul.u32 8, %s21
          %p4827 = scmp.lt.s32.totalorder %s4826, 15
          %s4828 = scalar_select %p4827, %s4826, 15
          %s4829 = smul.addr %s4828, 8
          %s4830 = smul.addr %s4829, 8
          %s4831 = scalar_lea.vmem %s6, %s4830
        $region68: #{cluster_forward.4} parent=59 // pred_fallthru
          _
        // Predicated region
        $region69: #{cluster_forward.4} parent=59 // pred_check
          %p4832 = pneg %p221
        $region70: #{cluster_forward.4} parent=59 // pred_check_branch
          %4834 = sbr.rel (%p4832) target = $region72
        $region71: #{cluster_forward.4} parent=59 // pred_region
          %s4835 = smul.u32 8, %s21
          %p4836 = scmp.lt.s32.totalorder %s4835, 15
          %s4837 = scalar_select %p4836, %s4835, 15
          %s4838 = smul.addr %s4837, 4
          %s4839 = scalar_lea.vmem %s7, %s4838
        $region72: #{cluster_forward.4} parent=59 // pred_fallthru
          _
      $region60: #{cluster_forward.4} parent=5 // pred_fallthru
        _
    $region6: #{cluster_forward.4} parent=1 // loop_footer
      %s19 = sadd.s32 1, %s15
    $region7: #{cluster_forward.4} parent=1 // loop_footer_branch
      %14 = sbr.rel target = $region3
    $region8: #{cluster_forward.4} parent=1 // loop_exit
      _
    %4840 = vsyncpa [#allocation3], 1
    %s4841 = scalar_lea.sflag [#allocation3], 1
    %4842 = vsyncpa %s4841, 1

// kernel: cluster_forward.5
$region0: #{cluster_forward.5}
  #allocation0 [shape = 'u32[]', space=smem, size = 0x4, offset = 0x4, fixed_abs, tag = 'smem constant byte address 0x4 - core index']
  #allocation1 [shape = 'u32[144,128]{1,0:T(1,128)}', space=vmem, size = 0x12000, scoped, tag = 'internal scratch']
  %s0 = inlined_call_operand.vmem [shape: f32[512,16], index: 0, kind: input, shape index: {}]
  %s1 = inlined_call_operand.vmem [shape: f32[16,8], index: 1, kind: input, shape index: {}]
  %s2 = inlined_call_operand.vmem [shape: f32[1,8], index: 2, kind: input, shape index: {}]
  %s3 = inlined_call_operand.vmem [shape: f32[512,8], index: 3, kind: output, shape index: {}]
  %s4 = sld [smem:[#allocation0]]
  $region45: #{cluster_forward.5} parent=0
    _
  %s6 = ssub.s32 1, %s4
  %s7 = scalar_select 0, %s6, %s4
  loop: start=0, step=1, limit=4
  $region2: #{cluster_forward.5} parent=0 // loop_pre_header
    _
  $region3: #{cluster_forward.5} parent=0 // loop_header
    %s9 = sphi 0, %s13
    %p10 = scmp.ge.s32.totalorder %s9, 4
    %s19 = sphi 0, %s21
    %s22 = sphi 0, %s19
    %s23 = sphi 0, %s22
    %s39 = sphi 0, %s23
    %s43 = sphi 0, %s43
    %s45 = sphi 0, %s43
    %s46 = sphi 0, %s45
    %s60 = sphi 0, %s46
    %s64 = sphi 0, %s64
    %s66 = sphi 0, %s64
    %s67 = sphi 0, %s66
    %s81 = sphi 0, %s67
    %s87 = sphi 0, %s89
    %s90 = sphi 0, %s87
    %s91 = sphi 0, %s90
    %s107 = sphi 0, %s91
  $region4: #{cluster_forward.5} parent=0 // loop_header_branch
    %12 = sbr.rel (%p10) target = $region8
  $region5: #{cluster_forward.5} parent=0 // loop_body
    %s14 = ssub.s32 %s9, 1
    %s15 = ssub.s32 %s9, 2
    %s16 = sadd.s32 %s9, 1
    %s17 = ssub.s32 %s9, %s16
    %p18 = scmp.eq.s32.totalorder %s17, 0
    %s20 = sadd.s32 %s19, 1
    %s21 = scalar_select %p18, %s19, %s20
    %p24 = pneg %p18
    %p25 = scmp.eq.s32.totalorder %s9, 1
    %p26 = por %p24, %p25
    %p27 = scmp.ne.s32.totalorder %s19, %s22
    %p28 = scmp.eq.s32.totalorder %s9, 0
    %p29 = por %p27, %p28
    %p30 = scmp.ne.s32.totalorder %s19, %s22
    %p31 = scmp.eq.s32.totalorder %s14, 1
    %p32 = por %p30, %p31
    %p33 = scmp.ne.s32.totalorder %s22, %s23
    %p34 = scmp.eq.s32.totalorder %s14, 0
    %p35 = por %p33, %p34
    %p36 = scmp.ne.s32.totalorder %s22, %s23
    %p37 = scmp.eq.s32.totalorder %s15, 1
    %p38 = por %p36, %p37
    %p40 = scmp.ne.s32.totalorder %s23, %s39
    %p41 = scmp.eq.s32.totalorder %s15, 0
    %p42 = por %p40, %p41
    %s44 = sadd.s32 %s43, 1
    %p47 = scmp.eq.s32.totalorder %s9, 1
    %p48 = scmp.ne.s32.totalorder %s43, %s45
    %p49 = scmp.eq.s32.totalorder %s9, 0
    %p50 = por %p48, %p49
    %p51 = scmp.ne.s32.totalorder %s43, %s45
    %p52 = scmp.eq.s32.totalorder %s14, 1
    %p53 = por %p51, %p52
    %p54 = scmp.ne.s32.totalorder %s45, %s46
    %p55 = scmp.eq.s32.totalorder %s14, 0
    %p56 = por %p54, %p55
    %p57 = scmp.ne.s32.totalorder %s45, %s46
    %p58 = scmp.eq.s32.totalorder %s15, 1
    %p59 = por %p57, %p58
    %p61 = scmp.ne.s32.totalorder %s46, %s60
    %p62 = scmp.eq.s32.totalorder %s15, 0
    %p63 = por %p61, %p62
    %s65 = sadd.s32 %s64, 1
    %p68 = scmp.eq.s32.totalorder %s9, 1
    %p69 = scmp.ne.s32.totalorder %s64, %s66
    %p70 = scmp.eq.s32.totalorder %s9, 0
    %p71 = por %p69, %p70
    %p72 = scmp.ne.s32.totalorder %s64, %s66
    %p73 = scmp.eq.s32.totalorder %s14, 1
    %p74 = por %p72, %p73
    %p75 = scmp.ne.s32.totalorder %s66, %s67
    %p76 = scmp.eq.s32.totalorder %s14, 0
    %p77 = por %p75, %p76
    %p78 = scmp.ne.s32.totalorder %s66, %s67
    %p79 = scmp.eq.s32.totalorder %s15, 1
    %p80 = por %p78, %p79
    %p82 = scmp.ne.s32.totalorder %s67, %s81
    %p83 = scmp.eq.s32.totalorder %s15, 0
    %p84 = por %p82, %p83
    %s85 = ssub.s32 %s9, %s16
    %p86 = scmp.eq.s32.totalorder %s85, 0
    %s88 = sadd.s32 %s87, 1
    %s89 = scalar_select %p86, %s87, %s88
    %p92 = pneg %p86
    %p93 = scmp.eq.s32.totalorder %s9, 1
    %p94 = por %p92, %p93
    %p95 = scmp.ne.s32.totalorder %s87, %s90
    %p96 = scmp.eq.s32.totalorder %s9, 0
    %p97 = por %p95, %p96
    %p98 = scmp.ne.s32.totalorder %s87, %s90
    %p99 = scmp.eq.s32.totalorder %s14, 1
    %p100 = por %p98, %p99
    %p101 = scmp.ne.s32.totalorder %s90, %s91
    %p102 = scmp.eq.s32.totalorder %s14, 0
    %p103 = por %p101, %p102
    %p104 = scmp.ne.s32.totalorder %s90, %s91
    %p105 = scmp.eq.s32.totalorder %s15, 1
    %p106 = por %p104, %p105
    %p108 = scmp.ne.s32.totalorder %s91, %s107
    %p109 = scmp.eq.s32.totalorder %s15, 0
    %p110 = por %p108, %p109
    %p111 = scmp.le.s32.totalorder 1, %s9
    %p112 = scmp.lt.s32.totalorder %s9, 3
    %p113 = pnand %p111, %p112
    %p114 = pneg %p113
    // Predicated region
    $region9: #{cluster_forward.5} parent=5 // pred_check
      _
    $region10: #{cluster_forward.5} parent=5 // pred_check_branch
      %116 = sbr.rel (%p113) target = $region12
    $region11: #{cluster_forward.5} parent=5 // pred_region
      %s117 = ssub.s32 %s9, 1
      // Predicated region
      $region13: #{cluster_forward.5} parent=11 // pred_check
        %p118 = pneg %p56
      $region14: #{cluster_forward.5} parent=11 // pred_check_branch
        %120 = sbr.rel (%p118) target = $region16
      $region15: #{cluster_forward.5} parent=11 // pred_region
        _
      $region16: #{cluster_forward.5} parent=11 // pred_fallthru
        _
      // Predicated region
      $region17: #{cluster_forward.5} parent=11 // pred_check
        %p121 = pneg %p77
      $region18: #{cluster_forward.5} parent=11 // pred_check_branch
        %123 = sbr.rel (%p121) target = $region20
      $region19: #{cluster_forward.5} parent=11 // pred_region
        _
      $region20: #{cluster_forward.5} parent=11 // pred_fallthru
        _
    $region12: #{cluster_forward.5} parent=5 // pred_fallthru
      _
    %p124 = scmp.lt.s32.totalorder %s9, 2
    // Predicated region
    $region21: #{cluster_forward.5} parent=5 // pred_check
      %p125 = pneg %p124
    $region22: #{cluster_forward.5} parent=5 // pred_check_branch
      %127 = sbr.rel (%p125) target = $region24
    $region23: #{cluster_forward.5} parent=5 // pred_region
      // Predicated region
      $region25: #{cluster_forward.5} parent=23 // pred_check
        %p128 = pneg %p29
      $region26: #{cluster_forward.5} parent=23 // pred_check_branch
        %130 = sbr.rel (%p128) target = $region28
      $region27: #{cluster_forward.5} parent=23 // pred_region
        %s131 = smul.u32 32, %s9
        %p132 = scmp.lt.s32.totalorder %s131, 63
        %s133 = scalar_select %p132, %s131, 63
        %s134 = smul.addr %s133, 8
        %s135 = scalar_lea.vmem %s0, %s134
        %s136 = smul.u32 32, %s9
      $region28: #{cluster_forward.5} parent=23 // pred_fallthru
        _
    $region24: #{cluster_forward.5} parent=5 // pred_fallthru
      _
    %p137 = scmp.le.s32.totalorder 1, %s9
    %p138 = scmp.lt.s32.totalorder %s9, 3
    %p139 = pnand %p137, %p138
    %p140 = pneg %p139
    // Predicated region
    $region29: #{cluster_forward.5} parent=5 // pred_check
      _
    $region30: #{cluster_forward.5} parent=5 // pred_check_branch
      %142 = sbr.rel (%p139) target = $region32
    $region31: #{cluster_forward.5} parent=5 // pred_region
      %s143 = ssub.s32 %s9, 1
      %s144 = smul.u32 32, %s14
      %p145 = scmp.lt.s32.totalorder %s144, 63
      %s146 = scalar_select %p145, %s144, 63
      %s147 = smul.addr %s146, 8
      %s148 = scalar_lea.vmem %s0, %s147
      %p149 = pneg %p35
      %p150 = pneg %p32
      %p151 = pneg %p56
      %p152 = pneg %p53
      %p153 = pneg %p77
      %p154 = pneg %p74
      %p155 = pneg %p103
      %p156 = pneg %p100
      %s157 = smul.u32 32, %s14
      %p158 = scmp.lt.s32.totalorder %s157, 63
      %s159 = scalar_select %p158, %s157, 63
      %s160 = smul.addr %s159, 8
      %s161 = scalar_lea.vmem %s3, %s160
      %s162 = smul.u32 32, %s14
      %p163 = scmp.lt.s32.totalorder %s162, 63
      %s164 = scalar_select %p163, %s162, 63
      %s165 = smul.addr %s164, 8
      %s166 = scalar_lea.vmem %s0, %s165
      %s167 = smul.u32 32, %s14
      %s168 = smul.u32 32, %s14
      %p169 = scmp.lt.s32.totalorder %s168, 63
      %s170 = scalar_select %p169, %s168, 63
      %s171 = smul.addr %s170, 8
      %s172 = scalar_lea.vmem %s3, %s171
      %s173 = smul.u32 32, %s14
      %v174 = vld [vmem:[%s166] sm:$0xff]
      %v175 = vld [vmem:[%s166 + $0x8] sm:$0xff]
      %v176 = vld [vmem:[%s166 + $0x10] sm:$0xff]
      %v177 = vld [vmem:[%s166 + $0x18] sm:$0xff]
      %v178 = vld [vmem:[%s166 + $0x20] sm:$0xff]
      %v179 = vld [vmem:[%s166 + $0x28] sm:$0xff]
      %v180 = vld [vmem:[%s166 + $0x30] sm:$0xff]
      %v181 = vld [vmem:[%s166 + $0x38] sm:$0xff]
      %v182 = vld [vmem:[%s166 + $0x40] sm:$0xff]
      %v183 = vld [vmem:[%s166 + $0x48] sm:$0xff]
      %v184 = vld [vmem:[%s166 + $0x50] sm:$0xff]
      %v185 = vld [vmem:[%s166 + $0x58] sm:$0xff]
      %v186 = vld [vmem:[%s166 + $0x60] sm:$0xff]
      %v187 = vld [vmem:[%s166 + $0x68] sm:$0xff]
      %v188 = vld [vmem:[%s166 + $0x70] sm:$0xff]
      %v189 = vld [vmem:[%s166 + $0x78] sm:$0xff]
      %v190 = vld [vmem:[%s166 + $0x80] sm:$0xff]
      %v191 = vld [vmem:[%s166 + $0x88] sm:$0xff]
      %v192 = vld [vmem:[%s166 + $0x90] sm:$0xff]
      %v193 = vld [vmem:[%s166 + $0x98] sm:$0xff]
      %v194 = vld [vmem:[%s166 + $0xa0] sm:$0xff]
      %v195 = vld [vmem:[%s166 + $0xa8] sm:$0xff]
      %v196 = vld [vmem:[%s166 + $0xb0] sm:$0xff]
      %v197 = vld [vmem:[%s166 + $0xb8] sm:$0xff]
      %v198 = vld [vmem:[%s166 + $0xc0] sm:$0xff]
      %v199 = vld [vmem:[%s166 + $0xc8] sm:$0xff]
      %v200 = vld [vmem:[%s166 + $0xd0] sm:$0xff]
      %v201 = vld [vmem:[%s166 + $0xd8] sm:$0xff]
      %v202 = vld [vmem:[%s166 + $0xe0] sm:$0xff]
      %v203 = vld [vmem:[%s166 + $0xe8] sm:$0xff]
      %v204 = vld [vmem:[%s166 + $0xf0] sm:$0xff]
      %v205 = vld [vmem:[%s166 + $0xf8] sm:$0xff]
      %v206 = vld [vmem:[%s1] sm:$0xff]
      %v207 = vld [vmem:[%s1 + $0x8] sm:$0xff]
      %v208 = vld [vmem:[%s2] sm:$0x1]
      %v210 = vlaneseq
      %v211 = vshrl.u32 %v210, 7
      %v212 = vsub.s32 0, %v211
      %v213 = vrot.slane %v208, %v212
      %vm215 = vcmask 130048
      %v217 = vsel %vm215, %v174, 0
      %v220 = vsel %vm215, %v175, 0
      %v223 = vsel %vm215, %v176, 0
      %v226 = vsel %vm215, %v177, 0
      %v229 = vsel %vm215, %v178, 0
      %v232 = vsel %vm215, %v179, 0
      %v235 = vsel %vm215, %v180, 0
      %v238 = vsel %vm215, %v181, 0
      %v241 = vsel %vm215, %v182, 0
      %v244 = vsel %vm215, %v183, 0
      %v247 = vsel %vm215, %v184, 0
      %v250 = vsel %vm215, %v185, 0
      %v253 = vsel %vm215, %v186, 0
      %v256 = vsel %vm215, %v187, 0
      %v259 = vsel %vm215, %v188, 0
      %v262 = vsel %vm215, %v189, 0
      %v265 = vsel %vm215, %v190, 0
      %v268 = vsel %vm215, %v191, 0
      %v271 = vsel %vm215, %v192, 0
      %v274 = vsel %vm215, %v193, 0
      %v277 = vsel %vm215, %v194, 0
      %v280 = vsel %vm215, %v195, 0
      %v283 = vsel %vm215, %v196, 0
      %v286 = vsel %vm215, %v197, 0
      %v289 = vsel %vm215, %v198, 0
      %v292 = vsel %vm215, %v199, 0
      %v295 = vsel %vm215, %v200, 0
      %v298 = vsel %vm215, %v201, 0
      %v301 = vsel %vm215, %v202, 0
      %v304 = vsel %vm215, %v203, 0
      %v307 = vsel %vm215, %v204, 0
      %v310 = vsel %vm215, %v205, 0
      %312 = vmatprep.subr.mxu0 0.0
      %313 = vmatpush1.msra.mxu0 %v206
      %314 = vmatprep.subr.mxu0 0.0
      %315 = vmatpush1.msra.mxu0 %v207
      %316 = vmatprep.subr.mxu0 0.0
      %317 = vmatpush1.msra.mxu0 0.0
      %318 = vmatprep.subr.mxu0 0.0
      %319 = vmatpush1.msra.mxu0 0.0
      %320 = vmatprep.subr.mxu0 0.0
      %321 = vmatpush1.msra.mxu0 0.0
      %322 = vmatprep.subr.mxu0 0.0
      %323 = vmatpush1.msra.mxu0 0.0
      %324 = vmatprep.subr.mxu0 0.0
      %325 = vmatpush1.msra.mxu0 0.0
      %326 = vmatprep.subr.mxu0 0.0
      %327 = vmatpush1.msra.mxu0 0.0
      %328 = vmatprep.subr.mxu0 0.0
      %329 = vmatpush1.msra.mxu0 0.0
      %330 = vmatprep.subr.mxu0 0.0
      %331 = vmatpush1.msra.mxu0 0.0
      %332 = vmatprep.subr.mxu0 0.0
      %333 = vmatpush1.msra.mxu0 0.0
      %334 = vmatprep.subr.mxu0 0.0
      %335 = vmatpush1.msra.mxu0 0.0
      %336 = vmatprep.subr.mxu0 0.0
      %337 = vmatpush1.msra.mxu0 0.0
      %338 = vmatprep.subr.mxu0 0.0
      %339 = vmatpush1.msra.mxu0 0.0
      %340 = vmatprep.subr.mxu0 0.0
      %341 = vmatpush1.msra.mxu0 0.0
      %342 = vmatprep.subr.mxu0 0.0
      %343 = vmatpush1.msra.mxu0 0.0
      %344 = vmatprep.subr.mxu0 0.0
      %345 = vmatpush1.msra.mxu0 0.0
      %346 = vmatprep.subr.mxu0 0.0
      %347 = vmatpush1.msra.mxu0 0.0
      %348 = vmatprep.subr.mxu0 0.0
      %349 = vmatpush1.msra.mxu0 0.0
      %350 = vmatprep.subr.mxu0 0.0
      %351 = vmatpush1.msra.mxu0 0.0
      %352 = vmatprep.subr.mxu0 0.0
      %353 = vmatpush1.msra.mxu0 0.0
      %354 = vmatprep.subr.mxu0 0.0
      %355 = vmatpush1.msra.mxu0 0.0
      %356 = vmatprep.subr.mxu0 0.0
      %357 = vmatpush1.msra.mxu0 0.0
      %358 = vmatprep.subr.mxu0 0.0
      %359 = vmatpush1.msra.mxu0 0.0
      %360 = vmatprep.subr.mxu0 0.0
      %361 = vmatpush1.msra.mxu0 0.0
      %362 = vmatprep.subr.mxu0 0.0
      %363 = vmatpush1.msra.mxu0 0.0
      %364 = vmatprep.subr.mxu0 0.0
      %365 = vmatpush1.msra.mxu0 0.0
      %366 = vmatprep.subr.mxu0 0.0
      %367 = vmatpush1.msra.mxu0 0.0
      %368 = vmatprep.subr.mxu0 0.0
      %369 = vmatpush1.msra.mxu0 0.0
      %370 = vmatprep.subr.mxu0 0.0
      %371 = vmatpush1.msra.mxu0 0.0
      %372 = vmatprep.subr.mxu0 0.0
      %373 = vmatpush1.msra.mxu0 0.0
      %374 = vmatprep.subr.mxu0 0.0
      %375 = vmatpush1.msra.mxu0 0.0
      %376 = vmatprep.mubr.f32.mxu0 0.0
      %377 = vmatmul.mubr.f32.gmra.mrb[0].mxu0 %v217
      %v378 = vpop.f32.mrb[0].mxu0
      %v379 = vadd.f32 %v213, %v378
      %v380 = vpop.f32.mrb[0].mxu0
      %381 = vmatprep.mubr.f32.mxu0 0.0
      %382 = vmatmul.mubr.f32.gmra.mrb[0].mxu0 %v220
      %v383 = vpop.f32.mrb[0].mxu0
      %v384 = vadd.f32 %v213, %v383
      %v385 = vpop.f32.mrb[0].mxu0
      %386 = vmatprep.mubr.f32.mxu0 0.0
      %387 = vmatmul.mubr.f32.gmra.mrb[0].mxu0 %v223
      %v388 = vpop.f32.mrb[0].mxu0
      %v389 = vadd.f32 %v213, %v388
      %v390 = vpop.f32.mrb[0].mxu0
      %391 = vmatprep.mubr.f32.mxu0 0.0
      %392 = vmatmul.mubr.f32.gmra.mrb[0].mxu0 %v226
      %v393 = vpop.f32.mrb[0].mxu0
      %v394 = vadd.f32 %v213, %v393
      %v395 = vpop.f32.mrb[0].mxu0
      %396 = vmatprep.mubr.f32.mxu0 0.0
      %397 = vmatmul.mubr.f32.gmra.mrb[0].mxu0 %v229
      %v398 = vpop.f32.mrb[0].mxu0
      %v399 = vadd.f32 %v213, %v398
      %v400 = vpop.f32.mrb[0].mxu0
      %401 = vmatprep.mubr.f32.mxu0 0.0
      %402 = vmatmul.mubr.f32.gmra.mrb[0].mxu0 %v232
      %v403 = vpop.f32.mrb[0].mxu0
      %v404 = vadd.f32 %v213, %v403
      %v405 = vpop.f32.mrb[0].mxu0
      %406 = vmatprep.mubr.f32.mxu0 0.0
      %407 = vmatmul.mubr.f32.gmra.mrb[0].mxu0 %v235
      %v408 = vpop.f32.mrb[0].mxu0
      %v409 = vadd.f32 %v213, %v408
      %v410 = vpop.f32.mrb[0].mxu0
      %411 = vmatprep.mubr.f32.mxu0 0.0
      %412 = vmatmul.mubr.f32.gmra.mrb[0].mxu0 %v238
      %v413 = vpop.f32.mrb[0].mxu0
      %v414 = vadd.f32 %v213, %v413
      %v415 = vpop.f32.mrb[0].mxu0
      %416 = vmatprep.mubr.f32.mxu0 0.0
      %417 = vmatmul.mubr.f32.gmra.mrb[0].mxu0 %v241
      %v418 = vpop.f32.mrb[0].mxu0
      %v419 = vadd.f32 %v213, %v418
      %v420 = vpop.f32.mrb[0].mxu0
      %421 = vmatprep.mubr.f32.mxu0 0.0
      %422 = vmatmul.mubr.f32.gmra.mrb[0].mxu0 %v244
      %v423 = vpop.f32.mrb[0].mxu0
      %v424 = vadd.f32 %v213, %v423
      %v425 = vpop.f32.mrb[0].mxu0
      %426 = vmatprep.mubr.f32.mxu0 0.0
      %427 = vmatmul.mubr.f32.gmra.mrb[0].mxu0 %v247
      %v428 = vpop.f32.mrb[0].mxu0
      %v429 = vadd.f32 %v213, %v428
      %v430 = vpop.f32.mrb[0].mxu0
      %431 = vmatprep.mubr.f32.mxu0 0.0
      %432 = vmatmul.mubr.f32.gmra.mrb[0].mxu0 %v250
      %v433 = vpop.f32.mrb[0].mxu0
      %v434 = vadd.f32 %v213, %v433
      %v435 = vpop.f32.mrb[0].mxu0
      %436 = vmatprep.mubr.f32.mxu0 0.0
      %437 = vmatmul.mubr.f32.gmra.mrb[0].mxu0 %v253
      %v438 = vpop.f32.mrb[0].mxu0
      %v439 = vadd.f32 %v213, %v438
      %v440 = vpop.f32.mrb[0].mxu0
      %441 = vmatprep.mubr.f32.mxu0 0.0
      %442 = vmatmul.mubr.f32.gmra.mrb[0].mxu0 %v256
      %v443 = vpop.f32.mrb[0].mxu0
      %v444 = vadd.f32 %v213, %v443
      %v445 = vpop.f32.mrb[0].mxu0
      %446 = vmatprep.mubr.f32.mxu0 0.0
      %447 = vmatmul.mubr.f32.gmra.mrb[0].mxu0 %v259
      %v448 = vpop.f32.mrb[0].mxu0
      %v449 = vadd.f32 %v213, %v448
      %v450 = vpop.f32.mrb[0].mxu0
      %451 = vmatprep.mubr.f32.mxu0 0.0
      %452 = vmatmul.mubr.f32.gmra.mrb[0].mxu0 %v262
      %v453 = vpop.f32.mrb[0].mxu0
      %v454 = vadd.f32 %v213, %v453
      %v455 = vpop.f32.mrb[0].mxu0
      %456 = vmatprep.mubr.f32.mxu0 0.0
      %457 = vmatmul.mubr.f32.gmra.mrb[0].mxu0 %v265
      %v458 = vpop.f32.mrb[0].mxu0
      %v459 = vadd.f32 %v213, %v458
      %v460 = vpop.f32.mrb[0].mxu0
      %461 = vmatprep.mubr.f32.mxu0 0.0
      %462 = vmatmul.mubr.f32.gmra.mrb[0].mxu0 %v268
      %v463 = vpop.f32.mrb[0].mxu0
      %v464 = vadd.f32 %v213, %v463
      %v465 = vpop.f32.mrb[0].mxu0
      %466 = vmatprep.mubr.f32.mxu0 0.0
      %467 = vmatmul.mubr.f32.gmra.mrb[0].mxu0 %v271
      %v468 = vpop.f32.mrb[0].mxu0
      %v469 = vadd.f32 %v213, %v468
      %v470 = vpop.f32.mrb[0].mxu0
      %471 = vmatprep.mubr.f32.mxu0 0.0
      %472 = vmatmul.mubr.f32.gmra.mrb[0].mxu0 %v274
      %v473 = vpop.f32.mrb[0].mxu0
      %v474 = vadd.f32 %v213, %v473
      %v475 = vpop.f32.mrb[0].mxu0
      %476 = vmatprep.mubr.f32.mxu0 0.0
      %477 = vmatmul.mubr.f32.gmra.mrb[0].mxu0 %v277
      %v478 = vpop.f32.mrb[0].mxu0
      %v479 = vadd.f32 %v213, %v478
      %v480 = vpop.f32.mrb[0].mxu0
      %481 = vmatprep.mubr.f32.mxu0 0.0
      %482 = vmatmul.mubr.f32.gmra.mrb[0].mxu0 %v280
      %v483 = vpop.f32.mrb[0].mxu0
      %v484 = vadd.f32 %v213, %v483
      %v485 = vpop.f32.mrb[0].mxu0
      %486 = vmatprep.mubr.f32.mxu0 0.0
      %487 = vmatmul.mubr.f32.gmra.mrb[0].mxu0 %v283
      %v488 = vpop.f32.mrb[0].mxu0
      %v489 = vadd.f32 %v213, %v488
      %v490 = vpop.f32.mrb[0].mxu0
      %491 = vmatprep.mubr.f32.mxu0 0.0
      %492 = vmatmul.mubr.f32.gmra.mrb[0].mxu0 %v286
      %v493 = vpop.f32.mrb[0].mxu0
      %v494 = vadd.f32 %v213, %v493
      %v495 = vpop.f32.mrb[0].mxu0
      %496 = vmatprep.mubr.f32.mxu0 0.0
      %497 = vmatmul.mubr.f32.gmra.mrb[0].mxu0 %v289
      %v498 = vpop.f32.mrb[0].mxu0
      %v499 = vadd.f32 %v213, %v498
      %v500 = vpop.f32.mrb[0].mxu0
      %501 = vmatprep.mubr.f32.mxu0 0.0
      %502 = vmatmul.mubr.f32.gmra.mrb[0].mxu0 %v292
      %v503 = vpop.f32.mrb[0].mxu0
      %v504 = vadd.f32 %v213, %v503
      %v505 = vpop.f32.mrb[0].mxu0
      %506 = vmatprep.mubr.f32.mxu0 0.0
      %507 = vmatmul.mubr.f32.gmra.mrb[0].mxu0 %v295
      %v508 = vpop.f32.mrb[0].mxu0
      %v509 = vadd.f32 %v213, %v508
      %v510 = vpop.f32.mrb[0].mxu0
      %511 = vmatprep.mubr.f32.mxu0 0.0
      %512 = vmatmul.mubr.f32.gmra.mrb[0].mxu0 %v298
      %v513 = vpop.f32.mrb[0].mxu0
      %v514 = vadd.f32 %v213, %v513
      %v515 = vpop.f32.mrb[0].mxu0
      %516 = vmatprep.mubr.f32.mxu0 0.0
      %517 = vmatmul.mubr.f32.gmra.mrb[0].mxu0 %v301
      %v518 = vpop.f32.mrb[0].mxu0
      %v519 = vadd.f32 %v213, %v518
      %v520 = vpop.f32.mrb[0].mxu0
      %521 = vmatprep.mubr.f32.mxu0 0.0
      %522 = vmatmul.mubr.f32.gmra.mrb[0].mxu0 %v304
      %v523 = vpop.f32.mrb[0].mxu0
      %v524 = vadd.f32 %v213, %v523
      %v525 = vpop.f32.mrb[0].mxu0
      %526 = vmatprep.mubr.f32.mxu0 0.0
      %527 = vmatmul.mubr.f32.gmra.mrb[0].mxu0 %v307
      %v528 = vpop.f32.mrb[0].mxu0
      %v529 = vadd.f32 %v213, %v528
      %v530 = vpop.f32.mrb[0].mxu0
      %531 = vmatprep.mubr.f32.mxu0 0.0
      %532 = vmatmul.mubr.f32.gmra.mrb[0].mxu0 %v310
      %v533 = vpop.f32.mrb[0].mxu0
      %v534 = vadd.f32 %v213, %v533
      %v535 = vpop.f32.mrb[0].mxu0
      %536 = vdwg.mxu0
      %vm537 = vcmask 64512
      %538 = vst.msk [vmem:[%s172] sm:$0xff] %vm537, %v379
      %539 = vst.msk [vmem:[%s172 + $0x8] sm:$0xff] %vm537, %v384
      %540 = vst.msk [vmem:[%s172 + $0x10] sm:$0xff] %vm537, %v389
      %541 = vst.msk [vmem:[%s172 + $0x18] sm:$0xff] %vm537, %v394
      %542 = vst.msk [vmem:[%s172 + $0x20] sm:$0xff] %vm537, %v399
      %543 = vst.msk [vmem:[%s172 + $0x28] sm:$0xff] %vm537, %v404
      %544 = vst.msk [vmem:[%s172 + $0x30] sm:$0xff] %vm537, %v409
      %545 = vst.msk [vmem:[%s172 + $0x38] sm:$0xff] %vm537, %v414
      %546 = vst.msk [vmem:[%s172 + $0x40] sm:$0xff] %vm537, %v419
      %547 = vst.msk [vmem:[%s172 + $0x48] sm:$0xff] %vm537, %v424
      %548 = vst.msk [vmem:[%s172 + $0x50] sm:$0xff] %vm537, %v429
      %549 = vst.msk [vmem:[%s172 + $0x58] sm:$0xff] %vm537, %v434
      %550 = vst.msk [vmem:[%s172 + $0x60] sm:$0xff] %vm537, %v439
      %551 = vst.msk [vmem:[%s172 + $0x68] sm:$0xff] %vm537, %v444
      %552 = vst.msk [vmem:[%s172 + $0x70] sm:$0xff] %vm537, %v449
      %553 = vst.msk [vmem:[%s172 + $0x78] sm:$0xff] %vm537, %v454
      %554 = vst.msk [vmem:[%s172 + $0x80] sm:$0xff] %vm537, %v459
      %555 = vst.msk [vmem:[%s172 + $0x88] sm:$0xff] %vm537, %v464
      %556 = vst.msk [vmem:[%s172 + $0x90] sm:$0xff] %vm537, %v469
      %557 = vst.msk [vmem:[%s172 + $0x98] sm:$0xff] %vm537, %v474
      %558 = vst.msk [vmem:[%s172 + $0xa0] sm:$0xff] %vm537, %v479
      %559 = vst.msk [vmem:[%s172 + $0xa8] sm:$0xff] %vm537, %v484
      %560 = vst.msk [vmem:[%s172 + $0xb0] sm:$0xff] %vm537, %v489
      %561 = vst.msk [vmem:[%s172 + $0xb8] sm:$0xff] %vm537, %v494
      %562 = vst.msk [vmem:[%s172 + $0xc0] sm:$0xff] %vm537, %v499
      %563 = vst.msk [vmem:[%s172 + $0xc8] sm:$0xff] %vm537, %v504
      %564 = vst.msk [vmem:[%s172 + $0xd0] sm:$0xff] %vm537, %v509
      %565 = vst.msk [vmem:[%s172 + $0xd8] sm:$0xff] %vm537, %v514
      %566 = vst.msk [vmem:[%s172 + $0xe0] sm:$0xff] %vm537, %v519
      %567 = vst.msk [vmem:[%s172 + $0xe8] sm:$0xff] %vm537, %v524
      %568 = vst.msk [vmem:[%s172 + $0xf0] sm:$0xff] %vm537, %v529
      %569 = vst.msk [vmem:[%s172 + $0xf8] sm:$0xff] %vm537, %v534
      %s570 = smul.u32 32, %s14
      %p571 = scmp.lt.s32.totalorder %s570, 63
      %s572 = scalar_select %p571, %s570, 63
      %s573 = smul.addr %s572, 8
      %s574 = scalar_lea.vmem %s3, %s573
      // Predicated region
      $region33: #{cluster_forward.5} parent=31 // pred_check
        %p575 = pneg %p100
      $region34: #{cluster_forward.5} parent=31 // pred_check_branch
        %577 = sbr.rel (%p575) target = $region36
      $region35: #{cluster_forward.5} parent=31 // pred_region
        %s578 = smul.u32 32, %s14
      $region36: #{cluster_forward.5} parent=31 // pred_fallthru
        _
    $region32: #{cluster_forward.5} parent=5 // pred_fallthru
      _
    %p579 = scmp.le.s32.totalorder 2, %s9
    // Predicated region
    $region37: #{cluster_forward.5} parent=5 // pred_check
      %p580 = pneg %p579
    $region38: #{cluster_forward.5} parent=5 // pred_check_branch
      %582 = sbr.rel (%p580) target = $region40
    $region39: #{cluster_forward.5} parent=5 // pred_region
      %s583 = ssub.s32 %s9, 2
      // Predicated region
      $region41: #{cluster_forward.5} parent=39 // pred_check
        %p584 = pneg %p106
      $region42: #{cluster_forward.5} parent=39 // pred_check_branch
        %586 = sbr.rel (%p584) target = $region44
      $region43: #{cluster_forward.5} parent=39 // pred_region
        %s587 = smul.u32 32, %s15
        %p588 = scmp.lt.s32.totalorder %s587, 63
        %s589 = scalar_select %p588, %s587, 63
        %s590 = smul.addr %s589, 8
        %s591 = scalar_lea.vmem %s3, %s590
      $region44: #{cluster_forward.5} parent=39 // pred_fallthru
        _
    $region40: #{cluster_forward.5} parent=5 // pred_fallthru
      _
  $region6: #{cluster_forward.5} parent=0 // loop_footer
    %s13 = sadd.s32 1, %s9
  $region7: #{cluster_forward.5} parent=0 // loop_footer_branch
    %8 = sbr.rel target = $region3
  $region8: #{cluster_forward.5} parent=0 // loop_exit
    _

</llo_original>
